<compile_context>
chip_gen: v5e
topology: v5e:2x2
jax: 0.10.0
libtpu: 0.0.40
codegen_flags: <defaults>
</compile_context>

<pallas_src>
import functools

import jax
import jax.numpy as jnp
from jax.experimental import pallas as pl
from jax.experimental.pallas import tpu as pltpu


# ---------------------------------------------------------------------------
# Fused InceptionA kernel (NB batch elements per grid step)
# ---------------------------------------------------------------------------
def _inception_kernel(x_ref, m_ref, wx_ref, bx_ref, w5_ref, b5_ref,
                      w32_ref, b32_ref, w33_ref, b33_ref, o_ref, *, H, W, NB):
    HW = H * W
    f32 = jnp.float32

    def tap(v, oy, ox):
        # patch[:, h*W + w] = v[:, (h+oy)*W + (w+ox)] inside the image, else 0.
        if oy == 0 and ox == 0:
            return v
        s = oy * W + ox
        t = pltpu.roll(v, (-s) % HW, axis=1)           # XLU lane rotate, no pad buffer
        i = (oy + 2) * 5 + (ox + 2)                    # row in the (25, HW) mask table
        return t * m_ref[i:i + 1, :]                   # zero the wrapped (invalid) lanes

    def im2col(v, K):
        # (C, HW) -> (K*K*C, HW): taps stacked along the contraction axis.
        p = (K - 1) // 2
        cols = [tap(v, oy, ox)
                for oy in range(-p, p + 1) for ox in range(-p, p + 1)]
        return jnp.concatenate(cols, axis=0)

    def mm(w_ref_, b_ref_, slab):
        # One MXU matmul per conv (contraction = K*K*cin), bias in the epilogue.
        return jnp.dot(w_ref_[...], slab, preferred_element_type=f32) + b_ref_[...]

    od = o_ref.dtype
    for b in range(NB):                                # static unroll over the batch tile
        x = x_ref[b].astype(f32)                       # (Cin, HW), lane = HW

        # One matmul for everything that reads x:
        #   rows  0:24 branch_pool (avg-pool + 1x1 folded into replicated 3x3, /9 in W)
        #   rows 24:40 branch1x1, 40:56 branch5x5_1, 56:72 branch3x3_1 (center tap only)
        yx = mm(wx_ref, bx_ref, im2col(x, 3))                    # (72, HW)

        out_5x5 = mm(w5_ref, b5_ref, im2col(yx[40:56, :], 5))    # (24, HW)
        t4 = mm(w32_ref, b32_ref, im2col(yx[56:72, :], 3))       # (24, HW)
        out_3x3 = mm(w33_ref, b33_ref, im2col(t4, 3))            # (24, HW)

        # torch.cat order: [pool(24), 1x1(16), 5x5(24), 3x3(24)] = 88 channels.
        # Direct sublane-aligned (multiples of 8), lane-dense stores; no concat copy.
        o_ref[b, 0:24] = yx[0:24, :].astype(od)
        o_ref[b, 24:40] = yx[24:40, :].astype(od)
        o_ref[b, 40:64] = out_5x5.astype(od)
        o_ref[b, 64:88] = out_3x3.astype(od)


# ---------------------------------------------------------------------------
# Wrapper: weight prep + pallas_call plumbing
# ---------------------------------------------------------------------------
def _prep_weights(params, Cin):
    f32 = jnp.float32

    def t1x1(name, cout):  # HWIO (1,1,Cin,cout) -> (cout, Cin)
        return params[name].reshape(Cin, cout).T

    def im2col_w(name, K, cin, cout):
        # HWIO (K,K,cin,cout) -> (cout, K*K*cin); column block i=ky*K+kx holds w[ky,kx].T
        w = params[name].reshape(K * K, cin, cout)
        return jnp.transpose(w, (2, 0, 1)).reshape(cout, K * K * cin)

    # Fused "reads x" weight (72, 9*Cin): branch_pool as 3x3 with wp/9 replicated
    # over the 9 taps; the three 1x1 convs live in the center-tap column block.
    wp = t1x1("branch_pool_w", 24) / 9.0
    wx_pool = jnp.broadcast_to(wp[:, None, :], (24, 9, Cin)).reshape(24, 9 * Cin)

    def center_only(w_t, cout):
        blk = jnp.zeros((cout, 9, Cin), f32).at[:, 4, :].set(w_t)
        return blk.reshape(cout, 9 * Cin)

    wx = jnp.concatenate([
        wx_pool,
        center_only(t1x1("branch1x1_w", 16), 16),
        center_only(t1x1("branch5x5_1_w", 16), 16),
        center_only(t1x1("branch3x3_1_w", 16), 16),
    ], axis=0)                                                     # (72, 9*Cin)
    bx = jnp.concatenate([params["branch_pool_b"], params["branch1x1_b"],
                          params["branch5x5_1_b"], params["branch3x3_1_b"]]
                         ).reshape(72, 1)

    w5 = im2col_w("branch5x5_2_w", 5, 16, 24)                      # (24, 400)
    b5 = params["branch5x5_2_b"].reshape(24, 1)
    w32 = im2col_w("branch3x3_2_w", 3, 16, 24)                     # (24, 144)
    b32 = params["branch3x3_2_b"].reshape(24, 1)
    w33 = im2col_w("branch3x3_3_w", 3, 24, 24)                     # (24, 216)
    b33 = params["branch3x3_3_b"].reshape(24, 1)
    return wx, bx, w5, b5, w32, b32, w33, b33


def _tap_masks(H, W):
    # masks[(oy+2)*5+(ox+2), p] = 1 iff (row(p)+oy, col(p)+ox) is inside the image.
    # Covers both row and column overflow, so a plain lane rotate + mask is exact.
    row = jnp.repeat(jnp.arange(H, dtype=jnp.int32), W)            # (HW,)
    col = jnp.tile(jnp.arange(W, dtype=jnp.int32), H)              # (HW,)
    offs = jnp.arange(-2, 3, dtype=jnp.int32)
    oy = jnp.repeat(offs, 5)[:, None]                              # (25, 1)
    ox = jnp.tile(offs, 5)[:, None]                                # (25, 1)
    valid = ((row[None, :] + oy >= 0) & (row[None, :] + oy < H) &
             (col[None, :] + ox >= 0) & (col[None, :] + ox < W))
    return valid.astype(jnp.float32)                               # (25, HW)


def _pick_block_batch(n, cap=4):
    # Largest divisor of n that is <= cap (amortizes per-grid-step overhead).
    best = 1
    for nb in range(1, min(n, cap) + 1):
        if n % nb == 0:
            best = nb
    return best


def inception_a(x_nchw, params):
    N, Cin, H, W = x_nchw.shape
    HW = H * W
    x_flat = x_nchw.reshape(N, Cin, HW)            # free row-major reshape

    wx, bx, w5, b5, w32, b32, w33, b33 = _prep_weights(params, Cin)
    masks = _tap_masks(H, W)
    NB = _pick_block_batch(N)

    def full_spec(a):
        nd = a.ndim
        return pl.BlockSpec(a.shape, lambda n, _nd=nd: (0,) * _nd)

    kernel = functools.partial(_inception_kernel, H=H, W=W, NB=NB)

    out_flat = pl.pallas_call(
        kernel,
        out_shape=jax.ShapeDtypeStruct((N, 88, HW), x_nchw.dtype),
        grid=(N // NB,),
        in_specs=[
            pl.BlockSpec((NB, Cin, HW), lambda n: (n, 0, 0)),
            full_spec(masks),
            full_spec(wx), full_spec(bx),
            full_spec(w5), full_spec(b5),
            full_spec(w32), full_spec(b32),
            full_spec(w33), full_spec(b33),
        ],
        out_specs=pl.BlockSpec((NB, 88, HW), lambda n: (n, 0, 0)),
        compiler_params=pltpu.CompilerParams(dimension_semantics=("parallel",)),
    )(x_flat, masks, wx, bx, w5, b5, w32, b32, w33, b33)

    return out_flat.reshape(N, 88, H, W)           # free row-major reshape -> NCHW


# ---------------------------------------------------------------------------
# Parameter init (mirrors PyTorch Conv2d default: uniform +/- 1/sqrt(fan_in))
# ---------------------------------------------------------------------------
def init_params(key, in_channels):
    def conv_params(k, ksize, cin, cout):
        kw, kb = jax.random.split(k)
        bound = 1.0 / float(cin * ksize * ksize) ** 0.5
        w = jax.random.uniform(kw, (ksize, ksize, cin, cout), jnp.float32, -bound, bound)
        b = jax.random.uniform(kb, (cout,), jnp.float32, -bound, bound)
        return w, b

    keys = jax.random.split(key, 7)
    p = {}
    p["branch_pool_w"], p["branch_pool_b"] = conv_params(keys[0], 1, in_channels, 24)
    p["branch1x1_w"], p["branch1x1_b"] = conv_params(keys[1], 1, in_channels, 16)
    p["branch5x5_1_w"], p["branch5x5_1_b"] = conv_params(keys[2], 1, in_channels, 16)
    p["branch5x5_2_w"], p["branch5x5_2_b"] = conv_params(keys[3], 5, 16, 24)
    p["branch3x3_1_w"], p["branch3x3_1_b"] = conv_params(keys[4], 1, in_channels, 16)
    p["branch3x3_2_w"], p["branch3x3_2_b"] = conv_params(keys[5], 3, 16, 24)
    p["branch3x3_3_w"], p["branch3x3_3_b"] = conv_params(keys[6], 3, 24, 24)
    return p


# ---------------------------------------------------------------------------
# Pure-JAX reference (sanity check only)
# ---------------------------------------------------------------------------
def _ref_conv(x, w, b):  # NHWC, HWIO, same padding
    y = jax.lax.conv_general_dilated(
        x, w, window_strides=(1, 1), padding="SAME",
        dimension_numbers=("NHWC", "HWIO", "NHWC"))
    return y + b


def _ref_inception(x_nchw, p):
    x = jnp.transpose(x_nchw, (0, 2, 3, 1))
    pooled = jax.lax.reduce_window(
        x, 0.0, jax.lax.add, (1, 3, 3, 1), (1, 1, 1, 1),
        [(0, 0), (1, 1), (1, 1), (0, 0)]) / 9.0
    o1 = _ref_conv(pooled, p["branch_pool_w"], p["branch_pool_b"])
    o2 = _ref_conv(x, p["branch1x1_w"], p["branch1x1_b"])
    o3 = _ref_conv(_ref_conv(x, p["branch5x5_1_w"], p["branch5x5_1_b"]),
                   p["branch5x5_2_w"], p["branch5x5_2_b"])
    t4 = _ref_conv(x, p["branch3x3_1_w"], p["branch3x3_1_b"])
    t4 = _ref_conv(t4, p["branch3x3_2_w"], p["branch3x3_2_b"])
    o4 = _ref_conv(t4, p["branch3x3_3_w"], p["branch3x3_3_b"])
    return jnp.transpose(jnp.concatenate([o1, o2, o3, o4], -1), (0, 3, 1, 2))


if __name__ == "__main__":
    key = jax.random.PRNGKey(0)
    kx, kp = jax.random.split(key)
    in_channels = 4
    x = jax.random.normal(kx, (2, in_channels, 16, 16), jnp.float32)  # NCHW
    params = init_params(kp, in_channels)

    out = jax.jit(inception_a)(x, params)
    out = jax.block_until_ready(out)
    assert out.shape == (2, 88, 16, 16), out.shape

    ref = _ref_inception(x, params)
    assert jnp.allclose(out, ref, atol=1e-4, rtol=1e-4), float(jnp.max(jnp.abs(out - ref)))

    print("KERNEL_OK")
</pallas_src>

<mosaic_0001>
module attributes {stable_mosaic.version = 11 : i64} {
  func.func @_inception_kernel(%arg0: i32, %arg1: memref<2x4x256xf32, #tpu.memory_space<vmem>>, %arg2: memref<25x256xf32, #tpu.memory_space<vmem>>, %arg3: memref<72x36xf32, #tpu.memory_space<vmem>>, %arg4: memref<72x1xf32, #tpu.memory_space<vmem>>, %arg5: memref<24x400xf32, #tpu.memory_space<vmem>>, %arg6: memref<24x1xf32, #tpu.memory_space<vmem>>, %arg7: memref<24x144xf32, #tpu.memory_space<vmem>>, %arg8: memref<24x1xf32, #tpu.memory_space<vmem>>, %arg9: memref<24x216xf32, #tpu.memory_space<vmem>>, %arg10: memref<24x1xf32, #tpu.memory_space<vmem>>, %arg11: memref<2x88x256xf32, #tpu.memory_space<vmem>>) attributes {dimension_semantics = [#tpu.dimension_semantics<parallel>], iteration_bounds = array<i64: 1>, scalar_prefetch = 0 : i64, scratch_operands = 0 : i64, tpu.core_type = #tpu.core_type<tc>, window_params = [{transform_indices = @transform_0, window_bounds = array<i64: 2, 4, 256>}, {pipeline_mode = #tpu.pipeline_mode<synchronous>, transform_indices = @transform_1, window_bounds = array<i64: 25, 256>}, {pipeline_mode = #tpu.pipeline_mode<synchronous>, transform_indices = @transform_2, window_bounds = array<i64: 72, 36>}, {pipeline_mode = #tpu.pipeline_mode<synchronous>, transform_indices = @transform_3, window_bounds = array<i64: 72, 1>}, {pipeline_mode = #tpu.pipeline_mode<synchronous>, transform_indices = @transform_4, window_bounds = array<i64: 24, 400>}, {pipeline_mode = #tpu.pipeline_mode<synchronous>, transform_indices = @transform_5, window_bounds = array<i64: 24, 1>}, {pipeline_mode = #tpu.pipeline_mode<synchronous>, transform_indices = @transform_6, window_bounds = array<i64: 24, 144>}, {pipeline_mode = #tpu.pipeline_mode<synchronous>, transform_indices = @transform_7, window_bounds = array<i64: 24, 1>}, {pipeline_mode = #tpu.pipeline_mode<synchronous>, transform_indices = @transform_8, window_bounds = array<i64: 24, 216>}, {pipeline_mode = #tpu.pipeline_mode<synchronous>, transform_indices = @transform_9, window_bounds = array<i64: 24, 1>}, {transform_indices = @transform_10, window_bounds = array<i64: 2, 88, 256>}]} {
    %c0 = arith.constant 0 : index
    %c0_0 = arith.constant 0 : index
    %c0_1 = arith.constant 0 : index
    %0 = vector.load %arg1[%c0, %c0_0, %c0_1] : memref<2x4x256xf32, #tpu.memory_space<vmem>>, vector<1x4x256xf32>
    %1 = vector.shape_cast %0 : vector<1x4x256xf32> to vector<4x256xf32>
    %c17_i32 = arith.constant 17 : i32
    %2 = tpu.dynamic_rotate %1 by %c17_i32 dim 1 : vector<4x256xf32>, i32 -> vector<4x256xf32>
    %c6 = arith.constant 6 : index
    %c0_2 = arith.constant 0 : index
    %3 = vector.load %arg2[%c6, %c0_2] : memref<25x256xf32, #tpu.memory_space<vmem>>, vector<1x256xf32>
    %4 = vector.broadcast %3 : vector<1x256xf32> to vector<4x256xf32>
    %5 = arith.mulf %2, %4 : vector<4x256xf32>
    %c16_i32 = arith.constant 16 : i32
    %6 = tpu.dynamic_rotate %1 by %c16_i32 dim 1 : vector<4x256xf32>, i32 -> vector<4x256xf32>
    %c7 = arith.constant 7 : index
    %c0_3 = arith.constant 0 : index
    %7 = vector.load %arg2[%c7, %c0_3] : memref<25x256xf32, #tpu.memory_space<vmem>>, vector<1x256xf32>
    %8 = vector.broadcast %7 : vector<1x256xf32> to vector<4x256xf32>
    %9 = arith.mulf %6, %8 : vector<4x256xf32>
    %c15_i32 = arith.constant 15 : i32
    %10 = tpu.dynamic_rotate %1 by %c15_i32 dim 1 : vector<4x256xf32>, i32 -> vector<4x256xf32>
    %c8 = arith.constant 8 : index
    %c0_4 = arith.constant 0 : index
    %11 = vector.load %arg2[%c8, %c0_4] : memref<25x256xf32, #tpu.memory_space<vmem>>, vector<1x256xf32>
    %12 = vector.broadcast %11 : vector<1x256xf32> to vector<4x256xf32>
    %13 = arith.mulf %10, %12 : vector<4x256xf32>
    %c1_i32 = arith.constant 1 : i32
    %14 = tpu.dynamic_rotate %1 by %c1_i32 dim 1 : vector<4x256xf32>, i32 -> vector<4x256xf32>
    %c11 = arith.constant 11 : index
    %c0_5 = arith.constant 0 : index
    %15 = vector.load %arg2[%c11, %c0_5] : memref<25x256xf32, #tpu.memory_space<vmem>>, vector<1x256xf32>
    %16 = vector.broadcast %15 : vector<1x256xf32> to vector<4x256xf32>
    %17 = arith.mulf %14, %16 : vector<4x256xf32>
    %c255_i32 = arith.constant 255 : i32
    %18 = tpu.dynamic_rotate %1 by %c255_i32 dim 1 : vector<4x256xf32>, i32 -> vector<4x256xf32>
    %c13 = arith.constant 13 : index
    %c0_6 = arith.constant 0 : index
    %19 = vector.load %arg2[%c13, %c0_6] : memref<25x256xf32, #tpu.memory_space<vmem>>, vector<1x256xf32>
    %20 = vector.broadcast %19 : vector<1x256xf32> to vector<4x256xf32>
    %21 = arith.mulf %18, %20 : vector<4x256xf32>
    %c241_i32 = arith.constant 241 : i32
    %22 = tpu.dynamic_rotate %1 by %c241_i32 dim 1 : vector<4x256xf32>, i32 -> vector<4x256xf32>
    %c16 = arith.constant 16 : index
    %c0_7 = arith.constant 0 : index
    %23 = vector.load %arg2[%c16, %c0_7] : memref<25x256xf32, #tpu.memory_space<vmem>>, vector<1x256xf32>
    %24 = vector.broadcast %23 : vector<1x256xf32> to vector<4x256xf32>
    %25 = arith.mulf %22, %24 : vector<4x256xf32>
    %c240_i32 = arith.constant 240 : i32
    %26 = tpu.dynamic_rotate %1 by %c240_i32 dim 1 : vector<4x256xf32>, i32 -> vector<4x256xf32>
    %c17 = arith.constant 17 : index
    %c0_8 = arith.constant 0 : index
    %27 = vector.load %arg2[%c17, %c0_8] : memref<25x256xf32, #tpu.memory_space<vmem>>, vector<1x256xf32>
    %28 = vector.broadcast %27 : vector<1x256xf32> to vector<4x256xf32>
    %29 = arith.mulf %26, %28 : vector<4x256xf32>
    %c239_i32 = arith.constant 239 : i32
    %30 = tpu.dynamic_rotate %1 by %c239_i32 dim 1 : vector<4x256xf32>, i32 -> vector<4x256xf32>
    %c18 = arith.constant 18 : index
    %c0_9 = arith.constant 0 : index
    %31 = vector.load %arg2[%c18, %c0_9] : memref<25x256xf32, #tpu.memory_space<vmem>>, vector<1x256xf32>
    %32 = vector.broadcast %31 : vector<1x256xf32> to vector<4x256xf32>
    %33 = arith.mulf %30, %32 : vector<4x256xf32>
    %34 = tpu.concatenate %5, %9, %13, %17, %1, %21, %25, %29, %33 in 0 : vector<4x256xf32>, vector<4x256xf32>, vector<4x256xf32>, vector<4x256xf32>, vector<4x256xf32>, vector<4x256xf32>, vector<4x256xf32>, vector<4x256xf32>, vector<4x256xf32> -> vector<36x256xf32>
    %c0_10 = arith.constant 0 : index
    %c0_11 = arith.constant 0 : index
    %35 = vector.load %arg3[%c0_10, %c0_11] : memref<72x36xf32, #tpu.memory_space<vmem>>, vector<72x36xf32>
    %cst = arith.constant dense<0.000000e+00> : vector<72x256xf32>
    %36 = tpu.matmul %35, %34, %cst {dimension_numbers = #tpu.dot_dimension_numbers<[1], [0], [0], [1], [0, 0, 1, 1], [], []>} : vector<72x36xf32>, vector<36x256xf32>, vector<72x256xf32> -> vector<72x256xf32>
    %c0_12 = arith.constant 0 : index
    %c0_13 = arith.constant 0 : index
    %37 = vector.load %arg4[%c0_12, %c0_13] : memref<72x1xf32, #tpu.memory_space<vmem>>, vector<72x1xf32>
    %38 = vector.broadcast %37 : vector<72x1xf32> to vector<72x256xf32>
    %39 = arith.addf %36, %38 : vector<72x256xf32>
    %40 = vector.extract_strided_slice %39 {offsets = [40, 0], sizes = [16, 256], strides = [1, 1]} : vector<72x256xf32> to vector<16x256xf32>
    %c34_i32 = arith.constant 34 : i32
    %41 = tpu.dynamic_rotate %40 by %c34_i32 dim 1 : vector<16x256xf32>, i32 -> vector<16x256xf32>
    %c0_14 = arith.constant 0 : index
    %c0_15 = arith.constant 0 : index
    %42 = vector.load %arg2[%c0_14, %c0_15] : memref<25x256xf32, #tpu.memory_space<vmem>>, vector<1x256xf32>
    %43 = vector.broadcast %42 : vector<1x256xf32> to vector<16x256xf32>
    %44 = arith.mulf %41, %43 : vector<16x256xf32>
    %c33_i32 = arith.constant 33 : i32
    %45 = tpu.dynamic_rotate %40 by %c33_i32 dim 1 : vector<16x256xf32>, i32 -> vector<16x256xf32>
    %c1 = arith.constant 1 : index
    %c0_16 = arith.constant 0 : index
    %46 = vector.load %arg2[%c1, %c0_16] : memref<25x256xf32, #tpu.memory_space<vmem>>, vector<1x256xf32>
    %47 = vector.broadcast %46 : vector<1x256xf32> to vector<16x256xf32>
    %48 = arith.mulf %45, %47 : vector<16x256xf32>
    %c32_i32 = arith.constant 32 : i32
    %49 = tpu.dynamic_rotate %40 by %c32_i32 dim 1 : vector<16x256xf32>, i32 -> vector<16x256xf32>
    %c2 = arith.constant 2 : index
    %c0_17 = arith.constant 0 : index
    %50 = vector.load %arg2[%c2, %c0_17] : memref<25x256xf32, #tpu.memory_space<vmem>>, vector<1x256xf32>
    %51 = vector.broadcast %50 : vector<1x256xf32> to vector<16x256xf32>
    %52 = arith.mulf %49, %51 : vector<16x256xf32>
    %c31_i32 = arith.constant 31 : i32
    %53 = tpu.dynamic_rotate %40 by %c31_i32 dim 1 : vector<16x256xf32>, i32 -> vector<16x256xf32>
    %c3 = arith.constant 3 : index
    %c0_18 = arith.constant 0 : index
    %54 = vector.load %arg2[%c3, %c0_18] : memref<25x256xf32, #tpu.memory_space<vmem>>, vector<1x256xf32>
    %55 = vector.broadcast %54 : vector<1x256xf32> to vector<16x256xf32>
    %56 = arith.mulf %53, %55 : vector<16x256xf32>
    %c30_i32 = arith.constant 30 : i32
    %57 = tpu.dynamic_rotate %40 by %c30_i32 dim 1 : vector<16x256xf32>, i32 -> vector<16x256xf32>
    %c4 = arith.constant 4 : index
    %c0_19 = arith.constant 0 : index
    %58 = vector.load %arg2[%c4, %c0_19] : memref<25x256xf32, #tpu.memory_space<vmem>>, vector<1x256xf32>
    %59 = vector.broadcast %58 : vector<1x256xf32> to vector<16x256xf32>
    %60 = arith.mulf %57, %59 : vector<16x256xf32>
    %c18_i32 = arith.constant 18 : i32
    %61 = tpu.dynamic_rotate %40 by %c18_i32 dim 1 : vector<16x256xf32>, i32 -> vector<16x256xf32>
    %c5 = arith.constant 5 : index
    %c0_20 = arith.constant 0 : index
    %62 = vector.load %arg2[%c5, %c0_20] : memref<25x256xf32, #tpu.memory_space<vmem>>, vector<1x256xf32>
    %63 = vector.broadcast %62 : vector<1x256xf32> to vector<16x256xf32>
    %64 = arith.mulf %61, %63 : vector<16x256xf32>
    %c17_i32_21 = arith.constant 17 : i32
    %65 = tpu.dynamic_rotate %40 by %c17_i32_21 dim 1 : vector<16x256xf32>, i32 -> vector<16x256xf32>
    %c6_22 = arith.constant 6 : index
    %c0_23 = arith.constant 0 : index
    %66 = vector.load %arg2[%c6_22, %c0_23] : memref<25x256xf32, #tpu.memory_space<vmem>>, vector<1x256xf32>
    %67 = vector.broadcast %66 : vector<1x256xf32> to vector<16x256xf32>
    %68 = arith.mulf %65, %67 : vector<16x256xf32>
    %c16_i32_24 = arith.constant 16 : i32
    %69 = tpu.dynamic_rotate %40 by %c16_i32_24 dim 1 : vector<16x256xf32>, i32 -> vector<16x256xf32>
    %c7_25 = arith.constant 7 : index
    %c0_26 = arith.constant 0 : index
    %70 = vector.load %arg2[%c7_25, %c0_26] : memref<25x256xf32, #tpu.memory_space<vmem>>, vector<1x256xf32>
    %71 = vector.broadcast %70 : vector<1x256xf32> to vector<16x256xf32>
    %72 = arith.mulf %69, %71 : vector<16x256xf32>
    %c15_i32_27 = arith.constant 15 : i32
    %73 = tpu.dynamic_rotate %40 by %c15_i32_27 dim 1 : vector<16x256xf32>, i32 -> vector<16x256xf32>
    %c8_28 = arith.constant 8 : index
    %c0_29 = arith.constant 0 : index
    %74 = vector.load %arg2[%c8_28, %c0_29] : memref<25x256xf32, #tpu.memory_space<vmem>>, vector<1x256xf32>
    %75 = vector.broadcast %74 : vector<1x256xf32> to vector<16x256xf32>
    %76 = arith.mulf %73, %75 : vector<16x256xf32>
    %c14_i32 = arith.constant 14 : i32
    %77 = tpu.dynamic_rotate %40 by %c14_i32 dim 1 : vector<16x256xf32>, i32 -> vector<16x256xf32>
    %c9 = arith.constant 9 : index
    %c0_30 = arith.constant 0 : index
    %78 = vector.load %arg2[%c9, %c0_30] : memref<25x256xf32, #tpu.memory_space<vmem>>, vector<1x256xf32>
    %79 = vector.broadcast %78 : vector<1x256xf32> to vector<16x256xf32>
    %80 = arith.mulf %77, %79 : vector<16x256xf32>
    %c2_i32 = arith.constant 2 : i32
    %81 = tpu.dynamic_rotate %40 by %c2_i32 dim 1 : vector<16x256xf32>, i32 -> vector<16x256xf32>
    %c10 = arith.constant 10 : index
    %c0_31 = arith.constant 0 : index
    %82 = vector.load %arg2[%c10, %c0_31] : memref<25x256xf32, #tpu.memory_space<vmem>>, vector<1x256xf32>
    %83 = vector.broadcast %82 : vector<1x256xf32> to vector<16x256xf32>
    %84 = arith.mulf %81, %83 : vector<16x256xf32>
    %c1_i32_32 = arith.constant 1 : i32
    %85 = tpu.dynamic_rotate %40 by %c1_i32_32 dim 1 : vector<16x256xf32>, i32 -> vector<16x256xf32>
    %c11_33 = arith.constant 11 : index
    %c0_34 = arith.constant 0 : index
    %86 = vector.load %arg2[%c11_33, %c0_34] : memref<25x256xf32, #tpu.memory_space<vmem>>, vector<1x256xf32>
    %87 = vector.broadcast %86 : vector<1x256xf32> to vector<16x256xf32>
    %88 = arith.mulf %85, %87 : vector<16x256xf32>
    %c255_i32_35 = arith.constant 255 : i32
    %89 = tpu.dynamic_rotate %40 by %c255_i32_35 dim 1 : vector<16x256xf32>, i32 -> vector<16x256xf32>
    %c13_36 = arith.constant 13 : index
    %c0_37 = arith.constant 0 : index
    %90 = vector.load %arg2[%c13_36, %c0_37] : memref<25x256xf32, #tpu.memory_space<vmem>>, vector<1x256xf32>
    %91 = vector.broadcast %90 : vector<1x256xf32> to vector<16x256xf32>
    %92 = arith.mulf %89, %91 : vector<16x256xf32>
    %c254_i32 = arith.constant 254 : i32
    %93 = tpu.dynamic_rotate %40 by %c254_i32 dim 1 : vector<16x256xf32>, i32 -> vector<16x256xf32>
    %c14 = arith.constant 14 : index
    %c0_38 = arith.constant 0 : index
    %94 = vector.load %arg2[%c14, %c0_38] : memref<25x256xf32, #tpu.memory_space<vmem>>, vector<1x256xf32>
    %95 = vector.broadcast %94 : vector<1x256xf32> to vector<16x256xf32>
    %96 = arith.mulf %93, %95 : vector<16x256xf32>
    %c242_i32 = arith.constant 242 : i32
    %97 = tpu.dynamic_rotate %40 by %c242_i32 dim 1 : vector<16x256xf32>, i32 -> vector<16x256xf32>
    %c15 = arith.constant 15 : index
    %c0_39 = arith.constant 0 : index
    %98 = vector.load %arg2[%c15, %c0_39] : memref<25x256xf32, #tpu.memory_space<vmem>>, vector<1x256xf32>
    %99 = vector.broadcast %98 : vector<1x256xf32> to vector<16x256xf32>
    %100 = arith.mulf %97, %99 : vector<16x256xf32>
    %c241_i32_40 = arith.constant 241 : i32
    %101 = tpu.dynamic_rotate %40 by %c241_i32_40 dim 1 : vector<16x256xf32>, i32 -> vector<16x256xf32>
    %c16_41 = arith.constant 16 : index
    %c0_42 = arith.constant 0 : index
    %102 = vector.load %arg2[%c16_41, %c0_42] : memref<25x256xf32, #tpu.memory_space<vmem>>, vector<1x256xf32>
    %103 = vector.broadcast %102 : vector<1x256xf32> to vector<16x256xf32>
    %104 = arith.mulf %101, %103 : vector<16x256xf32>
    %c240_i32_43 = arith.constant 240 : i32
    %105 = tpu.dynamic_rotate %40 by %c240_i32_43 dim 1 : vector<16x256xf32>, i32 -> vector<16x256xf32>
    %c17_44 = arith.constant 17 : index
    %c0_45 = arith.constant 0 : index
    %106 = vector.load %arg2[%c17_44, %c0_45] : memref<25x256xf32, #tpu.memory_space<vmem>>, vector<1x256xf32>
    %107 = vector.broadcast %106 : vector<1x256xf32> to vector<16x256xf32>
    %108 = arith.mulf %105, %107 : vector<16x256xf32>
    %c239_i32_46 = arith.constant 239 : i32
    %109 = tpu.dynamic_rotate %40 by %c239_i32_46 dim 1 : vector<16x256xf32>, i32 -> vector<16x256xf32>
    %c18_47 = arith.constant 18 : index
    %c0_48 = arith.constant 0 : index
    %110 = vector.load %arg2[%c18_47, %c0_48] : memref<25x256xf32, #tpu.memory_space<vmem>>, vector<1x256xf32>
    %111 = vector.broadcast %110 : vector<1x256xf32> to vector<16x256xf32>
    %112 = arith.mulf %109, %111 : vector<16x256xf32>
    %c238_i32 = arith.constant 238 : i32
    %113 = tpu.dynamic_rotate %40 by %c238_i32 dim 1 : vector<16x256xf32>, i32 -> vector<16x256xf32>
    %c19 = arith.constant 19 : index
    %c0_49 = arith.constant 0 : index
    %114 = vector.load %arg2[%c19, %c0_49] : memref<25x256xf32, #tpu.memory_space<vmem>>, vector<1x256xf32>
    %115 = vector.broadcast %114 : vector<1x256xf32> to vector<16x256xf32>
    %116 = arith.mulf %113, %115 : vector<16x256xf32>
    %c226_i32 = arith.constant 226 : i32
    %117 = tpu.dynamic_rotate %40 by %c226_i32 dim 1 : vector<16x256xf32>, i32 -> vector<16x256xf32>
    %c20 = arith.constant 20 : index
    %c0_50 = arith.constant 0 : index
    %118 = vector.load %arg2[%c20, %c0_50] : memref<25x256xf32, #tpu.memory_space<vmem>>, vector<1x256xf32>
    %119 = vector.broadcast %118 : vector<1x256xf32> to vector<16x256xf32>
    %120 = arith.mulf %117, %119 : vector<16x256xf32>
    %c225_i32 = arith.constant 225 : i32
    %121 = tpu.dynamic_rotate %40 by %c225_i32 dim 1 : vector<16x256xf32>, i32 -> vector<16x256xf32>
    %c21 = arith.constant 21 : index
    %c0_51 = arith.constant 0 : index
    %122 = vector.load %arg2[%c21, %c0_51] : memref<25x256xf32, #tpu.memory_space<vmem>>, vector<1x256xf32>
    %123 = vector.broadcast %122 : vector<1x256xf32> to vector<16x256xf32>
    %124 = arith.mulf %121, %123 : vector<16x256xf32>
    %c224_i32 = arith.constant 224 : i32
    %125 = tpu.dynamic_rotate %40 by %c224_i32 dim 1 : vector<16x256xf32>, i32 -> vector<16x256xf32>
    %c22 = arith.constant 22 : index
    %c0_52 = arith.constant 0 : index
    %126 = vector.load %arg2[%c22, %c0_52] : memref<25x256xf32, #tpu.memory_space<vmem>>, vector<1x256xf32>
    %127 = vector.broadcast %126 : vector<1x256xf32> to vector<16x256xf32>
    %128 = arith.mulf %125, %127 : vector<16x256xf32>
    %c223_i32 = arith.constant 223 : i32
    %129 = tpu.dynamic_rotate %40 by %c223_i32 dim 1 : vector<16x256xf32>, i32 -> vector<16x256xf32>
    %c23 = arith.constant 23 : index
    %c0_53 = arith.constant 0 : index
    %130 = vector.load %arg2[%c23, %c0_53] : memref<25x256xf32, #tpu.memory_space<vmem>>, vector<1x256xf32>
    %131 = vector.broadcast %130 : vector<1x256xf32> to vector<16x256xf32>
    %132 = arith.mulf %129, %131 : vector<16x256xf32>
    %c222_i32 = arith.constant 222 : i32
    %133 = tpu.dynamic_rotate %40 by %c222_i32 dim 1 : vector<16x256xf32>, i32 -> vector<16x256xf32>
    %c24 = arith.constant 24 : index
    %c0_54 = arith.constant 0 : index
    %134 = vector.load %arg2[%c24, %c0_54] : memref<25x256xf32, #tpu.memory_space<vmem>>, vector<1x256xf32>
    %135 = vector.broadcast %134 : vector<1x256xf32> to vector<16x256xf32>
    %136 = arith.mulf %133, %135 : vector<16x256xf32>
    %137 = tpu.concatenate %44, %48, %52, %56, %60, %64, %68, %72, %76, %80, %84, %88, %40, %92, %96, %100 in 0 : vector<16x256xf32>, vector<16x256xf32>, vector<16x256xf32>, vector<16x256xf32>, vector<16x256xf32>, vector<16x256xf32>, vector<16x256xf32>, vector<16x256xf32>, vector<16x256xf32>, vector<16x256xf32>, vector<16x256xf32>, vector<16x256xf32>, vector<16x256xf32>, vector<16x256xf32>, vector<16x256xf32>, vector<16x256xf32> -> vector<256x256xf32>
    %138 = tpu.concatenate %104, %108, %112, %116, %120, %124, %128, %132, %136 in 0 : vector<16x256xf32>, vector<16x256xf32>, vector<16x256xf32>, vector<16x256xf32>, vector<16x256xf32>, vector<16x256xf32>, vector<16x256xf32>, vector<16x256xf32>, vector<16x256xf32> -> vector<144x256xf32>
    %139 = tpu.concatenate %137, %138 in 0 : vector<256x256xf32>, vector<144x256xf32> -> vector<400x256xf32>
    %c0_55 = arith.constant 0 : index
    %c0_56 = arith.constant 0 : index
    %140 = vector.load %arg5[%c0_55, %c0_56] : memref<24x400xf32, #tpu.memory_space<vmem>>, vector<24x400xf32>
    %cst_57 = arith.constant dense<0.000000e+00> : vector<24x256xf32>
    %141 = tpu.matmul %140, %139, %cst_57 {dimension_numbers = #tpu.dot_dimension_numbers<[1], [0], [0], [1], [0, 0, 1, 1], [], []>} : vector<24x400xf32>, vector<400x256xf32>, vector<24x256xf32> -> vector<24x256xf32>
    %c0_58 = arith.constant 0 : index
    %c0_59 = arith.constant 0 : index
    %142 = vector.load %arg6[%c0_58, %c0_59] : memref<24x1xf32, #tpu.memory_space<vmem>>, vector<24x1xf32>
    %143 = vector.broadcast %142 : vector<24x1xf32> to vector<24x256xf32>
    %144 = arith.addf %141, %143 : vector<24x256xf32>
    %145 = vector.extract_strided_slice %39 {offsets = [56, 0], sizes = [16, 256], strides = [1, 1]} : vector<72x256xf32> to vector<16x256xf32>
    %c17_i32_60 = arith.constant 17 : i32
    %146 = tpu.dynamic_rotate %145 by %c17_i32_60 dim 1 : vector<16x256xf32>, i32 -> vector<16x256xf32>
    %c6_61 = arith.constant 6 : index
    %c0_62 = arith.constant 0 : index
    %147 = vector.load %arg2[%c6_61, %c0_62] : memref<25x256xf32, #tpu.memory_space<vmem>>, vector<1x256xf32>
    %148 = vector.broadcast %147 : vector<1x256xf32> to vector<16x256xf32>
    %149 = arith.mulf %146, %148 : vector<16x256xf32>
    %c16_i32_63 = arith.constant 16 : i32
    %150 = tpu.dynamic_rotate %145 by %c16_i32_63 dim 1 : vector<16x256xf32>, i32 -> vector<16x256xf32>
    %c7_64 = arith.constant 7 : index
    %c0_65 = arith.constant 0 : index
    %151 = vector.load %arg2[%c7_64, %c0_65] : memref<25x256xf32, #tpu.memory_space<vmem>>, vector<1x256xf32>
    %152 = vector.broadcast %151 : vector<1x256xf32> to vector<16x256xf32>
    %153 = arith.mulf %150, %152 : vector<16x256xf32>
    %c15_i32_66 = arith.constant 15 : i32
    %154 = tpu.dynamic_rotate %145 by %c15_i32_66 dim 1 : vector<16x256xf32>, i32 -> vector<16x256xf32>
    %c8_67 = arith.constant 8 : index
    %c0_68 = arith.constant 0 : index
    %155 = vector.load %arg2[%c8_67, %c0_68] : memref<25x256xf32, #tpu.memory_space<vmem>>, vector<1x256xf32>
    %156 = vector.broadcast %155 : vector<1x256xf32> to vector<16x256xf32>
    %157 = arith.mulf %154, %156 : vector<16x256xf32>
    %c1_i32_69 = arith.constant 1 : i32
    %158 = tpu.dynamic_rotate %145 by %c1_i32_69 dim 1 : vector<16x256xf32>, i32 -> vector<16x256xf32>
    %c11_70 = arith.constant 11 : index
    %c0_71 = arith.constant 0 : index
    %159 = vector.load %arg2[%c11_70, %c0_71] : memref<25x256xf32, #tpu.memory_space<vmem>>, vector<1x256xf32>
    %160 = vector.broadcast %159 : vector<1x256xf32> to vector<16x256xf32>
    %161 = arith.mulf %158, %160 : vector<16x256xf32>
    %c255_i32_72 = arith.constant 255 : i32
    %162 = tpu.dynamic_rotate %145 by %c255_i32_72 dim 1 : vector<16x256xf32>, i32 -> vector<16x256xf32>
    %c13_73 = arith.constant 13 : index
    %c0_74 = arith.constant 0 : index
    %163 = vector.load %arg2[%c13_73, %c0_74] : memref<25x256xf32, #tpu.memory_space<vmem>>, vector<1x256xf32>
    %164 = vector.broadcast %163 : vector<1x256xf32> to vector<16x256xf32>
    %165 = arith.mulf %162, %164 : vector<16x256xf32>
    %c241_i32_75 = arith.constant 241 : i32
    %166 = tpu.dynamic_rotate %145 by %c241_i32_75 dim 1 : vector<16x256xf32>, i32 -> vector<16x256xf32>
    %c16_76 = arith.constant 16 : index
    %c0_77 = arith.constant 0 : index
    %167 = vector.load %arg2[%c16_76, %c0_77] : memref<25x256xf32, #tpu.memory_space<vmem>>, vector<1x256xf32>
    %168 = vector.broadcast %167 : vector<1x256xf32> to vector<16x256xf32>
    %169 = arith.mulf %166, %168 : vector<16x256xf32>
    %c240_i32_78 = arith.constant 240 : i32
    %170 = tpu.dynamic_rotate %145 by %c240_i32_78 dim 1 : vector<16x256xf32>, i32 -> vector<16x256xf32>
    %c17_79 = arith.constant 17 : index
    %c0_80 = arith.constant 0 : index
    %171 = vector.load %arg2[%c17_79, %c0_80] : memref<25x256xf32, #tpu.memory_space<vmem>>, vector<1x256xf32>
    %172 = vector.broadcast %171 : vector<1x256xf32> to vector<16x256xf32>
    %173 = arith.mulf %170, %172 : vector<16x256xf32>
    %c239_i32_81 = arith.constant 239 : i32
    %174 = tpu.dynamic_rotate %145 by %c239_i32_81 dim 1 : vector<16x256xf32>, i32 -> vector<16x256xf32>
    %c18_82 = arith.constant 18 : index
    %c0_83 = arith.constant 0 : index
    %175 = vector.load %arg2[%c18_82, %c0_83] : memref<25x256xf32, #tpu.memory_space<vmem>>, vector<1x256xf32>
    %176 = vector.broadcast %175 : vector<1x256xf32> to vector<16x256xf32>
    %177 = arith.mulf %174, %176 : vector<16x256xf32>
    %178 = tpu.concatenate %149, %153, %157, %161, %145, %165, %169, %173, %177 in 0 : vector<16x256xf32>, vector<16x256xf32>, vector<16x256xf32>, vector<16x256xf32>, vector<16x256xf32>, vector<16x256xf32>, vector<16x256xf32>, vector<16x256xf32>, vector<16x256xf32> -> vector<144x256xf32>
    %c0_84 = arith.constant 0 : index
    %c0_85 = arith.constant 0 : index
    %179 = vector.load %arg7[%c0_84, %c0_85] : memref<24x144xf32, #tpu.memory_space<vmem>>, vector<24x144xf32>
    %cst_86 = arith.constant dense<0.000000e+00> : vector<24x256xf32>
    %180 = tpu.matmul %179, %178, %cst_86 {dimension_numbers = #tpu.dot_dimension_numbers<[1], [0], [0], [1], [0, 0, 1, 1], [], []>} : vector<24x144xf32>, vector<144x256xf32>, vector<24x256xf32> -> vector<24x256xf32>
    %c0_87 = arith.constant 0 : index
    %c0_88 = arith.constant 0 : index
    %181 = vector.load %arg8[%c0_87, %c0_88] : memref<24x1xf32, #tpu.memory_space<vmem>>, vector<24x1xf32>
    %182 = vector.broadcast %181 : vector<24x1xf32> to vector<24x256xf32>
    %183 = arith.addf %180, %182 : vector<24x256xf32>
    %c17_i32_89 = arith.constant 17 : i32
    %184 = tpu.dynamic_rotate %183 by %c17_i32_89 dim 1 : vector<24x256xf32>, i32 -> vector<24x256xf32>
    %c6_90 = arith.constant 6 : index
    %c0_91 = arith.constant 0 : index
    %185 = vector.load %arg2[%c6_90, %c0_91] : memref<25x256xf32, #tpu.memory_space<vmem>>, vector<1x256xf32>
    %186 = vector.broadcast %185 : vector<1x256xf32> to vector<24x256xf32>
    %187 = arith.mulf %184, %186 : vector<24x256xf32>
    %c16_i32_92 = arith.constant 16 : i32
    %188 = tpu.dynamic_rotate %183 by %c16_i32_92 dim 1 : vector<24x256xf32>, i32 -> vector<24x256xf32>
    %c7_93 = arith.constant 7 : index
    %c0_94 = arith.constant 0 : index
    %189 = vector.load %arg2[%c7_93, %c0_94] : memref<25x256xf32, #tpu.memory_space<vmem>>, vector<1x256xf32>
    %190 = vector.broadcast %189 : vector<1x256xf32> to vector<24x256xf32>
    %191 = arith.mulf %188, %190 : vector<24x256xf32>
    %c15_i32_95 = arith.constant 15 : i32
    %192 = tpu.dynamic_rotate %183 by %c15_i32_95 dim 1 : vector<24x256xf32>, i32 -> vector<24x256xf32>
    %c8_96 = arith.constant 8 : index
    %c0_97 = arith.constant 0 : index
    %193 = vector.load %arg2[%c8_96, %c0_97] : memref<25x256xf32, #tpu.memory_space<vmem>>, vector<1x256xf32>
    %194 = vector.broadcast %193 : vector<1x256xf32> to vector<24x256xf32>
    %195 = arith.mulf %192, %194 : vector<24x256xf32>
    %c1_i32_98 = arith.constant 1 : i32
    %196 = tpu.dynamic_rotate %183 by %c1_i32_98 dim 1 : vector<24x256xf32>, i32 -> vector<24x256xf32>
    %c11_99 = arith.constant 11 : index
    %c0_100 = arith.constant 0 : index
    %197 = vector.load %arg2[%c11_99, %c0_100] : memref<25x256xf32, #tpu.memory_space<vmem>>, vector<1x256xf32>
    %198 = vector.broadcast %197 : vector<1x256xf32> to vector<24x256xf32>
    %199 = arith.mulf %196, %198 : vector<24x256xf32>
    %c255_i32_101 = arith.constant 255 : i32
    %200 = tpu.dynamic_rotate %183 by %c255_i32_101 dim 1 : vector<24x256xf32>, i32 -> vector<24x256xf32>
    %c13_102 = arith.constant 13 : index
    %c0_103 = arith.constant 0 : index
    %201 = vector.load %arg2[%c13_102, %c0_103] : memref<25x256xf32, #tpu.memory_space<vmem>>, vector<1x256xf32>
    %202 = vector.broadcast %201 : vector<1x256xf32> to vector<24x256xf32>
    %203 = arith.mulf %200, %202 : vector<24x256xf32>
    %c241_i32_104 = arith.constant 241 : i32
    %204 = tpu.dynamic_rotate %183 by %c241_i32_104 dim 1 : vector<24x256xf32>, i32 -> vector<24x256xf32>
    %c16_105 = arith.constant 16 : index
    %c0_106 = arith.constant 0 : index
    %205 = vector.load %arg2[%c16_105, %c0_106] : memref<25x256xf32, #tpu.memory_space<vmem>>, vector<1x256xf32>
    %206 = vector.broadcast %205 : vector<1x256xf32> to vector<24x256xf32>
    %207 = arith.mulf %204, %206 : vector<24x256xf32>
    %c240_i32_107 = arith.constant 240 : i32
    %208 = tpu.dynamic_rotate %183 by %c240_i32_107 dim 1 : vector<24x256xf32>, i32 -> vector<24x256xf32>
    %c17_108 = arith.constant 17 : index
    %c0_109 = arith.constant 0 : index
    %209 = vector.load %arg2[%c17_108, %c0_109] : memref<25x256xf32, #tpu.memory_space<vmem>>, vector<1x256xf32>
    %210 = vector.broadcast %209 : vector<1x256xf32> to vector<24x256xf32>
    %211 = arith.mulf %208, %210 : vector<24x256xf32>
    %c239_i32_110 = arith.constant 239 : i32
    %212 = tpu.dynamic_rotate %183 by %c239_i32_110 dim 1 : vector<24x256xf32>, i32 -> vector<24x256xf32>
    %c18_111 = arith.constant 18 : index
    %c0_112 = arith.constant 0 : index
    %213 = vector.load %arg2[%c18_111, %c0_112] : memref<25x256xf32, #tpu.memory_space<vmem>>, vector<1x256xf32>
    %214 = vector.broadcast %213 : vector<1x256xf32> to vector<24x256xf32>
    %215 = arith.mulf %212, %214 : vector<24x256xf32>
    %216 = tpu.concatenate %187, %191, %195, %199, %183, %203, %207, %211, %215 in 0 : vector<24x256xf32>, vector<24x256xf32>, vector<24x256xf32>, vector<24x256xf32>, vector<24x256xf32>, vector<24x256xf32>, vector<24x256xf32>, vector<24x256xf32>, vector<24x256xf32> -> vector<216x256xf32>
    %c0_113 = arith.constant 0 : index
    %c0_114 = arith.constant 0 : index
    %217 = vector.load %arg9[%c0_113, %c0_114] : memref<24x216xf32, #tpu.memory_space<vmem>>, vector<24x216xf32>
    %cst_115 = arith.constant dense<0.000000e+00> : vector<24x256xf32>
    %218 = tpu.matmul %217, %216, %cst_115 {dimension_numbers = #tpu.dot_dimension_numbers<[1], [0], [0], [1], [0, 0, 1, 1], [], []>} : vector<24x216xf32>, vector<216x256xf32>, vector<24x256xf32> -> vector<24x256xf32>
    %c0_116 = arith.constant 0 : index
    %c0_117 = arith.constant 0 : index
    %219 = vector.load %arg10[%c0_116, %c0_117] : memref<24x1xf32, #tpu.memory_space<vmem>>, vector<24x1xf32>
    %220 = vector.broadcast %219 : vector<24x1xf32> to vector<24x256xf32>
    %221 = arith.addf %218, %220 : vector<24x256xf32>
    %222 = vector.extract_strided_slice %39 {offsets = [0, 0], sizes = [24, 256], strides = [1, 1]} : vector<72x256xf32> to vector<24x256xf32>
    %c0_118 = arith.constant 0 : index
    %c0_119 = arith.constant 0 : index
    %c0_120 = arith.constant 0 : index
    %223 = vector.load %arg11[%c0_118, %c0_119, %c0_120] : memref<2x88x256xf32, #tpu.memory_space<vmem>>, vector<1x24x256xf32>
    %224 = vector.shape_cast %223 : vector<1x24x256xf32> to vector<24x256xf32>
    %225 = vector.shape_cast %222 : vector<24x256xf32> to vector<1x24x256xf32>
    tpu.vector_store %arg11[%c0_118, %c0_119, %c0_120], %225 {strides = array<i32>} : memref<2x88x256xf32, #tpu.memory_space<vmem>>, vector<1x24x256xf32>,
    %226 = vector.extract_strided_slice %39 {offsets = [24, 0], sizes = [16, 256], strides = [1, 1]} : vector<72x256xf32> to vector<16x256xf32>
    %c0_121 = arith.constant 0 : index
    %c24_122 = arith.constant 24 : index
    %c0_123 = arith.constant 0 : index
    %227 = vector.load %arg11[%c0_121, %c24_122, %c0_123] : memref<2x88x256xf32, #tpu.memory_space<vmem>>, vector<1x16x256xf32>
    %228 = vector.shape_cast %227 : vector<1x16x256xf32> to vector<16x256xf32>
    %229 = vector.shape_cast %226 : vector<16x256xf32> to vector<1x16x256xf32>
    tpu.vector_store %arg11[%c0_121, %c24_122, %c0_123], %229 {strides = array<i32>} : memref<2x88x256xf32, #tpu.memory_space<vmem>>, vector<1x16x256xf32>,
    %c0_124 = arith.constant 0 : index
    %c40 = arith.constant 40 : index
    %c0_125 = arith.constant 0 : index
    %230 = vector.load %arg11[%c0_124, %c40, %c0_125] : memref<2x88x256xf32, #tpu.memory_space<vmem>>, vector<1x24x256xf32>
    %231 = vector.shape_cast %230 : vector<1x24x256xf32> to vector<24x256xf32>
    %232 = vector.shape_cast %144 : vector<24x256xf32> to vector<1x24x256xf32>
    tpu.vector_store %arg11[%c0_124, %c40, %c0_125], %232 {strides = array<i32>} : memref<2x88x256xf32, #tpu.memory_space<vmem>>, vector<1x24x256xf32>,
    %c0_126 = arith.constant 0 : index
    %c64 = arith.constant 64 : index
    %c0_127 = arith.constant 0 : index
    %233 = vector.load %arg11[%c0_126, %c64, %c0_127] : memref<2x88x256xf32, #tpu.memory_space<vmem>>, vector<1x24x256xf32>
    %234 = vector.shape_cast %233 : vector<1x24x256xf32> to vector<24x256xf32>
    %235 = vector.shape_cast %221 : vector<24x256xf32> to vector<1x24x256xf32>
    tpu.vector_store %arg11[%c0_126, %c64, %c0_127], %235 {strides = array<i32>} : memref<2x88x256xf32, #tpu.memory_space<vmem>>, vector<1x24x256xf32>,
    %c1_128 = arith.constant 1 : index
    %c0_129 = arith.constant 0 : index
    %c0_130 = arith.constant 0 : index
    %236 = vector.load %arg1[%c1_128, %c0_129, %c0_130] : memref<2x4x256xf32, #tpu.memory_space<vmem>>, vector<1x4x256xf32>
    %237 = vector.shape_cast %236 : vector<1x4x256xf32> to vector<4x256xf32>
    %c17_i32_131 = arith.constant 17 : i32
    %238 = tpu.dynamic_rotate %237 by %c17_i32_131 dim 1 : vector<4x256xf32>, i32 -> vector<4x256xf32>
    %c6_132 = arith.constant 6 : index
    %c0_133 = arith.constant 0 : index
    %239 = vector.load %arg2[%c6_132, %c0_133] : memref<25x256xf32, #tpu.memory_space<vmem>>, vector<1x256xf32>
    %240 = vector.broadcast %239 : vector<1x256xf32> to vector<4x256xf32>
    %241 = arith.mulf %238, %240 : vector<4x256xf32>
    %c16_i32_134 = arith.constant 16 : i32
    %242 = tpu.dynamic_rotate %237 by %c16_i32_134 dim 1 : vector<4x256xf32>, i32 -> vector<4x256xf32>
    %c7_135 = arith.constant 7 : index
    %c0_136 = arith.constant 0 : index
    %243 = vector.load %arg2[%c7_135, %c0_136] : memref<25x256xf32, #tpu.memory_space<vmem>>, vector<1x256xf32>
    %244 = vector.broadcast %243 : vector<1x256xf32> to vector<4x256xf32>
    %245 = arith.mulf %242, %244 : vector<4x256xf32>
    %c15_i32_137 = arith.constant 15 : i32
    %246 = tpu.dynamic_rotate %237 by %c15_i32_137 dim 1 : vector<4x256xf32>, i32 -> vector<4x256xf32>
    %c8_138 = arith.constant 8 : index
    %c0_139 = arith.constant 0 : index
    %247 = vector.load %arg2[%c8_138, %c0_139] : memref<25x256xf32, #tpu.memory_space<vmem>>, vector<1x256xf32>
    %248 = vector.broadcast %247 : vector<1x256xf32> to vector<4x256xf32>
    %249 = arith.mulf %246, %248 : vector<4x256xf32>
    %c1_i32_140 = arith.constant 1 : i32
    %250 = tpu.dynamic_rotate %237 by %c1_i32_140 dim 1 : vector<4x256xf32>, i32 -> vector<4x256xf32>
    %c11_141 = arith.constant 11 : index
    %c0_142 = arith.constant 0 : index
    %251 = vector.load %arg2[%c11_141, %c0_142] : memref<25x256xf32, #tpu.memory_space<vmem>>, vector<1x256xf32>
    %252 = vector.broadcast %251 : vector<1x256xf32> to vector<4x256xf32>
    %253 = arith.mulf %250, %252 : vector<4x256xf32>
    %c255_i32_143 = arith.constant 255 : i32
    %254 = tpu.dynamic_rotate %237 by %c255_i32_143 dim 1 : vector<4x256xf32>, i32 -> vector<4x256xf32>
    %c13_144 = arith.constant 13 : index
    %c0_145 = arith.constant 0 : index
    %255 = vector.load %arg2[%c13_144, %c0_145] : memref<25x256xf32, #tpu.memory_space<vmem>>, vector<1x256xf32>
    %256 = vector.broadcast %255 : vector<1x256xf32> to vector<4x256xf32>
    %257 = arith.mulf %254, %256 : vector<4x256xf32>
    %c241_i32_146 = arith.constant 241 : i32
    %258 = tpu.dynamic_rotate %237 by %c241_i32_146 dim 1 : vector<4x256xf32>, i32 -> vector<4x256xf32>
    %c16_147 = arith.constant 16 : index
    %c0_148 = arith.constant 0 : index
    %259 = vector.load %arg2[%c16_147, %c0_148] : memref<25x256xf32, #tpu.memory_space<vmem>>, vector<1x256xf32>
    %260 = vector.broadcast %259 : vector<1x256xf32> to vector<4x256xf32>
    %261 = arith.mulf %258, %260 : vector<4x256xf32>
    %c240_i32_149 = arith.constant 240 : i32
    %262 = tpu.dynamic_rotate %237 by %c240_i32_149 dim 1 : vector<4x256xf32>, i32 -> vector<4x256xf32>
    %c17_150 = arith.constant 17 : index
    %c0_151 = arith.constant 0 : index
    %263 = vector.load %arg2[%c17_150, %c0_151] : memref<25x256xf32, #tpu.memory_space<vmem>>, vector<1x256xf32>
    %264 = vector.broadcast %263 : vector<1x256xf32> to vector<4x256xf32>
    %265 = arith.mulf %262, %264 : vector<4x256xf32>
    %c239_i32_152 = arith.constant 239 : i32
    %266 = tpu.dynamic_rotate %237 by %c239_i32_152 dim 1 : vector<4x256xf32>, i32 -> vector<4x256xf32>
    %c18_153 = arith.constant 18 : index
    %c0_154 = arith.constant 0 : index
    %267 = vector.load %arg2[%c18_153, %c0_154] : memref<25x256xf32, #tpu.memory_space<vmem>>, vector<1x256xf32>
    %268 = vector.broadcast %267 : vector<1x256xf32> to vector<4x256xf32>
    %269 = arith.mulf %266, %268 : vector<4x256xf32>
    %270 = tpu.concatenate %241, %245, %249, %253, %237, %257, %261, %265, %269 in 0 : vector<4x256xf32>, vector<4x256xf32>, vector<4x256xf32>, vector<4x256xf32>, vector<4x256xf32>, vector<4x256xf32>, vector<4x256xf32>, vector<4x256xf32>, vector<4x256xf32> -> vector<36x256xf32>
    %c0_155 = arith.constant 0 : index
    %c0_156 = arith.constant 0 : index
    %271 = vector.load %arg3[%c0_155, %c0_156] : memref<72x36xf32, #tpu.memory_space<vmem>>, vector<72x36xf32>
    %cst_157 = arith.constant dense<0.000000e+00> : vector<72x256xf32>
    %272 = tpu.matmul %271, %270, %cst_157 {dimension_numbers = #tpu.dot_dimension_numbers<[1], [0], [0], [1], [0, 0, 1, 1], [], []>} : vector<72x36xf32>, vector<36x256xf32>, vector<72x256xf32> -> vector<72x256xf32>
    %c0_158 = arith.constant 0 : index
    %c0_159 = arith.constant 0 : index
    %273 = vector.load %arg4[%c0_158, %c0_159] : memref<72x1xf32, #tpu.memory_space<vmem>>, vector<72x1xf32>
    %274 = vector.broadcast %273 : vector<72x1xf32> to vector<72x256xf32>
    %275 = arith.addf %272, %274 : vector<72x256xf32>
    %276 = vector.extract_strided_slice %275 {offsets = [40, 0], sizes = [16, 256], strides = [1, 1]} : vector<72x256xf32> to vector<16x256xf32>
    %c34_i32_160 = arith.constant 34 : i32
    %277 = tpu.dynamic_rotate %276 by %c34_i32_160 dim 1 : vector<16x256xf32>, i32 -> vector<16x256xf32>
    %c0_161 = arith.constant 0 : index
    %c0_162 = arith.constant 0 : index
    %278 = vector.load %arg2[%c0_161, %c0_162] : memref<25x256xf32, #tpu.memory_space<vmem>>, vector<1x256xf32>
    %279 = vector.broadcast %278 : vector<1x256xf32> to vector<16x256xf32>
    %280 = arith.mulf %277, %279 : vector<16x256xf32>
    %c33_i32_163 = arith.constant 33 : i32
    %281 = tpu.dynamic_rotate %276 by %c33_i32_163 dim 1 : vector<16x256xf32>, i32 -> vector<16x256xf32>
    %c1_164 = arith.constant 1 : index
    %c0_165 = arith.constant 0 : index
    %282 = vector.load %arg2[%c1_164, %c0_165] : memref<25x256xf32, #tpu.memory_space<vmem>>, vector<1x256xf32>
    %283 = vector.broadcast %282 : vector<1x256xf32> to vector<16x256xf32>
    %284 = arith.mulf %281, %283 : vector<16x256xf32>
    %c32_i32_166 = arith.constant 32 : i32
    %285 = tpu.dynamic_rotate %276 by %c32_i32_166 dim 1 : vector<16x256xf32>, i32 -> vector<16x256xf32>
    %c2_167 = arith.constant 2 : index
    %c0_168 = arith.constant 0 : index
    %286 = vector.load %arg2[%c2_167, %c0_168] : memref<25x256xf32, #tpu.memory_space<vmem>>, vector<1x256xf32>
    %287 = vector.broadcast %286 : vector<1x256xf32> to vector<16x256xf32>
    %288 = arith.mulf %285, %287 : vector<16x256xf32>
    %c31_i32_169 = arith.constant 31 : i32
    %289 = tpu.dynamic_rotate %276 by %c31_i32_169 dim 1 : vector<16x256xf32>, i32 -> vector<16x256xf32>
    %c3_170 = arith.constant 3 : index
    %c0_171 = arith.constant 0 : index
    %290 = vector.load %arg2[%c3_170, %c0_171] : memref<25x256xf32, #tpu.memory_space<vmem>>, vector<1x256xf32>
    %291 = vector.broadcast %290 : vector<1x256xf32> to vector<16x256xf32>
    %292 = arith.mulf %289, %291 : vector<16x256xf32>
    %c30_i32_172 = arith.constant 30 : i32
    %293 = tpu.dynamic_rotate %276 by %c30_i32_172 dim 1 : vector<16x256xf32>, i32 -> vector<16x256xf32>
    %c4_173 = arith.constant 4 : index
    %c0_174 = arith.constant 0 : index
    %294 = vector.load %arg2[%c4_173, %c0_174] : memref<25x256xf32, #tpu.memory_space<vmem>>, vector<1x256xf32>
    %295 = vector.broadcast %294 : vector<1x256xf32> to vector<16x256xf32>
    %296 = arith.mulf %293, %295 : vector<16x256xf32>
    %c18_i32_175 = arith.constant 18 : i32
    %297 = tpu.dynamic_rotate %276 by %c18_i32_175 dim 1 : vector<16x256xf32>, i32 -> vector<16x256xf32>
    %c5_176 = arith.constant 5 : index
    %c0_177 = arith.constant 0 : index
    %298 = vector.load %arg2[%c5_176, %c0_177] : memref<25x256xf32, #tpu.memory_space<vmem>>, vector<1x256xf32>
    %299 = vector.broadcast %298 : vector<1x256xf32> to vector<16x256xf32>
    %300 = arith.mulf %297, %299 : vector<16x256xf32>
    %c17_i32_178 = arith.constant 17 : i32
    %301 = tpu.dynamic_rotate %276 by %c17_i32_178 dim 1 : vector<16x256xf32>, i32 -> vector<16x256xf32>
    %c6_179 = arith.constant 6 : index
    %c0_180 = arith.constant 0 : index
    %302 = vector.load %arg2[%c6_179, %c0_180] : memref<25x256xf32, #tpu.memory_space<vmem>>, vector<1x256xf32>
    %303 = vector.broadcast %302 : vector<1x256xf32> to vector<16x256xf32>
    %304 = arith.mulf %301, %303 : vector<16x256xf32>
    %c16_i32_181 = arith.constant 16 : i32
    %305 = tpu.dynamic_rotate %276 by %c16_i32_181 dim 1 : vector<16x256xf32>, i32 -> vector<16x256xf32>
    %c7_182 = arith.constant 7 : index
    %c0_183 = arith.constant 0 : index
    %306 = vector.load %arg2[%c7_182, %c0_183] : memref<25x256xf32, #tpu.memory_space<vmem>>, vector<1x256xf32>
    %307 = vector.broadcast %306 : vector<1x256xf32> to vector<16x256xf32>
    %308 = arith.mulf %305, %307 : vector<16x256xf32>
    %c15_i32_184 = arith.constant 15 : i32
    %309 = tpu.dynamic_rotate %276 by %c15_i32_184 dim 1 : vector<16x256xf32>, i32 -> vector<16x256xf32>
    %c8_185 = arith.constant 8 : index
    %c0_186 = arith.constant 0 : index
    %310 = vector.load %arg2[%c8_185, %c0_186] : memref<25x256xf32, #tpu.memory_space<vmem>>, vector<1x256xf32>
    %311 = vector.broadcast %310 : vector<1x256xf32> to vector<16x256xf32>
    %312 = arith.mulf %309, %311 : vector<16x256xf32>
    %c14_i32_187 = arith.constant 14 : i32
    %313 = tpu.dynamic_rotate %276 by %c14_i32_187 dim 1 : vector<16x256xf32>, i32 -> vector<16x256xf32>
    %c9_188 = arith.constant 9 : index
    %c0_189 = arith.constant 0 : index
    %314 = vector.load %arg2[%c9_188, %c0_189] : memref<25x256xf32, #tpu.memory_space<vmem>>, vector<1x256xf32>
    %315 = vector.broadcast %314 : vector<1x256xf32> to vector<16x256xf32>
    %316 = arith.mulf %313, %315 : vector<16x256xf32>
    %c2_i32_190 = arith.constant 2 : i32
    %317 = tpu.dynamic_rotate %276 by %c2_i32_190 dim 1 : vector<16x256xf32>, i32 -> vector<16x256xf32>
    %c10_191 = arith.constant 10 : index
    %c0_192 = arith.constant 0 : index
    %318 = vector.load %arg2[%c10_191, %c0_192] : memref<25x256xf32, #tpu.memory_space<vmem>>, vector<1x256xf32>
    %319 = vector.broadcast %318 : vector<1x256xf32> to vector<16x256xf32>
    %320 = arith.mulf %317, %319 : vector<16x256xf32>
    %c1_i32_193 = arith.constant 1 : i32
    %321 = tpu.dynamic_rotate %276 by %c1_i32_193 dim 1 : vector<16x256xf32>, i32 -> vector<16x256xf32>
    %c11_194 = arith.constant 11 : index
    %c0_195 = arith.constant 0 : index
    %322 = vector.load %arg2[%c11_194, %c0_195] : memref<25x256xf32, #tpu.memory_space<vmem>>, vector<1x256xf32>
    %323 = vector.broadcast %322 : vector<1x256xf32> to vector<16x256xf32>
    %324 = arith.mulf %321, %323 : vector<16x256xf32>
    %c255_i32_196 = arith.constant 255 : i32
    %325 = tpu.dynamic_rotate %276 by %c255_i32_196 dim 1 : vector<16x256xf32>, i32 -> vector<16x256xf32>
    %c13_197 = arith.constant 13 : index
    %c0_198 = arith.constant 0 : index
    %326 = vector.load %arg2[%c13_197, %c0_198] : memref<25x256xf32, #tpu.memory_space<vmem>>, vector<1x256xf32>
    %327 = vector.broadcast %326 : vector<1x256xf32> to vector<16x256xf32>
    %328 = arith.mulf %325, %327 : vector<16x256xf32>
    %c254_i32_199 = arith.constant 254 : i32
    %329 = tpu.dynamic_rotate %276 by %c254_i32_199 dim 1 : vector<16x256xf32>, i32 -> vector<16x256xf32>
    %c14_200 = arith.constant 14 : index
    %c0_201 = arith.constant 0 : index
    %330 = vector.load %arg2[%c14_200, %c0_201] : memref<25x256xf32, #tpu.memory_space<vmem>>, vector<1x256xf32>
    %331 = vector.broadcast %330 : vector<1x256xf32> to vector<16x256xf32>
    %332 = arith.mulf %329, %331 : vector<16x256xf32>
    %c242_i32_202 = arith.constant 242 : i32
    %333 = tpu.dynamic_rotate %276 by %c242_i32_202 dim 1 : vector<16x256xf32>, i32 -> vector<16x256xf32>
    %c15_203 = arith.constant 15 : index
    %c0_204 = arith.constant 0 : index
    %334 = vector.load %arg2[%c15_203, %c0_204] : memref<25x256xf32, #tpu.memory_space<vmem>>, vector<1x256xf32>
    %335 = vector.broadcast %334 : vector<1x256xf32> to vector<16x256xf32>
    %336 = arith.mulf %333, %335 : vector<16x256xf32>
    %c241_i32_205 = arith.constant 241 : i32
    %337 = tpu.dynamic_rotate %276 by %c241_i32_205 dim 1 : vector<16x256xf32>, i32 -> vector<16x256xf32>
    %c16_206 = arith.constant 16 : index
    %c0_207 = arith.constant 0 : index
    %338 = vector.load %arg2[%c16_206, %c0_207] : memref<25x256xf32, #tpu.memory_space<vmem>>, vector<1x256xf32>
    %339 = vector.broadcast %338 : vector<1x256xf32> to vector<16x256xf32>
    %340 = arith.mulf %337, %339 : vector<16x256xf32>
    %c240_i32_208 = arith.constant 240 : i32
    %341 = tpu.dynamic_rotate %276 by %c240_i32_208 dim 1 : vector<16x256xf32>, i32 -> vector<16x256xf32>
    %c17_209 = arith.constant 17 : index
    %c0_210 = arith.constant 0 : index
    %342 = vector.load %arg2[%c17_209, %c0_210] : memref<25x256xf32, #tpu.memory_space<vmem>>, vector<1x256xf32>
    %343 = vector.broadcast %342 : vector<1x256xf32> to vector<16x256xf32>
    %344 = arith.mulf %341, %343 : vector<16x256xf32>
    %c239_i32_211 = arith.constant 239 : i32
    %345 = tpu.dynamic_rotate %276 by %c239_i32_211 dim 1 : vector<16x256xf32>, i32 -> vector<16x256xf32>
    %c18_212 = arith.constant 18 : index
    %c0_213 = arith.constant 0 : index
    %346 = vector.load %arg2[%c18_212, %c0_213] : memref<25x256xf32, #tpu.memory_space<vmem>>, vector<1x256xf32>
    %347 = vector.broadcast %346 : vector<1x256xf32> to vector<16x256xf32>
    %348 = arith.mulf %345, %347 : vector<16x256xf32>
    %c238_i32_214 = arith.constant 238 : i32
    %349 = tpu.dynamic_rotate %276 by %c238_i32_214 dim 1 : vector<16x256xf32>, i32 -> vector<16x256xf32>
    %c19_215 = arith.constant 19 : index
    %c0_216 = arith.constant 0 : index
    %350 = vector.load %arg2[%c19_215, %c0_216] : memref<25x256xf32, #tpu.memory_space<vmem>>, vector<1x256xf32>
    %351 = vector.broadcast %350 : vector<1x256xf32> to vector<16x256xf32>
    %352 = arith.mulf %349, %351 : vector<16x256xf32>
    %c226_i32_217 = arith.constant 226 : i32
    %353 = tpu.dynamic_rotate %276 by %c226_i32_217 dim 1 : vector<16x256xf32>, i32 -> vector<16x256xf32>
    %c20_218 = arith.constant 20 : index
    %c0_219 = arith.constant 0 : index
    %354 = vector.load %arg2[%c20_218, %c0_219] : memref<25x256xf32, #tpu.memory_space<vmem>>, vector<1x256xf32>
    %355 = vector.broadcast %354 : vector<1x256xf32> to vector<16x256xf32>
    %356 = arith.mulf %353, %355 : vector<16x256xf32>
    %c225_i32_220 = arith.constant 225 : i32
    %357 = tpu.dynamic_rotate %276 by %c225_i32_220 dim 1 : vector<16x256xf32>, i32 -> vector<16x256xf32>
    %c21_221 = arith.constant 21 : index
    %c0_222 = arith.constant 0 : index
    %358 = vector.load %arg2[%c21_221, %c0_222] : memref<25x256xf32, #tpu.memory_space<vmem>>, vector<1x256xf32>
    %359 = vector.broadcast %358 : vector<1x256xf32> to vector<16x256xf32>
    %360 = arith.mulf %357, %359 : vector<16x256xf32>
    %c224_i32_223 = arith.constant 224 : i32
    %361 = tpu.dynamic_rotate %276 by %c224_i32_223 dim 1 : vector<16x256xf32>, i32 -> vector<16x256xf32>
    %c22_224 = arith.constant 22 : index
    %c0_225 = arith.constant 0 : index
    %362 = vector.load %arg2[%c22_224, %c0_225] : memref<25x256xf32, #tpu.memory_space<vmem>>, vector<1x256xf32>
    %363 = vector.broadcast %362 : vector<1x256xf32> to vector<16x256xf32>
    %364 = arith.mulf %361, %363 : vector<16x256xf32>
    %c223_i32_226 = arith.constant 223 : i32
    %365 = tpu.dynamic_rotate %276 by %c223_i32_226 dim 1 : vector<16x256xf32>, i32 -> vector<16x256xf32>
    %c23_227 = arith.constant 23 : index
    %c0_228 = arith.constant 0 : index
    %366 = vector.load %arg2[%c23_227, %c0_228] : memref<25x256xf32, #tpu.memory_space<vmem>>, vector<1x256xf32>
    %367 = vector.broadcast %366 : vector<1x256xf32> to vector<16x256xf32>
    %368 = arith.mulf %365, %367 : vector<16x256xf32>
    %c222_i32_229 = arith.constant 222 : i32
    %369 = tpu.dynamic_rotate %276 by %c222_i32_229 dim 1 : vector<16x256xf32>, i32 -> vector<16x256xf32>
    %c24_230 = arith.constant 24 : index
    %c0_231 = arith.constant 0 : index
    %370 = vector.load %arg2[%c24_230, %c0_231] : memref<25x256xf32, #tpu.memory_space<vmem>>, vector<1x256xf32>
    %371 = vector.broadcast %370 : vector<1x256xf32> to vector<16x256xf32>
    %372 = arith.mulf %369, %371 : vector<16x256xf32>
    %373 = tpu.concatenate %280, %284, %288, %292, %296, %300, %304, %308, %312, %316, %320, %324, %276, %328, %332, %336 in 0 : vector<16x256xf32>, vector<16x256xf32>, vector<16x256xf32>, vector<16x256xf32>, vector<16x256xf32>, vector<16x256xf32>, vector<16x256xf32>, vector<16x256xf32>, vector<16x256xf32>, vector<16x256xf32>, vector<16x256xf32>, vector<16x256xf32>, vector<16x256xf32>, vector<16x256xf32>, vector<16x256xf32>, vector<16x256xf32> -> vector<256x256xf32>
    %374 = tpu.concatenate %340, %344, %348, %352, %356, %360, %364, %368, %372 in 0 : vector<16x256xf32>, vector<16x256xf32>, vector<16x256xf32>, vector<16x256xf32>, vector<16x256xf32>, vector<16x256xf32>, vector<16x256xf32>, vector<16x256xf32>, vector<16x256xf32> -> vector<144x256xf32>
    %375 = tpu.concatenate %373, %374 in 0 : vector<256x256xf32>, vector<144x256xf32> -> vector<400x256xf32>
    %c0_232 = arith.constant 0 : index
    %c0_233 = arith.constant 0 : index
    %376 = vector.load %arg5[%c0_232, %c0_233] : memref<24x400xf32, #tpu.memory_space<vmem>>, vector<24x400xf32>
    %cst_234 = arith.constant dense<0.000000e+00> : vector<24x256xf32>
    %377 = tpu.matmul %376, %375, %cst_234 {dimension_numbers = #tpu.dot_dimension_numbers<[1], [0], [0], [1], [0, 0, 1, 1], [], []>} : vector<24x400xf32>, vector<400x256xf32>, vector<24x256xf32> -> vector<24x256xf32>
    %c0_235 = arith.constant 0 : index
    %c0_236 = arith.constant 0 : index
    %378 = vector.load %arg6[%c0_235, %c0_236] : memref<24x1xf32, #tpu.memory_space<vmem>>, vector<24x1xf32>
    %379 = vector.broadcast %378 : vector<24x1xf32> to vector<24x256xf32>
    %380 = arith.addf %377, %379 : vector<24x256xf32>
    %381 = vector.extract_strided_slice %275 {offsets = [56, 0], sizes = [16, 256], strides = [1, 1]} : vector<72x256xf32> to vector<16x256xf32>
    %c17_i32_237 = arith.constant 17 : i32
    %382 = tpu.dynamic_rotate %381 by %c17_i32_237 dim 1 : vector<16x256xf32>, i32 -> vector<16x256xf32>
    %c6_238 = arith.constant 6 : index
    %c0_239 = arith.constant 0 : index
    %383 = vector.load %arg2[%c6_238, %c0_239] : memref<25x256xf32, #tpu.memory_space<vmem>>, vector<1x256xf32>
    %384 = vector.broadcast %383 : vector<1x256xf32> to vector<16x256xf32>
    %385 = arith.mulf %382, %384 : vector<16x256xf32>
    %c16_i32_240 = arith.constant 16 : i32
    %386 = tpu.dynamic_rotate %381 by %c16_i32_240 dim 1 : vector<16x256xf32>, i32 -> vector<16x256xf32>
    %c7_241 = arith.constant 7 : index
    %c0_242 = arith.constant 0 : index
    %387 = vector.load %arg2[%c7_241, %c0_242] : memref<25x256xf32, #tpu.memory_space<vmem>>, vector<1x256xf32>
    %388 = vector.broadcast %387 : vector<1x256xf32> to vector<16x256xf32>
    %389 = arith.mulf %386, %388 : vector<16x256xf32>
    %c15_i32_243 = arith.constant 15 : i32
    %390 = tpu.dynamic_rotate %381 by %c15_i32_243 dim 1 : vector<16x256xf32>, i32 -> vector<16x256xf32>
    %c8_244 = arith.constant 8 : index
    %c0_245 = arith.constant 0 : index
    %391 = vector.load %arg2[%c8_244, %c0_245] : memref<25x256xf32, #tpu.memory_space<vmem>>, vector<1x256xf32>
    %392 = vector.broadcast %391 : vector<1x256xf32> to vector<16x256xf32>
    %393 = arith.mulf %390, %392 : vector<16x256xf32>
    %c1_i32_246 = arith.constant 1 : i32
    %394 = tpu.dynamic_rotate %381 by %c1_i32_246 dim 1 : vector<16x256xf32>, i32 -> vector<16x256xf32>
    %c11_247 = arith.constant 11 : index
    %c0_248 = arith.constant 0 : index
    %395 = vector.load %arg2[%c11_247, %c0_248] : memref<25x256xf32, #tpu.memory_space<vmem>>, vector<1x256xf32>
    %396 = vector.broadcast %395 : vector<1x256xf32> to vector<16x256xf32>
    %397 = arith.mulf %394, %396 : vector<16x256xf32>
    %c255_i32_249 = arith.constant 255 : i32
    %398 = tpu.dynamic_rotate %381 by %c255_i32_249 dim 1 : vector<16x256xf32>, i32 -> vector<16x256xf32>
    %c13_250 = arith.constant 13 : index
    %c0_251 = arith.constant 0 : index
    %399 = vector.load %arg2[%c13_250, %c0_251] : memref<25x256xf32, #tpu.memory_space<vmem>>, vector<1x256xf32>
    %400 = vector.broadcast %399 : vector<1x256xf32> to vector<16x256xf32>
    %401 = arith.mulf %398, %400 : vector<16x256xf32>
    %c241_i32_252 = arith.constant 241 : i32
    %402 = tpu.dynamic_rotate %381 by %c241_i32_252 dim 1 : vector<16x256xf32>, i32 -> vector<16x256xf32>
    %c16_253 = arith.constant 16 : index
    %c0_254 = arith.constant 0 : index
    %403 = vector.load %arg2[%c16_253, %c0_254] : memref<25x256xf32, #tpu.memory_space<vmem>>, vector<1x256xf32>
    %404 = vector.broadcast %403 : vector<1x256xf32> to vector<16x256xf32>
    %405 = arith.mulf %402, %404 : vector<16x256xf32>
    %c240_i32_255 = arith.constant 240 : i32
    %406 = tpu.dynamic_rotate %381 by %c240_i32_255 dim 1 : vector<16x256xf32>, i32 -> vector<16x256xf32>
    %c17_256 = arith.constant 17 : index
    %c0_257 = arith.constant 0 : index
    %407 = vector.load %arg2[%c17_256, %c0_257] : memref<25x256xf32, #tpu.memory_space<vmem>>, vector<1x256xf32>
    %408 = vector.broadcast %407 : vector<1x256xf32> to vector<16x256xf32>
    %409 = arith.mulf %406, %408 : vector<16x256xf32>
    %c239_i32_258 = arith.constant 239 : i32
    %410 = tpu.dynamic_rotate %381 by %c239_i32_258 dim 1 : vector<16x256xf32>, i32 -> vector<16x256xf32>
    %c18_259 = arith.constant 18 : index
    %c0_260 = arith.constant 0 : index
    %411 = vector.load %arg2[%c18_259, %c0_260] : memref<25x256xf32, #tpu.memory_space<vmem>>, vector<1x256xf32>
    %412 = vector.broadcast %411 : vector<1x256xf32> to vector<16x256xf32>
    %413 = arith.mulf %410, %412 : vector<16x256xf32>
    %414 = tpu.concatenate %385, %389, %393, %397, %381, %401, %405, %409, %413 in 0 : vector<16x256xf32>, vector<16x256xf32>, vector<16x256xf32>, vector<16x256xf32>, vector<16x256xf32>, vector<16x256xf32>, vector<16x256xf32>, vector<16x256xf32>, vector<16x256xf32> -> vector<144x256xf32>
    %c0_261 = arith.constant 0 : index
    %c0_262 = arith.constant 0 : index
    %415 = vector.load %arg7[%c0_261, %c0_262] : memref<24x144xf32, #tpu.memory_space<vmem>>, vector<24x144xf32>
    %cst_263 = arith.constant dense<0.000000e+00> : vector<24x256xf32>
    %416 = tpu.matmul %415, %414, %cst_263 {dimension_numbers = #tpu.dot_dimension_numbers<[1], [0], [0], [1], [0, 0, 1, 1], [], []>} : vector<24x144xf32>, vector<144x256xf32>, vector<24x256xf32> -> vector<24x256xf32>
    %c0_264 = arith.constant 0 : index
    %c0_265 = arith.constant 0 : index
    %417 = vector.load %arg8[%c0_264, %c0_265] : memref<24x1xf32, #tpu.memory_space<vmem>>, vector<24x1xf32>
    %418 = vector.broadcast %417 : vector<24x1xf32> to vector<24x256xf32>
    %419 = arith.addf %416, %418 : vector<24x256xf32>
    %c17_i32_266 = arith.constant 17 : i32
    %420 = tpu.dynamic_rotate %419 by %c17_i32_266 dim 1 : vector<24x256xf32>, i32 -> vector<24x256xf32>
    %c6_267 = arith.constant 6 : index
    %c0_268 = arith.constant 0 : index
    %421 = vector.load %arg2[%c6_267, %c0_268] : memref<25x256xf32, #tpu.memory_space<vmem>>, vector<1x256xf32>
    %422 = vector.broadcast %421 : vector<1x256xf32> to vector<24x256xf32>
    %423 = arith.mulf %420, %422 : vector<24x256xf32>
    %c16_i32_269 = arith.constant 16 : i32
    %424 = tpu.dynamic_rotate %419 by %c16_i32_269 dim 1 : vector<24x256xf32>, i32 -> vector<24x256xf32>
    %c7_270 = arith.constant 7 : index
    %c0_271 = arith.constant 0 : index
    %425 = vector.load %arg2[%c7_270, %c0_271] : memref<25x256xf32, #tpu.memory_space<vmem>>, vector<1x256xf32>
    %426 = vector.broadcast %425 : vector<1x256xf32> to vector<24x256xf32>
    %427 = arith.mulf %424, %426 : vector<24x256xf32>
    %c15_i32_272 = arith.constant 15 : i32
    %428 = tpu.dynamic_rotate %419 by %c15_i32_272 dim 1 : vector<24x256xf32>, i32 -> vector<24x256xf32>
    %c8_273 = arith.constant 8 : index
    %c0_274 = arith.constant 0 : index
    %429 = vector.load %arg2[%c8_273, %c0_274] : memref<25x256xf32, #tpu.memory_space<vmem>>, vector<1x256xf32>
    %430 = vector.broadcast %429 : vector<1x256xf32> to vector<24x256xf32>
    %431 = arith.mulf %428, %430 : vector<24x256xf32>
    %c1_i32_275 = arith.constant 1 : i32
    %432 = tpu.dynamic_rotate %419 by %c1_i32_275 dim 1 : vector<24x256xf32>, i32 -> vector<24x256xf32>
    %c11_276 = arith.constant 11 : index
    %c0_277 = arith.constant 0 : index
    %433 = vector.load %arg2[%c11_276, %c0_277] : memref<25x256xf32, #tpu.memory_space<vmem>>, vector<1x256xf32>
    %434 = vector.broadcast %433 : vector<1x256xf32> to vector<24x256xf32>
    %435 = arith.mulf %432, %434 : vector<24x256xf32>
    %c255_i32_278 = arith.constant 255 : i32
    %436 = tpu.dynamic_rotate %419 by %c255_i32_278 dim 1 : vector<24x256xf32>, i32 -> vector<24x256xf32>
    %c13_279 = arith.constant 13 : index
    %c0_280 = arith.constant 0 : index
    %437 = vector.load %arg2[%c13_279, %c0_280] : memref<25x256xf32, #tpu.memory_space<vmem>>, vector<1x256xf32>
    %438 = vector.broadcast %437 : vector<1x256xf32> to vector<24x256xf32>
    %439 = arith.mulf %436, %438 : vector<24x256xf32>
    %c241_i32_281 = arith.constant 241 : i32
    %440 = tpu.dynamic_rotate %419 by %c241_i32_281 dim 1 : vector<24x256xf32>, i32 -> vector<24x256xf32>
    %c16_282 = arith.constant 16 : index
    %c0_283 = arith.constant 0 : index
    %441 = vector.load %arg2[%c16_282, %c0_283] : memref<25x256xf32, #tpu.memory_space<vmem>>, vector<1x256xf32>
    %442 = vector.broadcast %441 : vector<1x256xf32> to vector<24x256xf32>
    %443 = arith.mulf %440, %442 : vector<24x256xf32>
    %c240_i32_284 = arith.constant 240 : i32
    %444 = tpu.dynamic_rotate %419 by %c240_i32_284 dim 1 : vector<24x256xf32>, i32 -> vector<24x256xf32>
    %c17_285 = arith.constant 17 : index
    %c0_286 = arith.constant 0 : index
    %445 = vector.load %arg2[%c17_285, %c0_286] : memref<25x256xf32, #tpu.memory_space<vmem>>, vector<1x256xf32>
    %446 = vector.broadcast %445 : vector<1x256xf32> to vector<24x256xf32>
    %447 = arith.mulf %444, %446 : vector<24x256xf32>
    %c239_i32_287 = arith.constant 239 : i32
    %448 = tpu.dynamic_rotate %419 by %c239_i32_287 dim 1 : vector<24x256xf32>, i32 -> vector<24x256xf32>
    %c18_288 = arith.constant 18 : index
    %c0_289 = arith.constant 0 : index
    %449 = vector.load %arg2[%c18_288, %c0_289] : memref<25x256xf32, #tpu.memory_space<vmem>>, vector<1x256xf32>
    %450 = vector.broadcast %449 : vector<1x256xf32> to vector<24x256xf32>
    %451 = arith.mulf %448, %450 : vector<24x256xf32>
    %452 = tpu.concatenate %423, %427, %431, %435, %419, %439, %443, %447, %451 in 0 : vector<24x256xf32>, vector<24x256xf32>, vector<24x256xf32>, vector<24x256xf32>, vector<24x256xf32>, vector<24x256xf32>, vector<24x256xf32>, vector<24x256xf32>, vector<24x256xf32> -> vector<216x256xf32>
    %c0_290 = arith.constant 0 : index
    %c0_291 = arith.constant 0 : index
    %453 = vector.load %arg9[%c0_290, %c0_291] : memref<24x216xf32, #tpu.memory_space<vmem>>, vector<24x216xf32>
    %cst_292 = arith.constant dense<0.000000e+00> : vector<24x256xf32>
    %454 = tpu.matmul %453, %452, %cst_292 {dimension_numbers = #tpu.dot_dimension_numbers<[1], [0], [0], [1], [0, 0, 1, 1], [], []>} : vector<24x216xf32>, vector<216x256xf32>, vector<24x256xf32> -> vector<24x256xf32>
    %c0_293 = arith.constant 0 : index
    %c0_294 = arith.constant 0 : index
    %455 = vector.load %arg10[%c0_293, %c0_294] : memref<24x1xf32, #tpu.memory_space<vmem>>, vector<24x1xf32>
    %456 = vector.broadcast %455 : vector<24x1xf32> to vector<24x256xf32>
    %457 = arith.addf %454, %456 : vector<24x256xf32>
    %458 = vector.extract_strided_slice %275 {offsets = [0, 0], sizes = [24, 256], strides = [1, 1]} : vector<72x256xf32> to vector<24x256xf32>
    %c1_295 = arith.constant 1 : index
    %c0_296 = arith.constant 0 : index
    %c0_297 = arith.constant 0 : index
    %459 = vector.load %arg11[%c1_295, %c0_296, %c0_297] : memref<2x88x256xf32, #tpu.memory_space<vmem>>, vector<1x24x256xf32>
    %460 = vector.shape_cast %459 : vector<1x24x256xf32> to vector<24x256xf32>
    %461 = vector.shape_cast %458 : vector<24x256xf32> to vector<1x24x256xf32>
    tpu.vector_store %arg11[%c1_295, %c0_296, %c0_297], %461 {strides = array<i32>} : memref<2x88x256xf32, #tpu.memory_space<vmem>>, vector<1x24x256xf32>,
    %462 = vector.extract_strided_slice %275 {offsets = [24, 0], sizes = [16, 256], strides = [1, 1]} : vector<72x256xf32> to vector<16x256xf32>
    %c1_298 = arith.constant 1 : index
    %c24_299 = arith.constant 24 : index
    %c0_300 = arith.constant 0 : index
    %463 = vector.load %arg11[%c1_298, %c24_299, %c0_300] : memref<2x88x256xf32, #tpu.memory_space<vmem>>, vector<1x16x256xf32>
    %464 = vector.shape_cast %463 : vector<1x16x256xf32> to vector<16x256xf32>
    %465 = vector.shape_cast %462 : vector<16x256xf32> to vector<1x16x256xf32>
    tpu.vector_store %arg11[%c1_298, %c24_299, %c0_300], %465 {strides = array<i32>} : memref<2x88x256xf32, #tpu.memory_space<vmem>>, vector<1x16x256xf32>,
    %c1_301 = arith.constant 1 : index
    %c40_302 = arith.constant 40 : index
    %c0_303 = arith.constant 0 : index
    %466 = vector.load %arg11[%c1_301, %c40_302, %c0_303] : memref<2x88x256xf32, #tpu.memory_space<vmem>>, vector<1x24x256xf32>
    %467 = vector.shape_cast %466 : vector<1x24x256xf32> to vector<24x256xf32>
    %468 = vector.shape_cast %380 : vector<24x256xf32> to vector<1x24x256xf32>
    tpu.vector_store %arg11[%c1_301, %c40_302, %c0_303], %468 {strides = array<i32>} : memref<2x88x256xf32, #tpu.memory_space<vmem>>, vector<1x24x256xf32>,
    %c1_304 = arith.constant 1 : index
    %c64_305 = arith.constant 64 : index
    %c0_306 = arith.constant 0 : index
    %469 = vector.load %arg11[%c1_304, %c64_305, %c0_306] : memref<2x88x256xf32, #tpu.memory_space<vmem>>, vector<1x24x256xf32>
    %470 = vector.shape_cast %469 : vector<1x24x256xf32> to vector<24x256xf32>
    %471 = vector.shape_cast %457 : vector<24x256xf32> to vector<1x24x256xf32>
    tpu.vector_store %arg11[%c1_304, %c64_305, %c0_306], %471 {strides = array<i32>} : memref<2x88x256xf32, #tpu.memory_space<vmem>>, vector<1x24x256xf32>,
    return
  }
  func.func @transform_0(%arg0: i32) -> (i32, i32, i32) {
    %c0_i32 = arith.constant 0 : i32
    %c0_i32_0 = arith.constant 0 : i32
    %c0_i32_1 = arith.constant 0 : i32
    return %arg0, %c0_i32, %c0_i32_0 : i32, i32, i32
  }
  func.func @transform_1(%arg0: i32) -> (i32, i32) {
    %c0_i32 = arith.constant 0 : i32
    %c0_i32_0 = arith.constant 0 : i32
    %c0_i32_1 = arith.constant 0 : i32
    return %c0_i32, %c0_i32_0 : i32, i32
  }
  func.func @transform_2(%arg0: i32) -> (i32, i32) {
    %c0_i32 = arith.constant 0 : i32
    %c0_i32_0 = arith.constant 0 : i32
    %c0_i32_1 = arith.constant 0 : i32
    return %c0_i32, %c0_i32_0 : i32, i32
  }
  func.func @transform_3(%arg0: i32) -> (i32, i32) {
    %c0_i32 = arith.constant 0 : i32
    %c0_i32_0 = arith.constant 0 : i32
    %c0_i32_1 = arith.constant 0 : i32
    return %c0_i32, %c0_i32_0 : i32, i32
  }
  func.func @transform_4(%arg0: i32) -> (i32, i32) {
    %c0_i32 = arith.constant 0 : i32
    %c0_i32_0 = arith.constant 0 : i32
    %c0_i32_1 = arith.constant 0 : i32
    return %c0_i32, %c0_i32_0 : i32, i32
  }
  func.func @transform_5(%arg0: i32) -> (i32, i32) {
    %c0_i32 = arith.constant 0 : i32
    %c0_i32_0 = arith.constant 0 : i32
    %c0_i32_1 = arith.constant 0 : i32
    return %c0_i32, %c0_i32_0 : i32, i32
  }
  func.func @transform_6(%arg0: i32) -> (i32, i32) {
    %c0_i32 = arith.constant 0 : i32
    %c0_i32_0 = arith.constant 0 : i32
    %c0_i32_1 = arith.constant 0 : i32
    return %c0_i32, %c0_i32_0 : i32, i32
  }
  func.func @transform_7(%arg0: i32) -> (i32, i32) {
    %c0_i32 = arith.constant 0 : i32
    %c0_i32_0 = arith.constant 0 : i32
    %c0_i32_1 = arith.constant 0 : i32
    return %c0_i32, %c0_i32_0 : i32, i32
  }
  func.func @transform_8(%arg0: i32) -> (i32, i32) {
    %c0_i32 = arith.constant 0 : i32
    %c0_i32_0 = arith.constant 0 : i32
    %c0_i32_1 = arith.constant 0 : i32
    return %c0_i32, %c0_i32_0 : i32, i32
  }
  func.func @transform_9(%arg0: i32) -> (i32, i32) {
    %c0_i32 = arith.constant 0 : i32
    %c0_i32_0 = arith.constant 0 : i32
    %c0_i32_1 = arith.constant 0 : i32
    return %c0_i32, %c0_i32_0 : i32, i32
  }
  func.func @transform_10(%arg0: i32) -> (i32, i32, i32) {
    %c0_i32 = arith.constant 0 : i32
    %c0_i32_0 = arith.constant 0 : i32
    %c0_i32_1 = arith.constant 0 : i32
    return %arg0, %c0_i32, %c0_i32_0 : i32, i32, i32
  }
}

</mosaic_0001>

<llo_original>
// kernel: tile.18
$region0: #{tile.18}
  #allocation0 [shape = 's32[1]{0}', space=sflag, size = 0x4, scoped, tag = 'scoped memory for tile.18']
  %s0 = inlined_call_operand.vmem [shape: s32[5], index: 0, kind: input, shape index: {}]
  %s1 = inlined_call_operand.vmem [shape: s32[5,5], index: 1, kind: output, shape index: {}]
  // Predicated region
  $region2: #{tile.18} parent=0 // pred_check
    _
  $region3: #{tile.18} parent=0 // pred_check_branch
    %3 = sbr.rel (0) target = $region5
  $region4: #{tile.18} parent=0 // pred_region
    _
  $region5: #{tile.18} parent=0 // pred_fallthru
    _
  %v4 = vld [vmem:[%s0] ss:$0 sm:$0xff]
  %5 = vst [vmem:[%s1] sm:$0xff] %v4

// kernel: inception_a.1
$region0: #{inception_a.1}
  #allocation0 [shape = 'u32[]', space=smem, size = 0x4, offset = 0x4, fixed_abs, tag = 'smem constant byte address 0x4 - core index']
  #allocation1 [shape = 'u32[72,128]{1,0:T(1,128)}', space=vmem, size = 0x9000, scoped, tag = 'internal scratch']
  %s0 = inlined_call_operand.vmem [shape: f32[2,4,256], index: 0, kind: input, shape index: {}]
  %s1 = inlined_call_operand.vmem [shape: f32[25,256], index: 1, kind: input, shape index: {}]
  %s2 = inlined_call_operand.vmem [shape: f32[72,36], index: 2, kind: input, shape index: {}]
  %s3 = inlined_call_operand.vmem [shape: f32[72,1], index: 3, kind: input, shape index: {}]
  %s4 = inlined_call_operand.vmem [shape: f32[24,400], index: 4, kind: input, shape index: {}]
  %s5 = inlined_call_operand.vmem [shape: f32[24,1], index: 5, kind: input, shape index: {}]
  %s6 = inlined_call_operand.vmem [shape: f32[24,144], index: 6, kind: input, shape index: {}]
  %s7 = inlined_call_operand.vmem [shape: f32[24,1], index: 7, kind: input, shape index: {}]
  %s8 = inlined_call_operand.vmem [shape: f32[24,216], index: 8, kind: input, shape index: {}]
  %s9 = inlined_call_operand.vmem [shape: f32[24,1], index: 9, kind: input, shape index: {}]
  %s10 = inlined_call_operand.vmem [shape: f32[2,88,256], index: 10, kind: output, shape index: {}]
  %s11 = sld [smem:[#allocation0]]
  $region50: #{inception_a.1} parent=0
    _
  %s13 = ssub.s32 1, %s11
  %s14 = scalar_select 0, %s13, %s11
  // Predicated region
  $region2: #{inception_a.1} parent=0 // pred_check
    _
  $region3: #{inception_a.1} parent=0 // pred_check_branch
    %16 = sbr.rel (0) target = $region5
  $region4: #{inception_a.1} parent=0 // pred_region
    _
  $region5: #{inception_a.1} parent=0 // pred_fallthru
    _
  // Predicated region
  $region6: #{inception_a.1} parent=0 // pred_check
    _
  $region7: #{inception_a.1} parent=0 // pred_check_branch
    %18 = sbr.rel (0) target = $region9
  $region8: #{inception_a.1} parent=0 // pred_region
    _
  $region9: #{inception_a.1} parent=0 // pred_fallthru
    _
  // Predicated region
  $region10: #{inception_a.1} parent=0 // pred_check
    _
  $region11: #{inception_a.1} parent=0 // pred_check_branch
    %20 = sbr.rel (0) target = $region13
  $region12: #{inception_a.1} parent=0 // pred_region
    _
  $region13: #{inception_a.1} parent=0 // pred_fallthru
    _
  // Predicated region
  $region14: #{inception_a.1} parent=0 // pred_check
    _
  $region15: #{inception_a.1} parent=0 // pred_check_branch
    %22 = sbr.rel (0) target = $region17
  $region16: #{inception_a.1} parent=0 // pred_region
    _
  $region17: #{inception_a.1} parent=0 // pred_fallthru
    _
  // Predicated region
  $region18: #{inception_a.1} parent=0 // pred_check
    _
  $region19: #{inception_a.1} parent=0 // pred_check_branch
    %24 = sbr.rel (0) target = $region21
  $region20: #{inception_a.1} parent=0 // pred_region
    _
  $region21: #{inception_a.1} parent=0 // pred_fallthru
    _
  // Predicated region
  $region22: #{inception_a.1} parent=0 // pred_check
    _
  $region23: #{inception_a.1} parent=0 // pred_check_branch
    %26 = sbr.rel (0) target = $region25
  $region24: #{inception_a.1} parent=0 // pred_region
    _
  $region25: #{inception_a.1} parent=0 // pred_fallthru
    _
  // Predicated region
  $region26: #{inception_a.1} parent=0 // pred_check
    _
  $region27: #{inception_a.1} parent=0 // pred_check_branch
    %28 = sbr.rel (0) target = $region29
  $region28: #{inception_a.1} parent=0 // pred_region
    _
  $region29: #{inception_a.1} parent=0 // pred_fallthru
    _
  // Predicated region
  $region30: #{inception_a.1} parent=0 // pred_check
    _
  $region31: #{inception_a.1} parent=0 // pred_check_branch
    %30 = sbr.rel (0) target = $region33
  $region32: #{inception_a.1} parent=0 // pred_region
    _
  $region33: #{inception_a.1} parent=0 // pred_fallthru
    _
  // Predicated region
  $region34: #{inception_a.1} parent=0 // pred_check
    _
  $region35: #{inception_a.1} parent=0 // pred_check_branch
    %32 = sbr.rel (0) target = $region37
  $region36: #{inception_a.1} parent=0 // pred_region
    _
  $region37: #{inception_a.1} parent=0 // pred_fallthru
    _
  // Predicated region
  $region38: #{inception_a.1} parent=0 // pred_check
    _
  $region39: #{inception_a.1} parent=0 // pred_check_branch
    %34 = sbr.rel (0) target = $region41
  $region40: #{inception_a.1} parent=0 // pred_region
    _
  $region41: #{inception_a.1} parent=0 // pred_fallthru
    _
  %v35 = vld [vmem:[%s0] sm:$0xff]
  %37 = vst [vmem:[#allocation1] ss:$2 sm:$0xff] %v35
  %v38 = vld.sshfl [vmem:[#allocation1] sm:$0xff pattern:$0x75316420]
  %v39 = vld.sshfl [vmem:[#allocation1 + $0x8] sm:$0xff pattern:$0x75316420]
  %42 = vrot.lane.b32.xlu0 %v38, 17
  %v43 = vpop.permute.xlu0 %42
  %44 = vrot.lane.b32.xlu0 %v39, 17
  %v45 = vpop.permute.xlu0 %44
  %v46 = vlaneseq
  %v47 = vand.u32 %v46, 127
  %vm48 = vcmp.lt.s32.totalorder %v47, 17
  %v49 = vsel %vm48, %v43, %v45
  %v50 = vsel %vm48, %v45, %v43
  %s51 = scalar_lea.vmem %s1, 6
  %v52 = vld [vmem:[%s51] ss:$8 sm:$0x3]
  %v54 = vperm.slane %v52, 0
  %v55 = vperm.slane %v52, 1
  %v58 = vmul.f32 %v50, %v54
  %v59 = vmul.f32 %v49, %v55
  %60 = vst [vmem:[#allocation1] ss:$2 sm:$0xff] %v35
  %v61 = vld.sshfl [vmem:[#allocation1] sm:$0xff pattern:$0x75316420]
  %v62 = vld.sshfl [vmem:[#allocation1 + $0x8] sm:$0xff pattern:$0x75316420]
  %65 = vrot.lane.b32.xlu0 %v61, 16
  %v66 = vpop.permute.xlu0 %65
  %67 = vrot.lane.b32.xlu0 %v62, 16
  %v68 = vpop.permute.xlu0 %67
  %vm69 = vcmp.lt.s32.totalorder %v47, 16
  %v70 = vsel %vm69, %v66, %v68
  %v71 = vsel %vm69, %v68, %v66
  %s72 = scalar_lea.vmem %s1, 7
  %v73 = vld [vmem:[%s72] ss:$8 sm:$0x3]
  %v75 = vperm.slane %v73, 0
  %v76 = vperm.slane %v73, 1
  %v79 = vmul.f32 %v71, %v75
  %v80 = vmul.f32 %v70, %v76
  %81 = vst [vmem:[#allocation1] ss:$2 sm:$0xff] %v35
  %v82 = vld.sshfl [vmem:[#allocation1] sm:$0xff pattern:$0x75316420]
  %v83 = vld.sshfl [vmem:[#allocation1 + $0x8] sm:$0xff pattern:$0x75316420]
  %86 = vrot.lane.b32.xlu0 %v82, 15
  %v87 = vpop.permute.xlu0 %86
  %88 = vrot.lane.b32.xlu0 %v83, 15
  %v89 = vpop.permute.xlu0 %88
  %vm90 = vcmp.lt.s32.totalorder %v47, 15
  %v91 = vsel %vm90, %v87, %v89
  %v92 = vsel %vm90, %v89, %v87
  %s93 = scalar_lea.vmem %s1, 16
  %v94 = vld [vmem:[%s93] ss:$8 sm:$0x3]
  %v96 = vperm.slane %v94, 0
  %v97 = vperm.slane %v94, 1
  %v100 = vmul.f32 %v92, %v96
  %v101 = vmul.f32 %v91, %v97
  %102 = vst [vmem:[#allocation1] ss:$2 sm:$0xff] %v35
  %v103 = vld.sshfl [vmem:[#allocation1] sm:$0xff pattern:$0x75316420]
  %v104 = vld.sshfl [vmem:[#allocation1 + $0x8] sm:$0xff pattern:$0x75316420]
  %107 = vrot.lane.b32.xlu0 %v103, 1
  %v108 = vpop.permute.xlu0 %107
  %109 = vrot.lane.b32.xlu0 %v104, 1
  %v110 = vpop.permute.xlu0 %109
  %vm111 = vcmp.lt.s32.totalorder %v47, 1
  %v112 = vsel %vm111, %v108, %v110
  %v113 = vsel %vm111, %v110, %v108
  %s114 = scalar_lea.vmem %s1, 19
  %v115 = vld [vmem:[%s114] ss:$8 sm:$0x3]
  %v117 = vperm.slane %v115, 0
  %v118 = vperm.slane %v115, 1
  %v121 = vmul.f32 %v113, %v117
  %v122 = vmul.f32 %v112, %v118
  %123 = vst [vmem:[#allocation1] ss:$2 sm:$0xff] %v35
  %v124 = vld.sshfl [vmem:[#allocation1] sm:$0xff pattern:$0x75316420]
  %v125 = vld.sshfl [vmem:[#allocation1 + $0x8] sm:$0xff pattern:$0x75316420]
  %128 = vrot.lane.b32.xlu0 %v124, 127
  %v129 = vpop.permute.xlu0 %128
  %130 = vrot.lane.b32.xlu0 %v125, 127
  %v131 = vpop.permute.xlu0 %130
  %vm132 = vcmp.lt.s32.totalorder %v47, 127
  %v133 = vsel %vm132, %v129, %v131
  %v134 = vsel %vm132, %v131, %v129
  %s135 = scalar_lea.vmem %s1, 21
  %v136 = vld [vmem:[%s135] ss:$8 sm:$0x3]
  %v138 = vperm.slane %v136, 0
  %v139 = vperm.slane %v136, 1
  %v142 = vmul.f32 %v133, %v138
  %v143 = vmul.f32 %v134, %v139
  %144 = vst [vmem:[#allocation1] ss:$2 sm:$0xff] %v35
  %v145 = vld.sshfl [vmem:[#allocation1] sm:$0xff pattern:$0x75316420]
  %v146 = vld.sshfl [vmem:[#allocation1 + $0x8] sm:$0xff pattern:$0x75316420]
  %149 = vrot.lane.b32.xlu0 %v145, 113
  %v150 = vpop.permute.xlu0 %149
  %151 = vrot.lane.b32.xlu0 %v146, 113
  %v152 = vpop.permute.xlu0 %151
  %vm153 = vcmp.lt.s32.totalorder %v47, 113
  %v154 = vsel %vm153, %v150, %v152
  %v155 = vsel %vm153, %v152, %v150
  %s156 = scalar_lea.vmem %s1, 32
  %v157 = vld [vmem:[%s156] ss:$8 sm:$0x3]
  %v159 = vperm.slane %v157, 0
  %v160 = vperm.slane %v157, 1
  %v163 = vmul.f32 %v154, %v159
  %v164 = vmul.f32 %v155, %v160
  %165 = vst [vmem:[#allocation1] ss:$2 sm:$0xff] %v35
  %v166 = vld.sshfl [vmem:[#allocation1] sm:$0xff pattern:$0x75316420]
  %v167 = vld.sshfl [vmem:[#allocation1 + $0x8] sm:$0xff pattern:$0x75316420]
  %170 = vrot.lane.b32.xlu0 %v166, 112
  %v171 = vpop.permute.xlu0 %170
  %172 = vrot.lane.b32.xlu0 %v167, 112
  %v173 = vpop.permute.xlu0 %172
  %vm174 = vcmp.lt.s32.totalorder %v47, 112
  %v175 = vsel %vm174, %v171, %v173
  %v176 = vsel %vm174, %v173, %v171
  %s177 = scalar_lea.vmem %s1, 33
  %v178 = vld [vmem:[%s177] ss:$8 sm:$0x3]
  %v180 = vperm.slane %v178, 0
  %v181 = vperm.slane %v178, 1
  %v184 = vmul.f32 %v175, %v180
  %v185 = vmul.f32 %v176, %v181
  %186 = vst [vmem:[#allocation1] ss:$2 sm:$0xff] %v35
  %v187 = vld.sshfl [vmem:[#allocation1] sm:$0xff pattern:$0x75316420]
  %v188 = vld.sshfl [vmem:[#allocation1 + $0x8] sm:$0xff pattern:$0x75316420]
  %191 = vrot.lane.b32.xlu0 %v187, 111
  %v192 = vpop.permute.xlu0 %191
  %193 = vrot.lane.b32.xlu0 %v188, 111
  %v194 = vpop.permute.xlu0 %193
  %vm195 = vcmp.lt.s32.totalorder %v47, 111
  %v196 = vsel %vm195, %v192, %v194
  %v197 = vsel %vm195, %v194, %v192
  %s198 = scalar_lea.vmem %s1, 34
  %v199 = vld [vmem:[%s198] ss:$8 sm:$0x3]
  %v201 = vperm.slane %v199, 0
  %v202 = vperm.slane %v199, 1
  %v205 = vmul.f32 %v196, %v201
  %v206 = vmul.f32 %v197, %v202
  %v209 = vrot.slane %v79, 4
  %v210 = vrot.slane %v80, 4
  %v215 = vrot.slane %v121, 4
  %v216 = vrot.slane %v122, 4
  %219 = vst [vmem:[#allocation1] ss:$2 sm:$0xff] %v35
  %v220 = vld.sshfl [vmem:[#allocation1] sm:$0xff pattern:$0x75316420]
  %v221 = vld.sshfl [vmem:[#allocation1 + $0x8] sm:$0xff pattern:$0x75316420]
  %v226 = vrot.slane %v142, 4
  %v227 = vrot.slane %v143, 4
  %v232 = vrot.slane %v184, 4
  %v233 = vrot.slane %v185, 4
  %vm236 = vcmask 1043456
  %v237 = vsel %vm236, %v58, %v209
  %v238 = vsel %vm236, %v59, %v210
  %v239 = vsel %vm236, %v100, %v215
  %v240 = vsel %vm236, %v101, %v216
  %v241 = vsel %vm236, %v220, %v226
  %v242 = vsel %vm236, %v221, %v227
  %v243 = vsel %vm236, %v163, %v232
  %v244 = vsel %vm236, %v164, %v233
  %v245 = vld [vmem:[%s2] sm:$0xff]
  %v246 = vld [vmem:[%s2 + $0x8] sm:$0xff]
  %v247 = vld [vmem:[%s2 + $0x10] sm:$0xff]
  %v248 = vld [vmem:[%s2 + $0x18] sm:$0xff]
  %v249 = vld [vmem:[%s2 + $0x20] sm:$0xff]
  %v250 = vld [vmem:[%s2 + $0x28] sm:$0xff]
  %v251 = vld [vmem:[%s2 + $0x30] sm:$0xff]
  %v252 = vld [vmem:[%s2 + $0x38] sm:$0xff]
  %v253 = vld [vmem:[%s2 + $0x40] sm:$0xff]
  %v254 = vld [vmem:[%s3] sm:$0xff]
  %v255 = vld [vmem:[%s3 + $0x8] sm:$0xff]
  %v256 = vld [vmem:[%s3 + $0x10] sm:$0xff]
  %v257 = vld [vmem:[%s3 + $0x18] sm:$0xff]
  %v258 = vld [vmem:[%s3 + $0x20] sm:$0xff]
  %v259 = vld [vmem:[%s3 + $0x28] sm:$0xff]
  %v260 = vld [vmem:[%s3 + $0x30] sm:$0xff]
  %v261 = vld [vmem:[%s3 + $0x38] sm:$0xff]
  %v262 = vld [vmem:[%s3 + $0x40] sm:$0xff]
  %264 = vset.pattern.permute.xlu0 0
  %265 = vperm.xlu0 %264, %v254
  %v266 = vpop.permute.xlu0 %265
  %269 = vset.pattern.permute.xlu0 0
  %270 = vperm.xlu0 %269, %v255
  %v271 = vpop.permute.xlu0 %270
  %274 = vset.pattern.permute.xlu0 0
  %275 = vperm.xlu0 %274, %v256
  %v276 = vpop.permute.xlu0 %275
  %279 = vset.pattern.permute.xlu0 0
  %280 = vperm.xlu0 %279, %v257
  %v281 = vpop.permute.xlu0 %280
  %284 = vset.pattern.permute.xlu0 0
  %285 = vperm.xlu0 %284, %v258
  %v286 = vpop.permute.xlu0 %285
  %289 = vset.pattern.permute.xlu0 0
  %290 = vperm.xlu0 %289, %v259
  %v291 = vpop.permute.xlu0 %290
  %294 = vset.pattern.permute.xlu0 0
  %295 = vperm.xlu0 %294, %v260
  %v296 = vpop.permute.xlu0 %295
  %299 = vset.pattern.permute.xlu0 0
  %300 = vperm.xlu0 %299, %v261
  %v301 = vpop.permute.xlu0 %300
  %304 = vset.pattern.permute.xlu0 0
  %305 = vperm.xlu0 %304, %v262
  %v306 = vpop.permute.xlu0 %305
  %vm308 = vcmask 293888
  %v310 = vsel %vm308, %v245, 0
  %v313 = vsel %vm308, %v246, 0
  %v316 = vsel %vm308, %v247, 0
  %v319 = vsel %vm308, %v248, 0
  %v322 = vsel %vm308, %v249, 0
  %v325 = vsel %vm308, %v250, 0
  %v328 = vsel %vm308, %v251, 0
  %v331 = vsel %vm308, %v252, 0
  %v334 = vsel %vm308, %v253, 0
  %v337 = vsel %vm236, %v205, 0
  %v340 = vsel %vm236, %v206, 0
  %342 = vmatpush.msra.mxu0 0.0
  %343 = vmatpush.msra.mxu0 0.0
  %344 = vmatpush.msra.mxu0 0.0
  %345 = vmatpush.msra.mxu0 0.0
  %346 = vmatpush.msra.mxu0 0.0
  %347 = vmatpush.msra.mxu0 0.0
  %348 = vmatpush.msra.mxu0 0.0
  %349 = vmatpush.msra.mxu0 0.0
  %350 = vmatpush.msra.mxu0 0.0
  %351 = vmatpush.msra.mxu0 0.0
  %352 = vmatpush.msra.mxu0 0.0
  %353 = vmatpush.msra.mxu0 %v337
  %354 = vmatpush.msra.mxu0 %v243
  %355 = vmatpush.msra.mxu0 %v241
  %356 = vmatpush.msra.mxu0 %v239
  %357 = vmatpush.msra.mxu0 %v237
  %358 = vmatmul.f32.gmra.mxu0 %v310
  %v359 = vpop.f32.mrf.mxu0
  %v360 = vadd.f32 %v266, %v359
  %361 = vmatmul.f32.gmra.mxu0 %v313
  %v362 = vpop.f32.mrf.mxu0
  %v363 = vadd.f32 %v271, %v362
  %364 = vmatmul.f32.gmra.mxu0 %v316
  %v365 = vpop.f32.mrf.mxu0
  %v366 = vadd.f32 %v276, %v365
  %367 = vmatmul.f32.gmra.mxu0 %v319
  %v368 = vpop.f32.mrf.mxu0
  %v369 = vadd.f32 %v281, %v368
  %370 = vmatmul.f32.gmra.mxu0 %v322
  %v371 = vpop.f32.mrf.mxu0
  %v372 = vadd.f32 %v286, %v371
  %373 = vmatmul.f32.gmra.mxu0 %v325
  %v374 = vpop.f32.mrf.mxu0
  %v375 = vadd.f32 %v291, %v374
  %376 = vmatmul.f32.gmra.mxu0 %v328
  %v377 = vpop.f32.mrf.mxu0
  %v378 = vadd.f32 %v296, %v377
  %379 = vmatmul.f32.gmra.mxu0 %v331
  %v380 = vpop.f32.mrf.mxu0
  %v381 = vadd.f32 %v301, %v380
  %382 = vmatmul.f32.gmra.mxu0 %v334
  %v383 = vpop.f32.mrf.mxu0
  %v384 = vadd.f32 %v306, %v383
  %385 = vdwg.mxu0
  %386 = vmatpush.msra.mxu0 0.0
  %387 = vmatpush.msra.mxu0 0.0
  %388 = vmatpush.msra.mxu0 0.0
  %389 = vmatpush.msra.mxu0 0.0
  %390 = vmatpush.msra.mxu0 0.0
  %391 = vmatpush.msra.mxu0 0.0
  %392 = vmatpush.msra.mxu0 0.0
  %393 = vmatpush.msra.mxu0 0.0
  %394 = vmatpush.msra.mxu0 0.0
  %395 = vmatpush.msra.mxu0 0.0
  %396 = vmatpush.msra.mxu0 0.0
  %397 = vmatpush.msra.mxu0 %v340
  %398 = vmatpush.msra.mxu0 %v244
  %399 = vmatpush.msra.mxu0 %v242
  %400 = vmatpush.msra.mxu0 %v240
  %401 = vmatpush.msra.mxu0 %v238
  %402 = vmatmul.f32.gmra.mxu0 %v310
  %v403 = vpop.f32.mrf.mxu0
  %v404 = vadd.f32 %v266, %v403
  %405 = vmatmul.f32.gmra.mxu0 %v313
  %v406 = vpop.f32.mrf.mxu0
  %v407 = vadd.f32 %v271, %v406
  %408 = vmatmul.f32.gmra.mxu0 %v316
  %v409 = vpop.f32.mrf.mxu0
  %v410 = vadd.f32 %v276, %v409
  %411 = vmatmul.f32.gmra.mxu0 %v319
  %v412 = vpop.f32.mrf.mxu0
  %v413 = vadd.f32 %v281, %v412
  %414 = vmatmul.f32.gmra.mxu0 %v322
  %v415 = vpop.f32.mrf.mxu0
  %v416 = vadd.f32 %v286, %v415
  %417 = vmatmul.f32.gmra.mxu0 %v325
  %v418 = vpop.f32.mrf.mxu0
  %v419 = vadd.f32 %v291, %v418
  %420 = vmatmul.f32.gmra.mxu0 %v328
  %v421 = vpop.f32.mrf.mxu0
  %v422 = vadd.f32 %v296, %v421
  %423 = vmatmul.f32.gmra.mxu0 %v331
  %v424 = vpop.f32.mrf.mxu0
  %v425 = vadd.f32 %v301, %v424
  %426 = vmatmul.f32.gmra.mxu0 %v334
  %v427 = vpop.f32.mrf.mxu0
  %v428 = vadd.f32 %v306, %v427
  %429 = vdwg.mxu0
  %430 = vrot.lane.b32.xlu0 %v375, 34
  %v431 = vpop.permute.xlu0 %430
  %432 = vrot.lane.b32.xlu0 %v378, 34
  %v433 = vpop.permute.xlu0 %432
  %434 = vrot.lane.b32.xlu0 %v419, 34
  %v435 = vpop.permute.xlu0 %434
  %436 = vrot.lane.b32.xlu0 %v422, 34
  %v437 = vpop.permute.xlu0 %436
  %vm438 = vcmp.lt.s32.totalorder %v47, 34
  %v439 = vsel %vm438, %v431, %v435
  %v440 = vsel %vm438, %v433, %v437
  %v441 = vsel %vm438, %v435, %v431
  %v442 = vsel %vm438, %v437, %v433
  %v443 = vld [vmem:[%s1] ss:$8 sm:$0x3]
  %v445 = vperm.slane %v443, 0
  %v446 = vperm.slane %v443, 1
  %v449 = vmul.f32 %v441, %v445
  %v450 = vmul.f32 %v439, %v446
  %v451 = vmul.f32 %v442, %v445
  %v452 = vmul.f32 %v440, %v446
  %453 = vrot.lane.b32.xlu0 %v375, 33
  %v454 = vpop.permute.xlu0 %453
  %455 = vrot.lane.b32.xlu0 %v378, 33
  %v456 = vpop.permute.xlu0 %455
  %457 = vrot.lane.b32.xlu0 %v419, 33
  %v458 = vpop.permute.xlu0 %457
  %459 = vrot.lane.b32.xlu0 %v422, 33
  %v460 = vpop.permute.xlu0 %459
  %vm461 = vcmp.lt.s32.totalorder %v47, 33
  %v462 = vsel %vm461, %v454, %v458
  %v463 = vsel %vm461, %v456, %v460
  %v464 = vsel %vm461, %v458, %v454
  %v465 = vsel %vm461, %v460, %v456
  %s466 = scalar_lea.vmem %s1, 1
  %v467 = vld [vmem:[%s466] ss:$8 sm:$0x3]
  %v469 = vperm.slane %v467, 0
  %v470 = vperm.slane %v467, 1
  %v473 = vmul.f32 %v464, %v469
  %v474 = vmul.f32 %v462, %v470
  %v475 = vmul.f32 %v465, %v469
  %v476 = vmul.f32 %v463, %v470
  %477 = vrot.lane.b32.xlu0 %v375, 32
  %v478 = vpop.permute.xlu0 %477
  %479 = vrot.lane.b32.xlu0 %v378, 32
  %v480 = vpop.permute.xlu0 %479
  %481 = vrot.lane.b32.xlu0 %v419, 32
  %v482 = vpop.permute.xlu0 %481
  %483 = vrot.lane.b32.xlu0 %v422, 32
  %v484 = vpop.permute.xlu0 %483
  %vm485 = vcmp.lt.s32.totalorder %v47, 32
  %v486 = vsel %vm485, %v478, %v482
  %v487 = vsel %vm485, %v480, %v484
  %v488 = vsel %vm485, %v482, %v478
  %v489 = vsel %vm485, %v484, %v480
  %s490 = scalar_lea.vmem %s1, 2
  %v491 = vld [vmem:[%s490] ss:$8 sm:$0x3]
  %v493 = vperm.slane %v491, 0
  %v494 = vperm.slane %v491, 1
  %v497 = vmul.f32 %v488, %v493
  %v498 = vmul.f32 %v486, %v494
  %v499 = vmul.f32 %v489, %v493
  %v500 = vmul.f32 %v487, %v494
  %501 = vrot.lane.b32.xlu0 %v375, 31
  %v502 = vpop.permute.xlu0 %501
  %503 = vrot.lane.b32.xlu0 %v378, 31
  %v504 = vpop.permute.xlu0 %503
  %505 = vrot.lane.b32.xlu0 %v419, 31
  %v506 = vpop.permute.xlu0 %505
  %507 = vrot.lane.b32.xlu0 %v422, 31
  %v508 = vpop.permute.xlu0 %507
  %vm509 = vcmp.lt.s32.totalorder %v47, 31
  %v510 = vsel %vm509, %v502, %v506
  %v511 = vsel %vm509, %v504, %v508
  %v512 = vsel %vm509, %v506, %v502
  %v513 = vsel %vm509, %v508, %v504
  %s514 = scalar_lea.vmem %s1, 3
  %v515 = vld [vmem:[%s514] ss:$8 sm:$0x3]
  %v517 = vperm.slane %v515, 0
  %v518 = vperm.slane %v515, 1
  %v521 = vmul.f32 %v512, %v517
  %v522 = vmul.f32 %v510, %v518
  %v523 = vmul.f32 %v513, %v517
  %v524 = vmul.f32 %v511, %v518
  %525 = vrot.lane.b32.xlu0 %v375, 30
  %v526 = vpop.permute.xlu0 %525
  %527 = vrot.lane.b32.xlu0 %v378, 30
  %v528 = vpop.permute.xlu0 %527
  %529 = vrot.lane.b32.xlu0 %v419, 30
  %v530 = vpop.permute.xlu0 %529
  %531 = vrot.lane.b32.xlu0 %v422, 30
  %v532 = vpop.permute.xlu0 %531
  %vm533 = vcmp.lt.s32.totalorder %v47, 30
  %v534 = vsel %vm533, %v526, %v530
  %v535 = vsel %vm533, %v528, %v532
  %v536 = vsel %vm533, %v530, %v526
  %v537 = vsel %vm533, %v532, %v528
  %s538 = scalar_lea.vmem %s1, 4
  %v539 = vld [vmem:[%s538] ss:$8 sm:$0x3]
  %v541 = vperm.slane %v539, 0
  %v542 = vperm.slane %v539, 1
  %v545 = vmul.f32 %v536, %v541
  %v546 = vmul.f32 %v534, %v542
  %v547 = vmul.f32 %v537, %v541
  %v548 = vmul.f32 %v535, %v542
  %549 = vrot.lane.b32.xlu0 %v375, 18
  %v550 = vpop.permute.xlu0 %549
  %551 = vrot.lane.b32.xlu0 %v378, 18
  %v552 = vpop.permute.xlu0 %551
  %553 = vrot.lane.b32.xlu0 %v419, 18
  %v554 = vpop.permute.xlu0 %553
  %555 = vrot.lane.b32.xlu0 %v422, 18
  %v556 = vpop.permute.xlu0 %555
  %vm557 = vcmp.lt.s32.totalorder %v47, 18
  %v558 = vsel %vm557, %v550, %v554
  %v559 = vsel %vm557, %v552, %v556
  %v560 = vsel %vm557, %v554, %v550
  %v561 = vsel %vm557, %v556, %v552
  %s562 = scalar_lea.vmem %s1, 5
  %v563 = vld [vmem:[%s562] ss:$8 sm:$0x3]
  %v565 = vperm.slane %v563, 0
  %v566 = vperm.slane %v563, 1
  %v569 = vmul.f32 %v560, %v565
  %v570 = vmul.f32 %v558, %v566
  %v571 = vmul.f32 %v561, %v565
  %v572 = vmul.f32 %v559, %v566
  %573 = vrot.lane.b32.xlu0 %v375, 17
  %v574 = vpop.permute.xlu0 %573
  %575 = vrot.lane.b32.xlu0 %v378, 17
  %v576 = vpop.permute.xlu0 %575
  %577 = vrot.lane.b32.xlu0 %v419, 17
  %v578 = vpop.permute.xlu0 %577
  %579 = vrot.lane.b32.xlu0 %v422, 17
  %v580 = vpop.permute.xlu0 %579
  %v581 = vsel %vm48, %v574, %v578
  %v582 = vsel %vm48, %v576, %v580
  %v583 = vsel %vm48, %v578, %v574
  %v584 = vsel %vm48, %v580, %v576
  %v585 = vmul.f32 %v583, %v54
  %v586 = vmul.f32 %v581, %v55
  %v587 = vmul.f32 %v584, %v54
  %v588 = vmul.f32 %v582, %v55
  %589 = vrot.lane.b32.xlu0 %v375, 16
  %v590 = vpop.permute.xlu0 %589
  %591 = vrot.lane.b32.xlu0 %v378, 16
  %v592 = vpop.permute.xlu0 %591
  %593 = vrot.lane.b32.xlu0 %v419, 16
  %v594 = vpop.permute.xlu0 %593
  %595 = vrot.lane.b32.xlu0 %v422, 16
  %v596 = vpop.permute.xlu0 %595
  %v597 = vsel %vm69, %v590, %v594
  %v598 = vsel %vm69, %v592, %v596
  %v599 = vsel %vm69, %v594, %v590
  %v600 = vsel %vm69, %v596, %v592
  %v601 = vmul.f32 %v599, %v75
  %v602 = vmul.f32 %v597, %v76
  %v603 = vmul.f32 %v600, %v75
  %v604 = vmul.f32 %v598, %v76
  %605 = vrot.lane.b32.xlu0 %v375, 15
  %v606 = vpop.permute.xlu0 %605
  %607 = vrot.lane.b32.xlu0 %v378, 15
  %v608 = vpop.permute.xlu0 %607
  %609 = vrot.lane.b32.xlu0 %v419, 15
  %v610 = vpop.permute.xlu0 %609
  %611 = vrot.lane.b32.xlu0 %v422, 15
  %v612 = vpop.permute.xlu0 %611
  %v613 = vsel %vm90, %v606, %v610
  %v614 = vsel %vm90, %v608, %v612
  %v615 = vsel %vm90, %v610, %v606
  %v616 = vsel %vm90, %v612, %v608
  %v617 = vmul.f32 %v615, %v96
  %v618 = vmul.f32 %v613, %v97
  %v619 = vmul.f32 %v616, %v96
  %v620 = vmul.f32 %v614, %v97
  %621 = vrot.lane.b32.xlu0 %v375, 14
  %v622 = vpop.permute.xlu0 %621
  %623 = vrot.lane.b32.xlu0 %v378, 14
  %v624 = vpop.permute.xlu0 %623
  %625 = vrot.lane.b32.xlu0 %v419, 14
  %v626 = vpop.permute.xlu0 %625
  %627 = vrot.lane.b32.xlu0 %v422, 14
  %v628 = vpop.permute.xlu0 %627
  %vm629 = vcmp.lt.s32.totalorder %v47, 14
  %v630 = vsel %vm629, %v622, %v626
  %v631 = vsel %vm629, %v624, %v628
  %v632 = vsel %vm629, %v626, %v622
  %v633 = vsel %vm629, %v628, %v624
  %s634 = scalar_lea.vmem %s1, 17
  %v635 = vld [vmem:[%s634] ss:$8 sm:$0x3]
  %v637 = vperm.slane %v635, 0
  %v638 = vperm.slane %v635, 1
  %v641 = vmul.f32 %v632, %v637
  %v642 = vmul.f32 %v630, %v638
  %v643 = vmul.f32 %v633, %v637
  %v644 = vmul.f32 %v631, %v638
  %645 = vrot.lane.b32.xlu0 %v375, 2
  %v646 = vpop.permute.xlu0 %645
  %647 = vrot.lane.b32.xlu0 %v378, 2
  %v648 = vpop.permute.xlu0 %647
  %649 = vrot.lane.b32.xlu0 %v419, 2
  %v650 = vpop.permute.xlu0 %649
  %651 = vrot.lane.b32.xlu0 %v422, 2
  %v652 = vpop.permute.xlu0 %651
  %vm653 = vcmp.lt.s32.totalorder %v47, 2
  %v654 = vsel %vm653, %v646, %v650
  %v655 = vsel %vm653, %v648, %v652
  %v656 = vsel %vm653, %v650, %v646
  %v657 = vsel %vm653, %v652, %v648
  %s658 = scalar_lea.vmem %s1, 18
  %v659 = vld [vmem:[%s658] ss:$8 sm:$0x3]
  %v661 = vperm.slane %v659, 0
  %v662 = vperm.slane %v659, 1
  %v665 = vmul.f32 %v656, %v661
  %v666 = vmul.f32 %v654, %v662
  %v667 = vmul.f32 %v657, %v661
  %v668 = vmul.f32 %v655, %v662
  %669 = vrot.lane.b32.xlu0 %v375, 1
  %v670 = vpop.permute.xlu0 %669
  %671 = vrot.lane.b32.xlu0 %v378, 1
  %v672 = vpop.permute.xlu0 %671
  %673 = vrot.lane.b32.xlu0 %v419, 1
  %v674 = vpop.permute.xlu0 %673
  %675 = vrot.lane.b32.xlu0 %v422, 1
  %v676 = vpop.permute.xlu0 %675
  %v677 = vsel %vm111, %v670, %v674
  %v678 = vsel %vm111, %v672, %v676
  %v679 = vsel %vm111, %v674, %v670
  %v680 = vsel %vm111, %v676, %v672
  %v681 = vmul.f32 %v679, %v117
  %v682 = vmul.f32 %v677, %v118
  %v683 = vmul.f32 %v680, %v117
  %v684 = vmul.f32 %v678, %v118
  %685 = vrot.lane.b32.xlu0 %v375, 127
  %v686 = vpop.permute.xlu0 %685
  %687 = vrot.lane.b32.xlu0 %v378, 127
  %v688 = vpop.permute.xlu0 %687
  %689 = vrot.lane.b32.xlu0 %v419, 127
  %v690 = vpop.permute.xlu0 %689
  %691 = vrot.lane.b32.xlu0 %v422, 127
  %v692 = vpop.permute.xlu0 %691
  %v693 = vsel %vm132, %v686, %v690
  %v694 = vsel %vm132, %v688, %v692
  %v695 = vsel %vm132, %v690, %v686
  %v696 = vsel %vm132, %v692, %v688
  %v697 = vmul.f32 %v693, %v138
  %v698 = vmul.f32 %v695, %v139
  %v699 = vmul.f32 %v694, %v138
  %v700 = vmul.f32 %v696, %v139
  %701 = vrot.lane.b32.xlu0 %v375, 126
  %v702 = vpop.permute.xlu0 %701
  %703 = vrot.lane.b32.xlu0 %v378, 126
  %v704 = vpop.permute.xlu0 %703
  %705 = vrot.lane.b32.xlu0 %v419, 126
  %v706 = vpop.permute.xlu0 %705
  %707 = vrot.lane.b32.xlu0 %v422, 126
  %v708 = vpop.permute.xlu0 %707
  %vm709 = vcmp.lt.s32.totalorder %v47, 126
  %v710 = vsel %vm709, %v702, %v706
  %v711 = vsel %vm709, %v704, %v708
  %v712 = vsel %vm709, %v706, %v702
  %v713 = vsel %vm709, %v708, %v704
  %s714 = scalar_lea.vmem %s1, 22
  %v715 = vld [vmem:[%s714] ss:$8 sm:$0x3]
  %v717 = vperm.slane %v715, 0
  %v718 = vperm.slane %v715, 1
  %v721 = vmul.f32 %v710, %v717
  %v722 = vmul.f32 %v712, %v718
  %v723 = vmul.f32 %v711, %v717
  %v724 = vmul.f32 %v713, %v718
  %725 = vrot.lane.b32.xlu0 %v375, 114
  %v726 = vpop.permute.xlu0 %725
  %727 = vrot.lane.b32.xlu0 %v378, 114
  %v728 = vpop.permute.xlu0 %727
  %729 = vrot.lane.b32.xlu0 %v419, 114
  %v730 = vpop.permute.xlu0 %729
  %731 = vrot.lane.b32.xlu0 %v422, 114
  %v732 = vpop.permute.xlu0 %731
  %vm733 = vcmp.lt.s32.totalorder %v47, 114
  %v734 = vsel %vm733, %v726, %v730
  %v735 = vsel %vm733, %v728, %v732
  %v736 = vsel %vm733, %v730, %v726
  %v737 = vsel %vm733, %v732, %v728
  %s738 = scalar_lea.vmem %s1, 23
  %v739 = vld [vmem:[%s738] ss:$8 sm:$0x3]
  %v741 = vperm.slane %v739, 0
  %v742 = vperm.slane %v739, 1
  %v745 = vmul.f32 %v734, %v741
  %v746 = vmul.f32 %v736, %v742
  %v747 = vmul.f32 %v735, %v741
  %v748 = vmul.f32 %v737, %v742
  %749 = vrot.lane.b32.xlu0 %v375, 113
  %v750 = vpop.permute.xlu0 %749
  %751 = vrot.lane.b32.xlu0 %v378, 113
  %v752 = vpop.permute.xlu0 %751
  %753 = vrot.lane.b32.xlu0 %v419, 113
  %v754 = vpop.permute.xlu0 %753
  %755 = vrot.lane.b32.xlu0 %v422, 113
  %v756 = vpop.permute.xlu0 %755
  %v757 = vsel %vm153, %v750, %v754
  %v758 = vsel %vm153, %v752, %v756
  %v759 = vsel %vm153, %v754, %v750
  %v760 = vsel %vm153, %v756, %v752
  %v761 = vmul.f32 %v757, %v159
  %v762 = vmul.f32 %v759, %v160
  %v763 = vmul.f32 %v758, %v159
  %v764 = vmul.f32 %v760, %v160
  %765 = vrot.lane.b32.xlu0 %v375, 112
  %v766 = vpop.permute.xlu0 %765
  %767 = vrot.lane.b32.xlu0 %v378, 112
  %v768 = vpop.permute.xlu0 %767
  %769 = vrot.lane.b32.xlu0 %v419, 112
  %v770 = vpop.permute.xlu0 %769
  %771 = vrot.lane.b32.xlu0 %v422, 112
  %v772 = vpop.permute.xlu0 %771
  %v773 = vsel %vm174, %v766, %v770
  %v774 = vsel %vm174, %v768, %v772
  %v775 = vsel %vm174, %v770, %v766
  %v776 = vsel %vm174, %v772, %v768
  %v777 = vmul.f32 %v773, %v180
  %v778 = vmul.f32 %v775, %v181
  %v779 = vmul.f32 %v774, %v180
  %v780 = vmul.f32 %v776, %v181
  %781 = vrot.lane.b32.xlu0 %v375, 111
  %v782 = vpop.permute.xlu0 %781
  %783 = vrot.lane.b32.xlu0 %v378, 111
  %v784 = vpop.permute.xlu0 %783
  %785 = vrot.lane.b32.xlu0 %v419, 111
  %v786 = vpop.permute.xlu0 %785
  %787 = vrot.lane.b32.xlu0 %v422, 111
  %v788 = vpop.permute.xlu0 %787
  %v789 = vsel %vm195, %v782, %v786
  %v790 = vsel %vm195, %v784, %v788
  %v791 = vsel %vm195, %v786, %v782
  %v792 = vsel %vm195, %v788, %v784
  %v793 = vmul.f32 %v789, %v201
  %v794 = vmul.f32 %v791, %v202
  %v795 = vmul.f32 %v790, %v201
  %v796 = vmul.f32 %v792, %v202
  %797 = vrot.lane.b32.xlu0 %v375, 110
  %v798 = vpop.permute.xlu0 %797
  %799 = vrot.lane.b32.xlu0 %v378, 110
  %v800 = vpop.permute.xlu0 %799
  %801 = vrot.lane.b32.xlu0 %v419, 110
  %v802 = vpop.permute.xlu0 %801
  %803 = vrot.lane.b32.xlu0 %v422, 110
  %v804 = vpop.permute.xlu0 %803
  %vm805 = vcmp.lt.s32.totalorder %v47, 110
  %v806 = vsel %vm805, %v798, %v802
  %v807 = vsel %vm805, %v800, %v804
  %v808 = vsel %vm805, %v802, %v798
  %v809 = vsel %vm805, %v804, %v800
  %s810 = scalar_lea.vmem %s1, 35
  %v811 = vld [vmem:[%s810] ss:$8 sm:$0x3]
  %v813 = vperm.slane %v811, 0
  %v814 = vperm.slane %v811, 1
  %v817 = vmul.f32 %v806, %v813
  %v818 = vmul.f32 %v808, %v814
  %v819 = vmul.f32 %v807, %v813
  %v820 = vmul.f32 %v809, %v814
  %821 = vrot.lane.b32.xlu0 %v375, 98
  %v822 = vpop.permute.xlu0 %821
  %823 = vrot.lane.b32.xlu0 %v378, 98
  %v824 = vpop.permute.xlu0 %823
  %825 = vrot.lane.b32.xlu0 %v419, 98
  %v826 = vpop.permute.xlu0 %825
  %827 = vrot.lane.b32.xlu0 %v422, 98
  %v828 = vpop.permute.xlu0 %827
  %vm829 = vcmp.lt.s32.totalorder %v47, 98
  %v830 = vsel %vm829, %v822, %v826
  %v831 = vsel %vm829, %v824, %v828
  %v832 = vsel %vm829, %v826, %v822
  %v833 = vsel %vm829, %v828, %v824
  %s834 = scalar_lea.vmem %s1, 36
  %v835 = vld [vmem:[%s834] ss:$8 sm:$0x3]
  %v837 = vperm.slane %v835, 0
  %v838 = vperm.slane %v835, 1
  %v841 = vmul.f32 %v830, %v837
  %v842 = vmul.f32 %v832, %v838
  %v843 = vmul.f32 %v831, %v837
  %v844 = vmul.f32 %v833, %v838
  %845 = vrot.lane.b32.xlu0 %v375, 97
  %v846 = vpop.permute.xlu0 %845
  %847 = vrot.lane.b32.xlu0 %v378, 97
  %v848 = vpop.permute.xlu0 %847
  %849 = vrot.lane.b32.xlu0 %v419, 97
  %v850 = vpop.permute.xlu0 %849
  %851 = vrot.lane.b32.xlu0 %v422, 97
  %v852 = vpop.permute.xlu0 %851
  %vm853 = vcmp.lt.s32.totalorder %v47, 97
  %v854 = vsel %vm853, %v846, %v850
  %v855 = vsel %vm853, %v848, %v852
  %v856 = vsel %vm853, %v850, %v846
  %v857 = vsel %vm853, %v852, %v848
  %s858 = scalar_lea.vmem %s1, 37
  %v859 = vld [vmem:[%s858] ss:$8 sm:$0x3]
  %v861 = vperm.slane %v859, 0
  %v862 = vperm.slane %v859, 1
  %v865 = vmul.f32 %v854, %v861
  %v866 = vmul.f32 %v856, %v862
  %v867 = vmul.f32 %v855, %v861
  %v868 = vmul.f32 %v857, %v862
  %869 = vrot.lane.b32.xlu0 %v375, 96
  %v870 = vpop.permute.xlu0 %869
  %871 = vrot.lane.b32.xlu0 %v378, 96
  %v872 = vpop.permute.xlu0 %871
  %873 = vrot.lane.b32.xlu0 %v419, 96
  %v874 = vpop.permute.xlu0 %873
  %875 = vrot.lane.b32.xlu0 %v422, 96
  %v876 = vpop.permute.xlu0 %875
  %vm877 = vcmp.lt.s32.totalorder %v47, 96
  %v878 = vsel %vm877, %v870, %v874
  %v879 = vsel %vm877, %v872, %v876
  %v880 = vsel %vm877, %v874, %v870
  %v881 = vsel %vm877, %v876, %v872
  %s882 = scalar_lea.vmem %s1, 38
  %v883 = vld [vmem:[%s882] ss:$8 sm:$0x3]
  %v885 = vperm.slane %v883, 0
  %v886 = vperm.slane %v883, 1
  %v889 = vmul.f32 %v878, %v885
  %v890 = vmul.f32 %v880, %v886
  %v891 = vmul.f32 %v879, %v885
  %v892 = vmul.f32 %v881, %v886
  %893 = vrot.lane.b32.xlu0 %v375, 95
  %v894 = vpop.permute.xlu0 %893
  %895 = vrot.lane.b32.xlu0 %v378, 95
  %v896 = vpop.permute.xlu0 %895
  %897 = vrot.lane.b32.xlu0 %v419, 95
  %v898 = vpop.permute.xlu0 %897
  %899 = vrot.lane.b32.xlu0 %v422, 95
  %v900 = vpop.permute.xlu0 %899
  %vm901 = vcmp.lt.s32.totalorder %v47, 95
  %v902 = vsel %vm901, %v894, %v898
  %v903 = vsel %vm901, %v896, %v900
  %v904 = vsel %vm901, %v898, %v894
  %v905 = vsel %vm901, %v900, %v896
  %s906 = scalar_lea.vmem %s1, 39
  %v907 = vld [vmem:[%s906] ss:$8 sm:$0x3]
  %v909 = vperm.slane %v907, 0
  %v910 = vperm.slane %v907, 1
  %v913 = vmul.f32 %v902, %v909
  %v914 = vmul.f32 %v904, %v910
  %v915 = vmul.f32 %v903, %v909
  %v916 = vmul.f32 %v905, %v910
  %917 = vrot.lane.b32.xlu0 %v375, 94
  %v918 = vpop.permute.xlu0 %917
  %919 = vrot.lane.b32.xlu0 %v378, 94
  %v920 = vpop.permute.xlu0 %919
  %921 = vrot.lane.b32.xlu0 %v419, 94
  %v922 = vpop.permute.xlu0 %921
  %923 = vrot.lane.b32.xlu0 %v422, 94
  %v924 = vpop.permute.xlu0 %923
  %vm925 = vcmp.lt.s32.totalorder %v47, 94
  %v926 = vsel %vm925, %v918, %v922
  %v927 = vsel %vm925, %v920, %v924
  %v928 = vsel %vm925, %v922, %v918
  %v929 = vsel %vm925, %v924, %v920
  %s930 = scalar_lea.vmem %s1, 48
  %v931 = vld [vmem:[%s930] ss:$8 sm:$0x3]
  %v933 = vperm.slane %v931, 0
  %v934 = vperm.slane %v931, 1
  %v937 = vmul.f32 %v926, %v933
  %v938 = vmul.f32 %v928, %v934
  %v939 = vmul.f32 %v927, %v933
  %v940 = vmul.f32 %v929, %v934
  %v941 = vld [vmem:[%s4] sm:$0xff]
  %v942 = vld [vmem:[%s4 + $0x8] sm:$0xff]
  %v943 = vld [vmem:[%s4 + $0x10] sm:$0xff]
  %v944 = vld [vmem:[%s4 + $0x18] sm:$0xff]
  %v945 = vld [vmem:[%s4 + $0x20] sm:$0xff]
  %v946 = vld [vmem:[%s4 + $0x28] sm:$0xff]
  %v947 = vld [vmem:[%s4 + $0x30] sm:$0xff]
  %v948 = vld [vmem:[%s4 + $0x38] sm:$0xff]
  %v949 = vld [vmem:[%s4 + $0x40] sm:$0xff]
  %v950 = vld [vmem:[%s4 + $0x48] sm:$0xff]
  %v951 = vld [vmem:[%s4 + $0x50] sm:$0xff]
  %v952 = vld [vmem:[%s4 + $0x58] sm:$0xff]
  %v953 = vld [vmem:[%s5] sm:$0xff]
  %v954 = vld [vmem:[%s5 + $0x8] sm:$0xff]
  %v955 = vld [vmem:[%s5 + $0x10] sm:$0xff]
  %957 = vset.pattern.permute.xlu0 0
  %958 = vperm.xlu0 %957, %v953
  %v959 = vpop.permute.xlu0 %958
  %962 = vset.pattern.permute.xlu0 0
  %963 = vperm.xlu0 %962, %v954
  %v964 = vpop.permute.xlu0 %963
  %967 = vset.pattern.permute.xlu0 0
  %968 = vperm.xlu0 %967, %v955
  %v969 = vpop.permute.xlu0 %968
  %vm971 = vcmask 130048
  %v973 = vsel %vm971, %v944, 0
  %v976 = vsel %vm971, %v948, 0
  %v979 = vsel %vm971, %v952, 0
  %981 = vmatpush.msra.mxu0 %v603
  %982 = vmatpush.msra.mxu0 %v601
  %983 = vmatpush.msra.mxu0 %v587
  %984 = vmatpush.msra.mxu0 %v585
  %985 = vmatpush.msra.mxu0 %v571
  %986 = vmatpush.msra.mxu0 %v569
  %987 = vmatpush.msra.mxu0 %v547
  %988 = vmatpush.msra.mxu0 %v545
  %989 = vmatpush.msra.mxu0 %v523
  %990 = vmatpush.msra.mxu0 %v521
  %991 = vmatpush.msra.mxu0 %v499
  %992 = vmatpush.msra.mxu0 %v497
  %993 = vmatpush.msra.mxu0 %v475
  %994 = vmatpush.msra.mxu0 %v473
  %995 = vmatpush.msra.mxu0 %v451
  %996 = vmatpush.msra.mxu0 %v449
  %997 = vmatmul.f32.gmra.mxu0 %v941
  %v998 = vpop.f32.mrf.mxu0
  %v999 = vadd.f32 %v959, %v998
  %1000 = vmatmul.f32.gmra.mxu0 %v945
  %v1001 = vpop.f32.mrf.mxu0
  %v1002 = vadd.f32 %v964, %v1001
  %1003 = vmatmul.f32.gmra.mxu0 %v949
  %v1004 = vpop.f32.mrf.mxu0
  %v1005 = vadd.f32 %v969, %v1004
  %1006 = vdwg.mxu0
  %1007 = vmatpush.msra.mxu0 %v747
  %1008 = vmatpush.msra.mxu0 %v745
  %1009 = vmatpush.msra.mxu0 %v723
  %1010 = vmatpush.msra.mxu0 %v721
  %1011 = vmatpush.msra.mxu0 %v699
  %1012 = vmatpush.msra.mxu0 %v697
  %1013 = vmatpush.msra.mxu0 %v378
  %1014 = vmatpush.msra.mxu0 %v375
  %1015 = vmatpush.msra.mxu0 %v683
  %1016 = vmatpush.msra.mxu0 %v681
  %1017 = vmatpush.msra.mxu0 %v667
  %1018 = vmatpush.msra.mxu0 %v665
  %1019 = vmatpush.msra.mxu0 %v643
  %1020 = vmatpush.msra.mxu0 %v641
  %1021 = vmatpush.msra.mxu0 %v619
  %1022 = vmatpush.msra.mxu0 %v617
  %1023 = vmatmul.f32.gmra.mxu0 %v942
  %v1024 = vpop.f32.mrf.mxu0
  %v1025 = vadd.f32 %v999, %v1024
  %1026 = vmatmul.f32.gmra.mxu0 %v946
  %v1027 = vpop.f32.mrf.mxu0
  %v1028 = vadd.f32 %v1002, %v1027
  %1029 = vmatmul.f32.gmra.mxu0 %v950
  %v1030 = vpop.f32.mrf.mxu0
  %v1031 = vadd.f32 %v1005, %v1030
  %1032 = vdwg.mxu0
  %1033 = vmatpush.msra.mxu0 %v915
  %1034 = vmatpush.msra.mxu0 %v913
  %1035 = vmatpush.msra.mxu0 %v891
  %1036 = vmatpush.msra.mxu0 %v889
  %1037 = vmatpush.msra.mxu0 %v867
  %1038 = vmatpush.msra.mxu0 %v865
  %1039 = vmatpush.msra.mxu0 %v843
  %1040 = vmatpush.msra.mxu0 %v841
  %1041 = vmatpush.msra.mxu0 %v819
  %1042 = vmatpush.msra.mxu0 %v817
  %1043 = vmatpush.msra.mxu0 %v795
  %1044 = vmatpush.msra.mxu0 %v793
  %1045 = vmatpush.msra.mxu0 %v779
  %1046 = vmatpush.msra.mxu0 %v777
  %1047 = vmatpush.msra.mxu0 %v763
  %1048 = vmatpush.msra.mxu0 %v761
  %1049 = vmatmul.f32.gmra.mxu0 %v943
  %v1050 = vpop.f32.mrf.mxu0
  %v1051 = vadd.f32 %v1025, %v1050
  %1052 = vmatmul.f32.gmra.mxu0 %v947
  %v1053 = vpop.f32.mrf.mxu0
  %v1054 = vadd.f32 %v1028, %v1053
  %1055 = vmatmul.f32.gmra.mxu0 %v951
  %v1056 = vpop.f32.mrf.mxu0
  %v1057 = vadd.f32 %v1031, %v1056
  %1058 = vdwg.mxu0
  %1059 = vmatpush.msra.mxu0 0.0
  %1060 = vmatpush.msra.mxu0 0.0
  %1061 = vmatpush.msra.mxu0 0.0
  %1062 = vmatpush.msra.mxu0 0.0
  %1063 = vmatpush.msra.mxu0 0.0
  %1064 = vmatpush.msra.mxu0 0.0
  %1065 = vmatpush.msra.mxu0 0.0
  %1066 = vmatpush.msra.mxu0 0.0
  %1067 = vmatpush.msra.mxu0 0.0
  %1068 = vmatpush.msra.mxu0 0.0
  %1069 = vmatpush.msra.mxu0 0.0
  %1070 = vmatpush.msra.mxu0 0.0
  %1071 = vmatpush.msra.mxu0 0.0
  %1072 = vmatpush.msra.mxu0 0.0
  %1073 = vmatpush.msra.mxu0 %v939
  %1074 = vmatpush.msra.mxu0 %v937
  %1075 = vmatmul.f32.gmra.mxu0 %v973
  %v1076 = vpop.f32.mrf.mxu0
  %v1077 = vadd.f32 %v1051, %v1076
  %1078 = vmatmul.f32.gmra.mxu0 %v976
  %v1079 = vpop.f32.mrf.mxu0
  %v1080 = vadd.f32 %v1054, %v1079
  %1081 = vmatmul.f32.gmra.mxu0 %v979
  %v1082 = vpop.f32.mrf.mxu0
  %v1083 = vadd.f32 %v1057, %v1082
  %1084 = vdwg.mxu0
  %1085 = vmatpush.msra.mxu0 %v604
  %1086 = vmatpush.msra.mxu0 %v602
  %1087 = vmatpush.msra.mxu0 %v588
  %1088 = vmatpush.msra.mxu0 %v586
  %1089 = vmatpush.msra.mxu0 %v572
  %1090 = vmatpush.msra.mxu0 %v570
  %1091 = vmatpush.msra.mxu0 %v548
  %1092 = vmatpush.msra.mxu0 %v546
  %1093 = vmatpush.msra.mxu0 %v524
  %1094 = vmatpush.msra.mxu0 %v522
  %1095 = vmatpush.msra.mxu0 %v500
  %1096 = vmatpush.msra.mxu0 %v498
  %1097 = vmatpush.msra.mxu0 %v476
  %1098 = vmatpush.msra.mxu0 %v474
  %1099 = vmatpush.msra.mxu0 %v452
  %1100 = vmatpush.msra.mxu0 %v450
  %1101 = vmatmul.f32.gmra.mxu0 %v941
  %v1102 = vpop.f32.mrf.mxu0
  %v1103 = vadd.f32 %v959, %v1102
  %1104 = vmatmul.f32.gmra.mxu0 %v945
  %v1105 = vpop.f32.mrf.mxu0
  %v1106 = vadd.f32 %v964, %v1105
  %1107 = vmatmul.f32.gmra.mxu0 %v949
  %v1108 = vpop.f32.mrf.mxu0
  %v1109 = vadd.f32 %v969, %v1108
  %1110 = vdwg.mxu0
  %1111 = vmatpush.msra.mxu0 %v748
  %1112 = vmatpush.msra.mxu0 %v746
  %1113 = vmatpush.msra.mxu0 %v724
  %1114 = vmatpush.msra.mxu0 %v722
  %1115 = vmatpush.msra.mxu0 %v700
  %1116 = vmatpush.msra.mxu0 %v698
  %1117 = vmatpush.msra.mxu0 %v422
  %1118 = vmatpush.msra.mxu0 %v419
  %1119 = vmatpush.msra.mxu0 %v684
  %1120 = vmatpush.msra.mxu0 %v682
  %1121 = vmatpush.msra.mxu0 %v668
  %1122 = vmatpush.msra.mxu0 %v666
  %1123 = vmatpush.msra.mxu0 %v644
  %1124 = vmatpush.msra.mxu0 %v642
  %1125 = vmatpush.msra.mxu0 %v620
  %1126 = vmatpush.msra.mxu0 %v618
  %1127 = vmatmul.f32.gmra.mxu0 %v942
  %v1128 = vpop.f32.mrf.mxu0
  %v1129 = vadd.f32 %v1103, %v1128
  %1130 = vmatmul.f32.gmra.mxu0 %v946
  %v1131 = vpop.f32.mrf.mxu0
  %v1132 = vadd.f32 %v1106, %v1131
  %1133 = vmatmul.f32.gmra.mxu0 %v950
  %v1134 = vpop.f32.mrf.mxu0
  %v1135 = vadd.f32 %v1109, %v1134
  %1136 = vdwg.mxu0
  %1137 = vmatpush.msra.mxu0 %v916
  %1138 = vmatpush.msra.mxu0 %v914
  %1139 = vmatpush.msra.mxu0 %v892
  %1140 = vmatpush.msra.mxu0 %v890
  %1141 = vmatpush.msra.mxu0 %v868
  %1142 = vmatpush.msra.mxu0 %v866
  %1143 = vmatpush.msra.mxu0 %v844
  %1144 = vmatpush.msra.mxu0 %v842
  %1145 = vmatpush.msra.mxu0 %v820
  %1146 = vmatpush.msra.mxu0 %v818
  %1147 = vmatpush.msra.mxu0 %v796
  %1148 = vmatpush.msra.mxu0 %v794
  %1149 = vmatpush.msra.mxu0 %v780
  %1150 = vmatpush.msra.mxu0 %v778
  %1151 = vmatpush.msra.mxu0 %v764
  %1152 = vmatpush.msra.mxu0 %v762
  %1153 = vmatmul.f32.gmra.mxu0 %v943
  %v1154 = vpop.f32.mrf.mxu0
  %v1155 = vadd.f32 %v1129, %v1154
  %1156 = vmatmul.f32.gmra.mxu0 %v947
  %v1157 = vpop.f32.mrf.mxu0
  %v1158 = vadd.f32 %v1132, %v1157
  %1159 = vmatmul.f32.gmra.mxu0 %v951
  %v1160 = vpop.f32.mrf.mxu0
  %v1161 = vadd.f32 %v1135, %v1160
  %1162 = vdwg.mxu0
  %1163 = vmatpush.msra.mxu0 0.0
  %1164 = vmatpush.msra.mxu0 0.0
  %1165 = vmatpush.msra.mxu0 0.0
  %1166 = vmatpush.msra.mxu0 0.0
  %1167 = vmatpush.msra.mxu0 0.0
  %1168 = vmatpush.msra.mxu0 0.0
  %1169 = vmatpush.msra.mxu0 0.0
  %1170 = vmatpush.msra.mxu0 0.0
  %1171 = vmatpush.msra.mxu0 0.0
  %1172 = vmatpush.msra.mxu0 0.0
  %1173 = vmatpush.msra.mxu0 0.0
  %1174 = vmatpush.msra.mxu0 0.0
  %1175 = vmatpush.msra.mxu0 0.0
  %1176 = vmatpush.msra.mxu0 0.0
  %1177 = vmatpush.msra.mxu0 %v940
  %1178 = vmatpush.msra.mxu0 %v938
  %1179 = vmatmul.f32.gmra.mxu0 %v973
  %v1180 = vpop.f32.mrf.mxu0
  %v1181 = vadd.f32 %v1155, %v1180
  %1182 = vmatmul.f32.gmra.mxu0 %v976
  %v1183 = vpop.f32.mrf.mxu0
  %v1184 = vadd.f32 %v1158, %v1183
  %1185 = vmatmul.f32.gmra.mxu0 %v979
  %v1186 = vpop.f32.mrf.mxu0
  %v1187 = vadd.f32 %v1161, %v1186
  %1188 = vdwg.mxu0
  %1189 = vrot.lane.b32.xlu0 %v381, 17
  %v1190 = vpop.permute.xlu0 %1189
  %1191 = vrot.lane.b32.xlu0 %v384, 17
  %v1192 = vpop.permute.xlu0 %1191
  %1193 = vrot.lane.b32.xlu0 %v425, 17
  %v1194 = vpop.permute.xlu0 %1193
  %1195 = vrot.lane.b32.xlu0 %v428, 17
  %v1196 = vpop.permute.xlu0 %1195
  %v1197 = vsel %vm48, %v1190, %v1194
  %v1198 = vsel %vm48, %v1192, %v1196
  %v1199 = vsel %vm48, %v1194, %v1190
  %v1200 = vsel %vm48, %v1196, %v1192
  %v1201 = vmul.f32 %v1199, %v54
  %v1202 = vmul.f32 %v1197, %v55
  %v1203 = vmul.f32 %v1200, %v54
  %v1204 = vmul.f32 %v1198, %v55
  %1205 = vrot.lane.b32.xlu0 %v381, 16
  %v1206 = vpop.permute.xlu0 %1205
  %1207 = vrot.lane.b32.xlu0 %v384, 16
  %v1208 = vpop.permute.xlu0 %1207
  %1209 = vrot.lane.b32.xlu0 %v425, 16
  %v1210 = vpop.permute.xlu0 %1209
  %1211 = vrot.lane.b32.xlu0 %v428, 16
  %v1212 = vpop.permute.xlu0 %1211
  %v1213 = vsel %vm69, %v1206, %v1210
  %v1214 = vsel %vm69, %v1208, %v1212
  %v1215 = vsel %vm69, %v1210, %v1206
  %v1216 = vsel %vm69, %v1212, %v1208
  %v1217 = vmul.f32 %v1215, %v75
  %v1218 = vmul.f32 %v1213, %v76
  %v1219 = vmul.f32 %v1216, %v75
  %v1220 = vmul.f32 %v1214, %v76
  %1221 = vrot.lane.b32.xlu0 %v381, 15
  %v1222 = vpop.permute.xlu0 %1221
  %1223 = vrot.lane.b32.xlu0 %v384, 15
  %v1224 = vpop.permute.xlu0 %1223
  %1225 = vrot.lane.b32.xlu0 %v425, 15
  %v1226 = vpop.permute.xlu0 %1225
  %1227 = vrot.lane.b32.xlu0 %v428, 15
  %v1228 = vpop.permute.xlu0 %1227
  %v1229 = vsel %vm90, %v1222, %v1226
  %v1230 = vsel %vm90, %v1224, %v1228
  %v1231 = vsel %vm90, %v1226, %v1222
  %v1232 = vsel %vm90, %v1228, %v1224
  %v1233 = vmul.f32 %v1231, %v96
  %v1234 = vmul.f32 %v1229, %v97
  %v1235 = vmul.f32 %v1232, %v96
  %v1236 = vmul.f32 %v1230, %v97
  %1237 = vrot.lane.b32.xlu0 %v381, 1
  %v1238 = vpop.permute.xlu0 %1237
  %1239 = vrot.lane.b32.xlu0 %v384, 1
  %v1240 = vpop.permute.xlu0 %1239
  %1241 = vrot.lane.b32.xlu0 %v425, 1
  %v1242 = vpop.permute.xlu0 %1241
  %1243 = vrot.lane.b32.xlu0 %v428, 1
  %v1244 = vpop.permute.xlu0 %1243
  %v1245 = vsel %vm111, %v1238, %v1242
  %v1246 = vsel %vm111, %v1240, %v1244
  %v1247 = vsel %vm111, %v1242, %v1238
  %v1248 = vsel %vm111, %v1244, %v1240
  %v1249 = vmul.f32 %v1247, %v117
  %v1250 = vmul.f32 %v1245, %v118
  %v1251 = vmul.f32 %v1248, %v117
  %v1252 = vmul.f32 %v1246, %v118
  %1253 = vrot.lane.b32.xlu0 %v381, 127
  %v1254 = vpop.permute.xlu0 %1253
  %1255 = vrot.lane.b32.xlu0 %v384, 127
  %v1256 = vpop.permute.xlu0 %1255
  %1257 = vrot.lane.b32.xlu0 %v425, 127
  %v1258 = vpop.permute.xlu0 %1257
  %1259 = vrot.lane.b32.xlu0 %v428, 127
  %v1260 = vpop.permute.xlu0 %1259
  %v1261 = vsel %vm132, %v1254, %v1258
  %v1262 = vsel %vm132, %v1256, %v1260
  %v1263 = vsel %vm132, %v1258, %v1254
  %v1264 = vsel %vm132, %v1260, %v1256
  %v1265 = vmul.f32 %v1261, %v138
  %v1266 = vmul.f32 %v1263, %v139
  %v1267 = vmul.f32 %v1262, %v138
  %v1268 = vmul.f32 %v1264, %v139
  %1269 = vrot.lane.b32.xlu0 %v381, 113
  %v1270 = vpop.permute.xlu0 %1269
  %1271 = vrot.lane.b32.xlu0 %v384, 113
  %v1272 = vpop.permute.xlu0 %1271
  %1273 = vrot.lane.b32.xlu0 %v425, 113
  %v1274 = vpop.permute.xlu0 %1273
  %1275 = vrot.lane.b32.xlu0 %v428, 113
  %v1276 = vpop.permute.xlu0 %1275
  %v1277 = vsel %vm153, %v1270, %v1274
  %v1278 = vsel %vm153, %v1272, %v1276
  %v1279 = vsel %vm153, %v1274, %v1270
  %v1280 = vsel %vm153, %v1276, %v1272
  %v1281 = vmul.f32 %v1277, %v159
  %v1282 = vmul.f32 %v1279, %v160
  %v1283 = vmul.f32 %v1278, %v159
  %v1284 = vmul.f32 %v1280, %v160
  %1285 = vrot.lane.b32.xlu0 %v381, 112
  %v1286 = vpop.permute.xlu0 %1285
  %1287 = vrot.lane.b32.xlu0 %v384, 112
  %v1288 = vpop.permute.xlu0 %1287
  %1289 = vrot.lane.b32.xlu0 %v425, 112
  %v1290 = vpop.permute.xlu0 %1289
  %1291 = vrot.lane.b32.xlu0 %v428, 112
  %v1292 = vpop.permute.xlu0 %1291
  %v1293 = vsel %vm174, %v1286, %v1290
  %v1294 = vsel %vm174, %v1288, %v1292
  %v1295 = vsel %vm174, %v1290, %v1286
  %v1296 = vsel %vm174, %v1292, %v1288
  %v1297 = vmul.f32 %v1293, %v180
  %v1298 = vmul.f32 %v1295, %v181
  %v1299 = vmul.f32 %v1294, %v180
  %v1300 = vmul.f32 %v1296, %v181
  %1301 = vrot.lane.b32.xlu0 %v381, 111
  %v1302 = vpop.permute.xlu0 %1301
  %1303 = vrot.lane.b32.xlu0 %v384, 111
  %v1304 = vpop.permute.xlu0 %1303
  %1305 = vrot.lane.b32.xlu0 %v425, 111
  %v1306 = vpop.permute.xlu0 %1305
  %1307 = vrot.lane.b32.xlu0 %v428, 111
  %v1308 = vpop.permute.xlu0 %1307
  %v1309 = vsel %vm195, %v1302, %v1306
  %v1310 = vsel %vm195, %v1304, %v1308
  %v1311 = vsel %vm195, %v1306, %v1302
  %v1312 = vsel %vm195, %v1308, %v1304
  %v1313 = vmul.f32 %v1309, %v201
  %v1314 = vmul.f32 %v1311, %v202
  %v1315 = vmul.f32 %v1310, %v201
  %v1316 = vmul.f32 %v1312, %v202
  %v1317 = vld [vmem:[%s6] sm:$0xff]
  %v1318 = vld [vmem:[%s6 + $0x8] sm:$0xff]
  %v1319 = vld [vmem:[%s6 + $0x10] sm:$0xff]
  %v1320 = vld [vmem:[%s6 + $0x18] sm:$0xff]
  %v1321 = vld [vmem:[%s6 + $0x20] sm:$0xff]
  %v1322 = vld [vmem:[%s6 + $0x28] sm:$0xff]
  %v1323 = vld [vmem:[%s7] sm:$0xff]
  %v1324 = vld [vmem:[%s7 + $0x8] sm:$0xff]
  %v1325 = vld [vmem:[%s7 + $0x10] sm:$0xff]
  %1327 = vset.pattern.permute.xlu0 0
  %1328 = vperm.xlu0 %1327, %v1323
  %v1329 = vpop.permute.xlu0 %1328
  %1332 = vset.pattern.permute.xlu0 0
  %1333 = vperm.xlu0 %1332, %v1324
  %v1334 = vpop.permute.xlu0 %1333
  %1337 = vset.pattern.permute.xlu0 0
  %1338 = vperm.xlu0 %1337, %v1325
  %v1339 = vpop.permute.xlu0 %1338
  %v1342 = vsel %vm971, %v1318, 0
  %v1345 = vsel %vm971, %v1320, 0
  %v1348 = vsel %vm971, %v1322, 0
  %1350 = vmatpush.msra.mxu0 %v1299
  %1351 = vmatpush.msra.mxu0 %v1297
  %1352 = vmatpush.msra.mxu0 %v1283
  %1353 = vmatpush.msra.mxu0 %v1281
  %1354 = vmatpush.msra.mxu0 %v1267
  %1355 = vmatpush.msra.mxu0 %v1265
  %1356 = vmatpush.msra.mxu0 %v384
  %1357 = vmatpush.msra.mxu0 %v381
  %1358 = vmatpush.msra.mxu0 %v1251
  %1359 = vmatpush.msra.mxu0 %v1249
  %1360 = vmatpush.msra.mxu0 %v1235
  %1361 = vmatpush.msra.mxu0 %v1233
  %1362 = vmatpush.msra.mxu0 %v1219
  %1363 = vmatpush.msra.mxu0 %v1217
  %1364 = vmatpush.msra.mxu0 %v1203
  %1365 = vmatpush.msra.mxu0 %v1201
  %1366 = vmatmul.f32.gmra.mxu0 %v1317
  %v1367 = vpop.f32.mrf.mxu0
  %v1368 = vadd.f32 %v1329, %v1367
  %1369 = vmatmul.f32.gmra.mxu0 %v1319
  %v1370 = vpop.f32.mrf.mxu0
  %v1371 = vadd.f32 %v1334, %v1370
  %1372 = vmatmul.f32.gmra.mxu0 %v1321
  %v1373 = vpop.f32.mrf.mxu0
  %v1374 = vadd.f32 %v1339, %v1373
  %1375 = vdwg.mxu0
  %1376 = vmatpush.msra.mxu0 0.0
  %1377 = vmatpush.msra.mxu0 0.0
  %1378 = vmatpush.msra.mxu0 0.0
  %1379 = vmatpush.msra.mxu0 0.0
  %1380 = vmatpush.msra.mxu0 0.0
  %1381 = vmatpush.msra.mxu0 0.0
  %1382 = vmatpush.msra.mxu0 0.0
  %1383 = vmatpush.msra.mxu0 0.0
  %1384 = vmatpush.msra.mxu0 0.0
  %1385 = vmatpush.msra.mxu0 0.0
  %1386 = vmatpush.msra.mxu0 0.0
  %1387 = vmatpush.msra.mxu0 0.0
  %1388 = vmatpush.msra.mxu0 0.0
  %1389 = vmatpush.msra.mxu0 0.0
  %1390 = vmatpush.msra.mxu0 %v1315
  %1391 = vmatpush.msra.mxu0 %v1313
  %1392 = vmatmul.f32.gmra.mxu0 %v1342
  %v1393 = vpop.f32.mrf.mxu0
  %v1394 = vadd.f32 %v1368, %v1393
  %1395 = vmatmul.f32.gmra.mxu0 %v1345
  %v1396 = vpop.f32.mrf.mxu0
  %v1397 = vadd.f32 %v1371, %v1396
  %1398 = vmatmul.f32.gmra.mxu0 %v1348
  %v1399 = vpop.f32.mrf.mxu0
  %v1400 = vadd.f32 %v1374, %v1399
  %1401 = vdwg.mxu0
  %1402 = vmatpush.msra.mxu0 %v1300
  %1403 = vmatpush.msra.mxu0 %v1298
  %1404 = vmatpush.msra.mxu0 %v1284
  %1405 = vmatpush.msra.mxu0 %v1282
  %1406 = vmatpush.msra.mxu0 %v1268
  %1407 = vmatpush.msra.mxu0 %v1266
  %1408 = vmatpush.msra.mxu0 %v428
  %1409 = vmatpush.msra.mxu0 %v425
  %1410 = vmatpush.msra.mxu0 %v1252
  %1411 = vmatpush.msra.mxu0 %v1250
  %1412 = vmatpush.msra.mxu0 %v1236
  %1413 = vmatpush.msra.mxu0 %v1234
  %1414 = vmatpush.msra.mxu0 %v1220
  %1415 = vmatpush.msra.mxu0 %v1218
  %1416 = vmatpush.msra.mxu0 %v1204
  %1417 = vmatpush.msra.mxu0 %v1202
  %1418 = vmatmul.f32.gmra.mxu0 %v1317
  %v1419 = vpop.f32.mrf.mxu0
  %v1420 = vadd.f32 %v1329, %v1419
  %1421 = vmatmul.f32.gmra.mxu0 %v1319
  %v1422 = vpop.f32.mrf.mxu0
  %v1423 = vadd.f32 %v1334, %v1422
  %1424 = vmatmul.f32.gmra.mxu0 %v1321
  %v1425 = vpop.f32.mrf.mxu0
  %v1426 = vadd.f32 %v1339, %v1425
  %1427 = vdwg.mxu0
  %1428 = vmatpush.msra.mxu0 0.0
  %1429 = vmatpush.msra.mxu0 0.0
  %1430 = vmatpush.msra.mxu0 0.0
  %1431 = vmatpush.msra.mxu0 0.0
  %1432 = vmatpush.msra.mxu0 0.0
  %1433 = vmatpush.msra.mxu0 0.0
  %1434 = vmatpush.msra.mxu0 0.0
  %1435 = vmatpush.msra.mxu0 0.0
  %1436 = vmatpush.msra.mxu0 0.0
  %1437 = vmatpush.msra.mxu0 0.0
  %1438 = vmatpush.msra.mxu0 0.0
  %1439 = vmatpush.msra.mxu0 0.0
  %1440 = vmatpush.msra.mxu0 0.0
  %1441 = vmatpush.msra.mxu0 0.0
  %1442 = vmatpush.msra.mxu0 %v1316
  %1443 = vmatpush.msra.mxu0 %v1314
  %1444 = vmatmul.f32.gmra.mxu0 %v1342
  %v1445 = vpop.f32.mrf.mxu0
  %v1446 = vadd.f32 %v1420, %v1445
  %1447 = vmatmul.f32.gmra.mxu0 %v1345
  %v1448 = vpop.f32.mrf.mxu0
  %v1449 = vadd.f32 %v1423, %v1448
  %1450 = vmatmul.f32.gmra.mxu0 %v1348
  %v1451 = vpop.f32.mrf.mxu0
  %v1452 = vadd.f32 %v1426, %v1451
  %1453 = vdwg.mxu0
  %1454 = vrot.lane.b32.xlu0 %v1394, 17
  %v1455 = vpop.permute.xlu0 %1454
  %1456 = vrot.lane.b32.xlu0 %v1397, 17
  %v1457 = vpop.permute.xlu0 %1456
  %1458 = vrot.lane.b32.xlu0 %v1400, 17
  %v1459 = vpop.permute.xlu0 %1458
  %1460 = vrot.lane.b32.xlu0 %v1446, 17
  %v1461 = vpop.permute.xlu0 %1460
  %1462 = vrot.lane.b32.xlu0 %v1449, 17
  %v1463 = vpop.permute.xlu0 %1462
  %1464 = vrot.lane.b32.xlu0 %v1452, 17
  %v1465 = vpop.permute.xlu0 %1464
  %v1466 = vsel %vm48, %v1455, %v1461
  %v1467 = vsel %vm48, %v1457, %v1463
  %v1468 = vsel %vm48, %v1459, %v1465
  %v1469 = vsel %vm48, %v1461, %v1455
  %v1470 = vsel %vm48, %v1463, %v1457
  %v1471 = vsel %vm48, %v1465, %v1459
  %v1472 = vmul.f32 %v1469, %v54
  %v1473 = vmul.f32 %v1466, %v55
  %v1474 = vmul.f32 %v1470, %v54
  %v1475 = vmul.f32 %v1467, %v55
  %v1476 = vmul.f32 %v1471, %v54
  %v1477 = vmul.f32 %v1468, %v55
  %1478 = vrot.lane.b32.xlu0 %v1394, 16
  %v1479 = vpop.permute.xlu0 %1478
  %1480 = vrot.lane.b32.xlu0 %v1397, 16
  %v1481 = vpop.permute.xlu0 %1480
  %1482 = vrot.lane.b32.xlu0 %v1400, 16
  %v1483 = vpop.permute.xlu0 %1482
  %1484 = vrot.lane.b32.xlu0 %v1446, 16
  %v1485 = vpop.permute.xlu0 %1484
  %1486 = vrot.lane.b32.xlu0 %v1449, 16
  %v1487 = vpop.permute.xlu0 %1486
  %1488 = vrot.lane.b32.xlu0 %v1452, 16
  %v1489 = vpop.permute.xlu0 %1488
  %v1490 = vsel %vm69, %v1479, %v1485
  %v1491 = vsel %vm69, %v1481, %v1487
  %v1492 = vsel %vm69, %v1483, %v1489
  %v1493 = vsel %vm69, %v1485, %v1479
  %v1494 = vsel %vm69, %v1487, %v1481
  %v1495 = vsel %vm69, %v1489, %v1483
  %v1496 = vmul.f32 %v1493, %v75
  %v1497 = vmul.f32 %v1490, %v76
  %v1498 = vmul.f32 %v1494, %v75
  %v1499 = vmul.f32 %v1491, %v76
  %v1500 = vmul.f32 %v1495, %v75
  %v1501 = vmul.f32 %v1492, %v76
  %1502 = vrot.lane.b32.xlu0 %v1394, 15
  %v1503 = vpop.permute.xlu0 %1502
  %1504 = vrot.lane.b32.xlu0 %v1397, 15
  %v1505 = vpop.permute.xlu0 %1504
  %1506 = vrot.lane.b32.xlu0 %v1400, 15
  %v1507 = vpop.permute.xlu0 %1506
  %1508 = vrot.lane.b32.xlu0 %v1446, 15
  %v1509 = vpop.permute.xlu0 %1508
  %1510 = vrot.lane.b32.xlu0 %v1449, 15
  %v1511 = vpop.permute.xlu0 %1510
  %1512 = vrot.lane.b32.xlu0 %v1452, 15
  %v1513 = vpop.permute.xlu0 %1512
  %v1514 = vsel %vm90, %v1503, %v1509
  %v1515 = vsel %vm90, %v1505, %v1511
  %v1516 = vsel %vm90, %v1507, %v1513
  %v1517 = vsel %vm90, %v1509, %v1503
  %v1518 = vsel %vm90, %v1511, %v1505
  %v1519 = vsel %vm90, %v1513, %v1507
  %v1520 = vmul.f32 %v1517, %v96
  %v1521 = vmul.f32 %v1514, %v97
  %v1522 = vmul.f32 %v1518, %v96
  %v1523 = vmul.f32 %v1515, %v97
  %v1524 = vmul.f32 %v1519, %v96
  %v1525 = vmul.f32 %v1516, %v97
  %1526 = vrot.lane.b32.xlu0 %v1394, 1
  %v1527 = vpop.permute.xlu0 %1526
  %1528 = vrot.lane.b32.xlu0 %v1397, 1
  %v1529 = vpop.permute.xlu0 %1528
  %1530 = vrot.lane.b32.xlu0 %v1400, 1
  %v1531 = vpop.permute.xlu0 %1530
  %1532 = vrot.lane.b32.xlu0 %v1446, 1
  %v1533 = vpop.permute.xlu0 %1532
  %1534 = vrot.lane.b32.xlu0 %v1449, 1
  %v1535 = vpop.permute.xlu0 %1534
  %1536 = vrot.lane.b32.xlu0 %v1452, 1
  %v1537 = vpop.permute.xlu0 %1536
  %v1538 = vsel %vm111, %v1527, %v1533
  %v1539 = vsel %vm111, %v1529, %v1535
  %v1540 = vsel %vm111, %v1531, %v1537
  %v1541 = vsel %vm111, %v1533, %v1527
  %v1542 = vsel %vm111, %v1535, %v1529
  %v1543 = vsel %vm111, %v1537, %v1531
  %v1544 = vmul.f32 %v1541, %v117
  %v1545 = vmul.f32 %v1538, %v118
  %v1546 = vmul.f32 %v1542, %v117
  %v1547 = vmul.f32 %v1539, %v118
  %v1548 = vmul.f32 %v1543, %v117
  %v1549 = vmul.f32 %v1540, %v118
  %1550 = vrot.lane.b32.xlu0 %v1394, 127
  %v1551 = vpop.permute.xlu0 %1550
  %1552 = vrot.lane.b32.xlu0 %v1397, 127
  %v1553 = vpop.permute.xlu0 %1552
  %1554 = vrot.lane.b32.xlu0 %v1400, 127
  %v1555 = vpop.permute.xlu0 %1554
  %1556 = vrot.lane.b32.xlu0 %v1446, 127
  %v1557 = vpop.permute.xlu0 %1556
  %1558 = vrot.lane.b32.xlu0 %v1449, 127
  %v1559 = vpop.permute.xlu0 %1558
  %1560 = vrot.lane.b32.xlu0 %v1452, 127
  %v1561 = vpop.permute.xlu0 %1560
  %v1562 = vsel %vm132, %v1551, %v1557
  %v1563 = vsel %vm132, %v1553, %v1559
  %v1564 = vsel %vm132, %v1555, %v1561
  %v1565 = vsel %vm132, %v1557, %v1551
  %v1566 = vsel %vm132, %v1559, %v1553
  %v1567 = vsel %vm132, %v1561, %v1555
  %v1568 = vmul.f32 %v1562, %v138
  %v1569 = vmul.f32 %v1565, %v139
  %v1570 = vmul.f32 %v1563, %v138
  %v1571 = vmul.f32 %v1566, %v139
  %v1572 = vmul.f32 %v1564, %v138
  %v1573 = vmul.f32 %v1567, %v139
  %1574 = vrot.lane.b32.xlu0 %v1394, 113
  %v1575 = vpop.permute.xlu0 %1574
  %1576 = vrot.lane.b32.xlu0 %v1397, 113
  %v1577 = vpop.permute.xlu0 %1576
  %1578 = vrot.lane.b32.xlu0 %v1400, 113
  %v1579 = vpop.permute.xlu0 %1578
  %1580 = vrot.lane.b32.xlu0 %v1446, 113
  %v1581 = vpop.permute.xlu0 %1580
  %1582 = vrot.lane.b32.xlu0 %v1449, 113
  %v1583 = vpop.permute.xlu0 %1582
  %1584 = vrot.lane.b32.xlu0 %v1452, 113
  %v1585 = vpop.permute.xlu0 %1584
  %v1586 = vsel %vm153, %v1575, %v1581
  %v1587 = vsel %vm153, %v1577, %v1583
  %v1588 = vsel %vm153, %v1579, %v1585
  %v1589 = vsel %vm153, %v1581, %v1575
  %v1590 = vsel %vm153, %v1583, %v1577
  %v1591 = vsel %vm153, %v1585, %v1579
  %v1592 = vmul.f32 %v1586, %v159
  %v1593 = vmul.f32 %v1589, %v160
  %v1594 = vmul.f32 %v1587, %v159
  %v1595 = vmul.f32 %v1590, %v160
  %v1596 = vmul.f32 %v1588, %v159
  %v1597 = vmul.f32 %v1591, %v160
  %1598 = vrot.lane.b32.xlu0 %v1394, 112
  %v1599 = vpop.permute.xlu0 %1598
  %1600 = vrot.lane.b32.xlu0 %v1397, 112
  %v1601 = vpop.permute.xlu0 %1600
  %1602 = vrot.lane.b32.xlu0 %v1400, 112
  %v1603 = vpop.permute.xlu0 %1602
  %1604 = vrot.lane.b32.xlu0 %v1446, 112
  %v1605 = vpop.permute.xlu0 %1604
  %1606 = vrot.lane.b32.xlu0 %v1449, 112
  %v1607 = vpop.permute.xlu0 %1606
  %1608 = vrot.lane.b32.xlu0 %v1452, 112
  %v1609 = vpop.permute.xlu0 %1608
  %v1610 = vsel %vm174, %v1599, %v1605
  %v1611 = vsel %vm174, %v1601, %v1607
  %v1612 = vsel %vm174, %v1603, %v1609
  %v1613 = vsel %vm174, %v1605, %v1599
  %v1614 = vsel %vm174, %v1607, %v1601
  %v1615 = vsel %vm174, %v1609, %v1603
  %v1616 = vmul.f32 %v1610, %v180
  %v1617 = vmul.f32 %v1613, %v181
  %v1618 = vmul.f32 %v1611, %v180
  %v1619 = vmul.f32 %v1614, %v181
  %v1620 = vmul.f32 %v1612, %v180
  %v1621 = vmul.f32 %v1615, %v181
  %1622 = vrot.lane.b32.xlu0 %v1394, 111
  %v1623 = vpop.permute.xlu0 %1622
  %1624 = vrot.lane.b32.xlu0 %v1397, 111
  %v1625 = vpop.permute.xlu0 %1624
  %1626 = vrot.lane.b32.xlu0 %v1400, 111
  %v1627 = vpop.permute.xlu0 %1626
  %1628 = vrot.lane.b32.xlu0 %v1446, 111
  %v1629 = vpop.permute.xlu0 %1628
  %1630 = vrot.lane.b32.xlu0 %v1449, 111
  %v1631 = vpop.permute.xlu0 %1630
  %1632 = vrot.lane.b32.xlu0 %v1452, 111
  %v1633 = vpop.permute.xlu0 %1632
  %v1634 = vsel %vm195, %v1623, %v1629
  %v1635 = vsel %vm195, %v1625, %v1631
  %v1636 = vsel %vm195, %v1627, %v1633
  %v1637 = vsel %vm195, %v1629, %v1623
  %v1638 = vsel %vm195, %v1631, %v1625
  %v1639 = vsel %vm195, %v1633, %v1627
  %v1640 = vmul.f32 %v1634, %v201
  %v1641 = vmul.f32 %v1637, %v202
  %v1642 = vmul.f32 %v1635, %v201
  %v1643 = vmul.f32 %v1638, %v202
  %v1644 = vmul.f32 %v1636, %v201
  %v1645 = vmul.f32 %v1639, %v202
  %v1646 = vld [vmem:[%s8] sm:$0xff]
  %v1647 = vld [vmem:[%s8 + $0x8] sm:$0xff]
  %v1648 = vld [vmem:[%s8 + $0x10] sm:$0xff]
  %v1649 = vld [vmem:[%s8 + $0x18] sm:$0xff]
  %v1650 = vld [vmem:[%s8 + $0x20] sm:$0xff]
  %v1651 = vld [vmem:[%s8 + $0x28] sm:$0xff]
  %v1652 = vld [vmem:[%s9] sm:$0xff]
  %v1653 = vld [vmem:[%s9 + $0x8] sm:$0xff]
  %v1654 = vld [vmem:[%s9 + $0x10] sm:$0xff]
  %1656 = vset.pattern.permute.xlu0 0
  %1657 = vperm.xlu0 %1656, %v1652
  %v1658 = vpop.permute.xlu0 %1657
  %1661 = vset.pattern.permute.xlu0 0
  %1662 = vperm.xlu0 %1661, %v1653
  %v1663 = vpop.permute.xlu0 %1662
  %1666 = vset.pattern.permute.xlu0 0
  %1667 = vperm.xlu0 %1666, %v1654
  %v1668 = vpop.permute.xlu0 %1667
  %vm1670 = vcmask 719872
  %v1672 = vsel %vm1670, %v1647, 0
  %v1675 = vsel %vm1670, %v1649, 0
  %v1678 = vsel %vm1670, %v1651, 0
  %1680 = vmatpush.msra.mxu0 %v1568
  %1681 = vmatpush.msra.mxu0 %v1400
  %1682 = vmatpush.msra.mxu0 %v1397
  %1683 = vmatpush.msra.mxu0 %v1394
  %1684 = vmatpush.msra.mxu0 %v1548
  %1685 = vmatpush.msra.mxu0 %v1546
  %1686 = vmatpush.msra.mxu0 %v1544
  %1687 = vmatpush.msra.mxu0 %v1524
  %1688 = vmatpush.msra.mxu0 %v1522
  %1689 = vmatpush.msra.mxu0 %v1520
  %1690 = vmatpush.msra.mxu0 %v1500
  %1691 = vmatpush.msra.mxu0 %v1498
  %1692 = vmatpush.msra.mxu0 %v1496
  %1693 = vmatpush.msra.mxu0 %v1476
  %1694 = vmatpush.msra.mxu0 %v1474
  %1695 = vmatpush.msra.mxu0 %v1472
  %1696 = vmatmul.f32.gmra.mxu0 %v1646
  %v1697 = vpop.f32.mrf.mxu0
  %v1698 = vadd.f32 %v1658, %v1697
  %1699 = vmatmul.f32.gmra.mxu0 %v1648
  %v1700 = vpop.f32.mrf.mxu0
  %v1701 = vadd.f32 %v1663, %v1700
  %1702 = vmatmul.f32.gmra.mxu0 %v1650
  %v1703 = vpop.f32.mrf.mxu0
  %v1704 = vadd.f32 %v1668, %v1703
  %1705 = vdwg.mxu0
  %1706 = vmatpush.msra.mxu0 0.0
  %1707 = vmatpush.msra.mxu0 0.0
  %1708 = vmatpush.msra.mxu0 0.0
  %1709 = vmatpush.msra.mxu0 0.0
  %1710 = vmatpush.msra.mxu0 0.0
  %1711 = vmatpush.msra.mxu0 %v1644
  %1712 = vmatpush.msra.mxu0 %v1642
  %1713 = vmatpush.msra.mxu0 %v1640
  %1714 = vmatpush.msra.mxu0 %v1620
  %1715 = vmatpush.msra.mxu0 %v1618
  %1716 = vmatpush.msra.mxu0 %v1616
  %1717 = vmatpush.msra.mxu0 %v1596
  %1718 = vmatpush.msra.mxu0 %v1594
  %1719 = vmatpush.msra.mxu0 %v1592
  %1720 = vmatpush.msra.mxu0 %v1572
  %1721 = vmatpush.msra.mxu0 %v1570
  %1722 = vmatmul.f32.gmra.mxu0 %v1672
  %v1723 = vpop.f32.mrf.mxu0
  %v1724 = vadd.f32 %v1698, %v1723
  %1725 = vmatmul.f32.gmra.mxu0 %v1675
  %v1726 = vpop.f32.mrf.mxu0
  %v1727 = vadd.f32 %v1701, %v1726
  %1728 = vmatmul.f32.gmra.mxu0 %v1678
  %v1729 = vpop.f32.mrf.mxu0
  %v1730 = vadd.f32 %v1704, %v1729
  %1731 = vdwg.mxu0
  %1732 = vmatpush.msra.mxu0 %v1569
  %1733 = vmatpush.msra.mxu0 %v1452
  %1734 = vmatpush.msra.mxu0 %v1449
  %1735 = vmatpush.msra.mxu0 %v1446
  %1736 = vmatpush.msra.mxu0 %v1549
  %1737 = vmatpush.msra.mxu0 %v1547
  %1738 = vmatpush.msra.mxu0 %v1545
  %1739 = vmatpush.msra.mxu0 %v1525
  %1740 = vmatpush.msra.mxu0 %v1523
  %1741 = vmatpush.msra.mxu0 %v1521
  %1742 = vmatpush.msra.mxu0 %v1501
  %1743 = vmatpush.msra.mxu0 %v1499
  %1744 = vmatpush.msra.mxu0 %v1497
  %1745 = vmatpush.msra.mxu0 %v1477
  %1746 = vmatpush.msra.mxu0 %v1475
  %1747 = vmatpush.msra.mxu0 %v1473
  %1748 = vmatmul.f32.gmra.mxu0 %v1646
  %v1749 = vpop.f32.mrf.mxu0
  %v1750 = vadd.f32 %v1658, %v1749
  %1751 = vmatmul.f32.gmra.mxu0 %v1648
  %v1752 = vpop.f32.mrf.mxu0
  %v1753 = vadd.f32 %v1663, %v1752
  %1754 = vmatmul.f32.gmra.mxu0 %v1650
  %v1755 = vpop.f32.mrf.mxu0
  %v1756 = vadd.f32 %v1668, %v1755
  %1757 = vdwg.mxu0
  %1758 = vmatpush.msra.mxu0 0.0
  %1759 = vmatpush.msra.mxu0 0.0
  %1760 = vmatpush.msra.mxu0 0.0
  %1761 = vmatpush.msra.mxu0 0.0
  %1762 = vmatpush.msra.mxu0 0.0
  %1763 = vmatpush.msra.mxu0 %v1645
  %1764 = vmatpush.msra.mxu0 %v1643
  %1765 = vmatpush.msra.mxu0 %v1641
  %1766 = vmatpush.msra.mxu0 %v1621
  %1767 = vmatpush.msra.mxu0 %v1619
  %1768 = vmatpush.msra.mxu0 %v1617
  %1769 = vmatpush.msra.mxu0 %v1597
  %1770 = vmatpush.msra.mxu0 %v1595
  %1771 = vmatpush.msra.mxu0 %v1593
  %1772 = vmatpush.msra.mxu0 %v1573
  %1773 = vmatpush.msra.mxu0 %v1571
  %1774 = vmatmul.f32.gmra.mxu0 %v1672
  %v1775 = vpop.f32.mrf.mxu0
  %v1776 = vadd.f32 %v1750, %v1775
  %1777 = vmatmul.f32.gmra.mxu0 %v1675
  %v1778 = vpop.f32.mrf.mxu0
  %v1779 = vadd.f32 %v1753, %v1778
  %1780 = vmatmul.f32.gmra.mxu0 %v1678
  %v1781 = vpop.f32.mrf.mxu0
  %v1782 = vadd.f32 %v1756, %v1781
  %1783 = vdwg.mxu0
  %1784 = vst [vmem:[%s10] sm:$0xff] %v360
  %1785 = vst [vmem:[%s10 + $0x8] sm:$0xff] %v404
  %1786 = vst [vmem:[%s10 + $0x10] sm:$0xff] %v363
  %1787 = vst [vmem:[%s10 + $0x18] sm:$0xff] %v407
  %1788 = vst [vmem:[%s10 + $0x20] sm:$0xff] %v366
  %1789 = vst [vmem:[%s10 + $0x28] sm:$0xff] %v410
  %1790 = vst [vmem:[%s10 + $0x30] sm:$0xff] %v369
  %1791 = vst [vmem:[%s10 + $0x38] sm:$0xff] %v413
  %1792 = vst [vmem:[%s10 + $0x40] sm:$0xff] %v372
  %1793 = vst [vmem:[%s10 + $0x48] sm:$0xff] %v416
  %1794 = vst [vmem:[%s10 + $0x50] sm:$0xff] %v1077
  %1795 = vst [vmem:[%s10 + $0x58] sm:$0xff] %v1181
  %1796 = vst [vmem:[%s10 + $0x60] sm:$0xff] %v1080
  %1797 = vst [vmem:[%s10 + $0x68] sm:$0xff] %v1184
  %1798 = vst [vmem:[%s10 + $0x70] sm:$0xff] %v1083
  %1799 = vst [vmem:[%s10 + $0x78] sm:$0xff] %v1187
  %1800 = vst [vmem:[%s10 + $0x80] sm:$0xff] %v1724
  %1801 = vst [vmem:[%s10 + $0x88] sm:$0xff] %v1776
  %1802 = vst [vmem:[%s10 + $0x90] sm:$0xff] %v1727
  %1803 = vst [vmem:[%s10 + $0x98] sm:$0xff] %v1779
  %1804 = vst [vmem:[%s10 + $0xa0] sm:$0xff] %v1730
  %1805 = vst [vmem:[%s10 + $0xa8] sm:$0xff] %v1782
  %s1806 = scalar_lea.vmem %s0, 8
  %v1807 = vld [vmem:[%s1806] sm:$0xff]
  %1809 = vst [vmem:[#allocation1] ss:$2 sm:$0xff] %v1807
  %v1810 = vld.sshfl [vmem:[#allocation1] sm:$0xff pattern:$0x75316420]
  %v1811 = vld.sshfl [vmem:[#allocation1 + $0x8] sm:$0xff pattern:$0x75316420]
  %1814 = vrot.lane.b32.xlu0 %v1810, 17
  %v1815 = vpop.permute.xlu0 %1814
  %1816 = vrot.lane.b32.xlu0 %v1811, 17
  %v1817 = vpop.permute.xlu0 %1816
  %v1818 = vsel %vm48, %v1815, %v1817
  %v1819 = vsel %vm48, %v1817, %v1815
  %v1820 = vld [vmem:[%s51] ss:$8 sm:$0x3]
  %v1822 = vperm.slane %v1820, 0
  %v1823 = vperm.slane %v1820, 1
  %v1826 = vmul.f32 %v1819, %v1822
  %v1827 = vmul.f32 %v1818, %v1823
  %1828 = vst [vmem:[#allocation1] ss:$2 sm:$0xff] %v1807
  %v1829 = vld.sshfl [vmem:[#allocation1] sm:$0xff pattern:$0x75316420]
  %v1830 = vld.sshfl [vmem:[#allocation1 + $0x8] sm:$0xff pattern:$0x75316420]
  %1833 = vrot.lane.b32.xlu0 %v1829, 16
  %v1834 = vpop.permute.xlu0 %1833
  %1835 = vrot.lane.b32.xlu0 %v1830, 16
  %v1836 = vpop.permute.xlu0 %1835
  %v1837 = vsel %vm69, %v1834, %v1836
  %v1838 = vsel %vm69, %v1836, %v1834
  %v1839 = vld [vmem:[%s72] ss:$8 sm:$0x3]
  %v1841 = vperm.slane %v1839, 0
  %v1842 = vperm.slane %v1839, 1
  %v1845 = vmul.f32 %v1838, %v1841
  %v1846 = vmul.f32 %v1837, %v1842
  %1847 = vst [vmem:[#allocation1] ss:$2 sm:$0xff] %v1807
  %v1848 = vld.sshfl [vmem:[#allocation1] sm:$0xff pattern:$0x75316420]
  %v1849 = vld.sshfl [vmem:[#allocation1 + $0x8] sm:$0xff pattern:$0x75316420]
  %1852 = vrot.lane.b32.xlu0 %v1848, 15
  %v1853 = vpop.permute.xlu0 %1852
  %1854 = vrot.lane.b32.xlu0 %v1849, 15
  %v1855 = vpop.permute.xlu0 %1854
  %v1856 = vsel %vm90, %v1853, %v1855
  %v1857 = vsel %vm90, %v1855, %v1853
  %v1858 = vld [vmem:[%s93] ss:$8 sm:$0x3]
  %v1860 = vperm.slane %v1858, 0
  %v1861 = vperm.slane %v1858, 1
  %v1864 = vmul.f32 %v1857, %v1860
  %v1865 = vmul.f32 %v1856, %v1861
  %1866 = vst [vmem:[#allocation1] ss:$2 sm:$0xff] %v1807
  %v1867 = vld.sshfl [vmem:[#allocation1] sm:$0xff pattern:$0x75316420]
  %v1868 = vld.sshfl [vmem:[#allocation1 + $0x8] sm:$0xff pattern:$0x75316420]
  %1871 = vrot.lane.b32.xlu0 %v1867, 1
  %v1872 = vpop.permute.xlu0 %1871
  %1873 = vrot.lane.b32.xlu0 %v1868, 1
  %v1874 = vpop.permute.xlu0 %1873
  %v1875 = vsel %vm111, %v1872, %v1874
  %v1876 = vsel %vm111, %v1874, %v1872
  %v1877 = vld [vmem:[%s114] ss:$8 sm:$0x3]
  %v1879 = vperm.slane %v1877, 0
  %v1880 = vperm.slane %v1877, 1
  %v1883 = vmul.f32 %v1876, %v1879
  %v1884 = vmul.f32 %v1875, %v1880
  %1885 = vst [vmem:[#allocation1] ss:$2 sm:$0xff] %v1807
  %v1886 = vld.sshfl [vmem:[#allocation1] sm:$0xff pattern:$0x75316420]
  %v1887 = vld.sshfl [vmem:[#allocation1 + $0x8] sm:$0xff pattern:$0x75316420]
  %1890 = vrot.lane.b32.xlu0 %v1886, 127
  %v1891 = vpop.permute.xlu0 %1890
  %1892 = vrot.lane.b32.xlu0 %v1887, 127
  %v1893 = vpop.permute.xlu0 %1892
  %v1894 = vsel %vm132, %v1891, %v1893
  %v1895 = vsel %vm132, %v1893, %v1891
  %v1896 = vld [vmem:[%s135] ss:$8 sm:$0x3]
  %v1898 = vperm.slane %v1896, 0
  %v1899 = vperm.slane %v1896, 1
  %v1902 = vmul.f32 %v1894, %v1898
  %v1903 = vmul.f32 %v1895, %v1899
  %1904 = vst [vmem:[#allocation1] ss:$2 sm:$0xff] %v1807
  %v1905 = vld.sshfl [vmem:[#allocation1] sm:$0xff pattern:$0x75316420]
  %v1906 = vld.sshfl [vmem:[#allocation1 + $0x8] sm:$0xff pattern:$0x75316420]
  %1909 = vrot.lane.b32.xlu0 %v1905, 113
  %v1910 = vpop.permute.xlu0 %1909
  %1911 = vrot.lane.b32.xlu0 %v1906, 113
  %v1912 = vpop.permute.xlu0 %1911
  %v1913 = vsel %vm153, %v1910, %v1912
  %v1914 = vsel %vm153, %v1912, %v1910
  %v1915 = vld [vmem:[%s156] ss:$8 sm:$0x3]
  %v1917 = vperm.slane %v1915, 0
  %v1918 = vperm.slane %v1915, 1
  %v1921 = vmul.f32 %v1913, %v1917
  %v1922 = vmul.f32 %v1914, %v1918
  %1923 = vst [vmem:[#allocation1] ss:$2 sm:$0xff] %v1807
  %v1924 = vld.sshfl [vmem:[#allocation1] sm:$0xff pattern:$0x75316420]
  %v1925 = vld.sshfl [vmem:[#allocation1 + $0x8] sm:$0xff pattern:$0x75316420]
  %1928 = vrot.lane.b32.xlu0 %v1924, 112
  %v1929 = vpop.permute.xlu0 %1928
  %1930 = vrot.lane.b32.xlu0 %v1925, 112
  %v1931 = vpop.permute.xlu0 %1930
  %v1932 = vsel %vm174, %v1929, %v1931
  %v1933 = vsel %vm174, %v1931, %v1929
  %v1934 = vld [vmem:[%s177] ss:$8 sm:$0x3]
  %v1936 = vperm.slane %v1934, 0
  %v1937 = vperm.slane %v1934, 1
  %v1940 = vmul.f32 %v1932, %v1936
  %v1941 = vmul.f32 %v1933, %v1937
  %1942 = vst [vmem:[#allocation1] ss:$2 sm:$0xff] %v1807
  %v1943 = vld.sshfl [vmem:[#allocation1] sm:$0xff pattern:$0x75316420]
  %v1944 = vld.sshfl [vmem:[#allocation1 + $0x8] sm:$0xff pattern:$0x75316420]
  %1947 = vrot.lane.b32.xlu0 %v1943, 111
  %v1948 = vpop.permute.xlu0 %1947
  %1949 = vrot.lane.b32.xlu0 %v1944, 111
  %v1950 = vpop.permute.xlu0 %1949
  %v1951 = vsel %vm195, %v1948, %v1950
  %v1952 = vsel %vm195, %v1950, %v1948
  %v1953 = vld [vmem:[%s198] ss:$8 sm:$0x3]
  %v1955 = vperm.slane %v1953, 0
  %v1956 = vperm.slane %v1953, 1
  %v1959 = vmul.f32 %v1951, %v1955
  %v1960 = vmul.f32 %v1952, %v1956
  %v1963 = vrot.slane %v1845, 4
  %v1964 = vrot.slane %v1846, 4
  %v1969 = vrot.slane %v1883, 4
  %v1970 = vrot.slane %v1884, 4
  %1973 = vst [vmem:[#allocation1] ss:$2 sm:$0xff] %v1807
  %v1974 = vld.sshfl [vmem:[#allocation1] sm:$0xff pattern:$0x75316420]
  %v1975 = vld.sshfl [vmem:[#allocation1 + $0x8] sm:$0xff pattern:$0x75316420]
  %v1980 = vrot.slane %v1902, 4
  %v1981 = vrot.slane %v1903, 4
  %v1986 = vrot.slane %v1940, 4
  %v1987 = vrot.slane %v1941, 4
  %v1990 = vsel %vm236, %v1826, %v1963
  %v1991 = vsel %vm236, %v1827, %v1964
  %v1992 = vsel %vm236, %v1864, %v1969
  %v1993 = vsel %vm236, %v1865, %v1970
  %v1994 = vsel %vm236, %v1974, %v1980
  %v1995 = vsel %vm236, %v1975, %v1981
  %v1996 = vsel %vm236, %v1921, %v1986
  %v1997 = vsel %vm236, %v1922, %v1987
  %v1998 = vld [vmem:[%s2] sm:$0xff]
  %v1999 = vld [vmem:[%s2 + $0x8] sm:$0xff]
  %v2000 = vld [vmem:[%s2 + $0x10] sm:$0xff]
  %v2001 = vld [vmem:[%s2 + $0x18] sm:$0xff]
  %v2002 = vld [vmem:[%s2 + $0x20] sm:$0xff]
  %v2003 = vld [vmem:[%s2 + $0x28] sm:$0xff]
  %v2004 = vld [vmem:[%s2 + $0x30] sm:$0xff]
  %v2005 = vld [vmem:[%s2 + $0x38] sm:$0xff]
  %v2006 = vld [vmem:[%s2 + $0x40] sm:$0xff]
  %v2007 = vld [vmem:[%s3] sm:$0xff]
  %v2008 = vld [vmem:[%s3 + $0x8] sm:$0xff]
  %v2009 = vld [vmem:[%s3 + $0x10] sm:$0xff]
  %v2010 = vld [vmem:[%s3 + $0x18] sm:$0xff]
  %v2011 = vld [vmem:[%s3 + $0x20] sm:$0xff]
  %v2012 = vld [vmem:[%s3 + $0x28] sm:$0xff]
  %v2013 = vld [vmem:[%s3 + $0x30] sm:$0xff]
  %v2014 = vld [vmem:[%s3 + $0x38] sm:$0xff]
  %v2015 = vld [vmem:[%s3 + $0x40] sm:$0xff]
  %2017 = vset.pattern.permute.xlu0 0
  %2018 = vperm.xlu0 %2017, %v2007
  %v2019 = vpop.permute.xlu0 %2018
  %2022 = vset.pattern.permute.xlu0 0
  %2023 = vperm.xlu0 %2022, %v2008
  %v2024 = vpop.permute.xlu0 %2023
  %2027 = vset.pattern.permute.xlu0 0
  %2028 = vperm.xlu0 %2027, %v2009
  %v2029 = vpop.permute.xlu0 %2028
  %2032 = vset.pattern.permute.xlu0 0
  %2033 = vperm.xlu0 %2032, %v2010
  %v2034 = vpop.permute.xlu0 %2033
  %2037 = vset.pattern.permute.xlu0 0
  %2038 = vperm.xlu0 %2037, %v2011
  %v2039 = vpop.permute.xlu0 %2038
  %2042 = vset.pattern.permute.xlu0 0
  %2043 = vperm.xlu0 %2042, %v2012
  %v2044 = vpop.permute.xlu0 %2043
  %2047 = vset.pattern.permute.xlu0 0
  %2048 = vperm.xlu0 %2047, %v2013
  %v2049 = vpop.permute.xlu0 %2048
  %2052 = vset.pattern.permute.xlu0 0
  %2053 = vperm.xlu0 %2052, %v2014
  %v2054 = vpop.permute.xlu0 %2053
  %2057 = vset.pattern.permute.xlu0 0
  %2058 = vperm.xlu0 %2057, %v2015
  %v2059 = vpop.permute.xlu0 %2058
  %v2062 = vsel %vm308, %v1998, 0
  %v2065 = vsel %vm308, %v1999, 0
  %v2068 = vsel %vm308, %v2000, 0
  %v2071 = vsel %vm308, %v2001, 0
  %v2074 = vsel %vm308, %v2002, 0
  %v2077 = vsel %vm308, %v2003, 0
  %v2080 = vsel %vm308, %v2004, 0
  %v2083 = vsel %vm308, %v2005, 0
  %v2086 = vsel %vm308, %v2006, 0
  %v2089 = vsel %vm236, %v1959, 0
  %v2092 = vsel %vm236, %v1960, 0
  %2094 = vmatpush.msra.mxu0 0.0
  %2095 = vmatpush.msra.mxu0 0.0
  %2096 = vmatpush.msra.mxu0 0.0
  %2097 = vmatpush.msra.mxu0 0.0
  %2098 = vmatpush.msra.mxu0 0.0
  %2099 = vmatpush.msra.mxu0 0.0
  %2100 = vmatpush.msra.mxu0 0.0
  %2101 = vmatpush.msra.mxu0 0.0
  %2102 = vmatpush.msra.mxu0 0.0
  %2103 = vmatpush.msra.mxu0 0.0
  %2104 = vmatpush.msra.mxu0 0.0
  %2105 = vmatpush.msra.mxu0 %v2089
  %2106 = vmatpush.msra.mxu0 %v1996
  %2107 = vmatpush.msra.mxu0 %v1994
  %2108 = vmatpush.msra.mxu0 %v1992
  %2109 = vmatpush.msra.mxu0 %v1990
  %2110 = vmatmul.f32.gmra.mxu0 %v2062
  %v2111 = vpop.f32.mrf.mxu0
  %v2112 = vadd.f32 %v2019, %v2111
  %2113 = vmatmul.f32.gmra.mxu0 %v2065
  %v2114 = vpop.f32.mrf.mxu0
  %v2115 = vadd.f32 %v2024, %v2114
  %2116 = vmatmul.f32.gmra.mxu0 %v2068
  %v2117 = vpop.f32.mrf.mxu0
  %v2118 = vadd.f32 %v2029, %v2117
  %2119 = vmatmul.f32.gmra.mxu0 %v2071
  %v2120 = vpop.f32.mrf.mxu0
  %v2121 = vadd.f32 %v2034, %v2120
  %2122 = vmatmul.f32.gmra.mxu0 %v2074
  %v2123 = vpop.f32.mrf.mxu0
  %v2124 = vadd.f32 %v2039, %v2123
  %2125 = vmatmul.f32.gmra.mxu0 %v2077
  %v2126 = vpop.f32.mrf.mxu0
  %v2127 = vadd.f32 %v2044, %v2126
  %2128 = vmatmul.f32.gmra.mxu0 %v2080
  %v2129 = vpop.f32.mrf.mxu0
  %v2130 = vadd.f32 %v2049, %v2129
  %2131 = vmatmul.f32.gmra.mxu0 %v2083
  %v2132 = vpop.f32.mrf.mxu0
  %v2133 = vadd.f32 %v2054, %v2132
  %2134 = vmatmul.f32.gmra.mxu0 %v2086
  %v2135 = vpop.f32.mrf.mxu0
  %v2136 = vadd.f32 %v2059, %v2135
  %2137 = vdwg.mxu0
  %2138 = vmatpush.msra.mxu0 0.0
  %2139 = vmatpush.msra.mxu0 0.0
  %2140 = vmatpush.msra.mxu0 0.0
  %2141 = vmatpush.msra.mxu0 0.0
  %2142 = vmatpush.msra.mxu0 0.0
  %2143 = vmatpush.msra.mxu0 0.0
  %2144 = vmatpush.msra.mxu0 0.0
  %2145 = vmatpush.msra.mxu0 0.0
  %2146 = vmatpush.msra.mxu0 0.0
  %2147 = vmatpush.msra.mxu0 0.0
  %2148 = vmatpush.msra.mxu0 0.0
  %2149 = vmatpush.msra.mxu0 %v2092
  %2150 = vmatpush.msra.mxu0 %v1997
  %2151 = vmatpush.msra.mxu0 %v1995
  %2152 = vmatpush.msra.mxu0 %v1993
  %2153 = vmatpush.msra.mxu0 %v1991
  %2154 = vmatmul.f32.gmra.mxu0 %v2062
  %v2155 = vpop.f32.mrf.mxu0
  %v2156 = vadd.f32 %v2019, %v2155
  %2157 = vmatmul.f32.gmra.mxu0 %v2065
  %v2158 = vpop.f32.mrf.mxu0
  %v2159 = vadd.f32 %v2024, %v2158
  %2160 = vmatmul.f32.gmra.mxu0 %v2068
  %v2161 = vpop.f32.mrf.mxu0
  %v2162 = vadd.f32 %v2029, %v2161
  %2163 = vmatmul.f32.gmra.mxu0 %v2071
  %v2164 = vpop.f32.mrf.mxu0
  %v2165 = vadd.f32 %v2034, %v2164
  %2166 = vmatmul.f32.gmra.mxu0 %v2074
  %v2167 = vpop.f32.mrf.mxu0
  %v2168 = vadd.f32 %v2039, %v2167
  %2169 = vmatmul.f32.gmra.mxu0 %v2077
  %v2170 = vpop.f32.mrf.mxu0
  %v2171 = vadd.f32 %v2044, %v2170
  %2172 = vmatmul.f32.gmra.mxu0 %v2080
  %v2173 = vpop.f32.mrf.mxu0
  %v2174 = vadd.f32 %v2049, %v2173
  %2175 = vmatmul.f32.gmra.mxu0 %v2083
  %v2176 = vpop.f32.mrf.mxu0
  %v2177 = vadd.f32 %v2054, %v2176
  %2178 = vmatmul.f32.gmra.mxu0 %v2086
  %v2179 = vpop.f32.mrf.mxu0
  %v2180 = vadd.f32 %v2059, %v2179
  %2181 = vdwg.mxu0
  %2182 = vrot.lane.b32.xlu0 %v2127, 34
  %v2183 = vpop.permute.xlu0 %2182
  %2184 = vrot.lane.b32.xlu0 %v2130, 34
  %v2185 = vpop.permute.xlu0 %2184
  %2186 = vrot.lane.b32.xlu0 %v2171, 34
  %v2187 = vpop.permute.xlu0 %2186
  %2188 = vrot.lane.b32.xlu0 %v2174, 34
  %v2189 = vpop.permute.xlu0 %2188
  %v2190 = vsel %vm438, %v2183, %v2187
  %v2191 = vsel %vm438, %v2185, %v2189
  %v2192 = vsel %vm438, %v2187, %v2183
  %v2193 = vsel %vm438, %v2189, %v2185
  %v2194 = vld [vmem:[%s1] ss:$8 sm:$0x3]
  %v2196 = vperm.slane %v2194, 0
  %v2197 = vperm.slane %v2194, 1
  %v2200 = vmul.f32 %v2192, %v2196
  %v2201 = vmul.f32 %v2190, %v2197
  %v2202 = vmul.f32 %v2193, %v2196
  %v2203 = vmul.f32 %v2191, %v2197
  %2204 = vrot.lane.b32.xlu0 %v2127, 33
  %v2205 = vpop.permute.xlu0 %2204
  %2206 = vrot.lane.b32.xlu0 %v2130, 33
  %v2207 = vpop.permute.xlu0 %2206
  %2208 = vrot.lane.b32.xlu0 %v2171, 33
  %v2209 = vpop.permute.xlu0 %2208
  %2210 = vrot.lane.b32.xlu0 %v2174, 33
  %v2211 = vpop.permute.xlu0 %2210
  %v2212 = vsel %vm461, %v2205, %v2209
  %v2213 = vsel %vm461, %v2207, %v2211
  %v2214 = vsel %vm461, %v2209, %v2205
  %v2215 = vsel %vm461, %v2211, %v2207
  %v2216 = vld [vmem:[%s466] ss:$8 sm:$0x3]
  %v2218 = vperm.slane %v2216, 0
  %v2219 = vperm.slane %v2216, 1
  %v2222 = vmul.f32 %v2214, %v2218
  %v2223 = vmul.f32 %v2212, %v2219
  %v2224 = vmul.f32 %v2215, %v2218
  %v2225 = vmul.f32 %v2213, %v2219
  %2226 = vrot.lane.b32.xlu0 %v2127, 32
  %v2227 = vpop.permute.xlu0 %2226
  %2228 = vrot.lane.b32.xlu0 %v2130, 32
  %v2229 = vpop.permute.xlu0 %2228
  %2230 = vrot.lane.b32.xlu0 %v2171, 32
  %v2231 = vpop.permute.xlu0 %2230
  %2232 = vrot.lane.b32.xlu0 %v2174, 32
  %v2233 = vpop.permute.xlu0 %2232
  %v2234 = vsel %vm485, %v2227, %v2231
  %v2235 = vsel %vm485, %v2229, %v2233
  %v2236 = vsel %vm485, %v2231, %v2227
  %v2237 = vsel %vm485, %v2233, %v2229
  %v2238 = vld [vmem:[%s490] ss:$8 sm:$0x3]
  %v2240 = vperm.slane %v2238, 0
  %v2241 = vperm.slane %v2238, 1
  %v2244 = vmul.f32 %v2236, %v2240
  %v2245 = vmul.f32 %v2234, %v2241
  %v2246 = vmul.f32 %v2237, %v2240
  %v2247 = vmul.f32 %v2235, %v2241
  %2248 = vrot.lane.b32.xlu0 %v2127, 31
  %v2249 = vpop.permute.xlu0 %2248
  %2250 = vrot.lane.b32.xlu0 %v2130, 31
  %v2251 = vpop.permute.xlu0 %2250
  %2252 = vrot.lane.b32.xlu0 %v2171, 31
  %v2253 = vpop.permute.xlu0 %2252
  %2254 = vrot.lane.b32.xlu0 %v2174, 31
  %v2255 = vpop.permute.xlu0 %2254
  %v2256 = vsel %vm509, %v2249, %v2253
  %v2257 = vsel %vm509, %v2251, %v2255
  %v2258 = vsel %vm509, %v2253, %v2249
  %v2259 = vsel %vm509, %v2255, %v2251
  %v2260 = vld [vmem:[%s514] ss:$8 sm:$0x3]
  %v2262 = vperm.slane %v2260, 0
  %v2263 = vperm.slane %v2260, 1
  %v2266 = vmul.f32 %v2258, %v2262
  %v2267 = vmul.f32 %v2256, %v2263
  %v2268 = vmul.f32 %v2259, %v2262
  %v2269 = vmul.f32 %v2257, %v2263
  %2270 = vrot.lane.b32.xlu0 %v2127, 30
  %v2271 = vpop.permute.xlu0 %2270
  %2272 = vrot.lane.b32.xlu0 %v2130, 30
  %v2273 = vpop.permute.xlu0 %2272
  %2274 = vrot.lane.b32.xlu0 %v2171, 30
  %v2275 = vpop.permute.xlu0 %2274
  %2276 = vrot.lane.b32.xlu0 %v2174, 30
  %v2277 = vpop.permute.xlu0 %2276
  %v2278 = vsel %vm533, %v2271, %v2275
  %v2279 = vsel %vm533, %v2273, %v2277
  %v2280 = vsel %vm533, %v2275, %v2271
  %v2281 = vsel %vm533, %v2277, %v2273
  %v2282 = vld [vmem:[%s538] ss:$8 sm:$0x3]
  %v2284 = vperm.slane %v2282, 0
  %v2285 = vperm.slane %v2282, 1
  %v2288 = vmul.f32 %v2280, %v2284
  %v2289 = vmul.f32 %v2278, %v2285
  %v2290 = vmul.f32 %v2281, %v2284
  %v2291 = vmul.f32 %v2279, %v2285
  %2292 = vrot.lane.b32.xlu0 %v2127, 18
  %v2293 = vpop.permute.xlu0 %2292
  %2294 = vrot.lane.b32.xlu0 %v2130, 18
  %v2295 = vpop.permute.xlu0 %2294
  %2296 = vrot.lane.b32.xlu0 %v2171, 18
  %v2297 = vpop.permute.xlu0 %2296
  %2298 = vrot.lane.b32.xlu0 %v2174, 18
  %v2299 = vpop.permute.xlu0 %2298
  %v2300 = vsel %vm557, %v2293, %v2297
  %v2301 = vsel %vm557, %v2295, %v2299
  %v2302 = vsel %vm557, %v2297, %v2293
  %v2303 = vsel %vm557, %v2299, %v2295
  %v2304 = vld [vmem:[%s562] ss:$8 sm:$0x3]
  %v2306 = vperm.slane %v2304, 0
  %v2307 = vperm.slane %v2304, 1
  %v2310 = vmul.f32 %v2302, %v2306
  %v2311 = vmul.f32 %v2300, %v2307
  %v2312 = vmul.f32 %v2303, %v2306
  %v2313 = vmul.f32 %v2301, %v2307
  %2314 = vrot.lane.b32.xlu0 %v2127, 17
  %v2315 = vpop.permute.xlu0 %2314
  %2316 = vrot.lane.b32.xlu0 %v2130, 17
  %v2317 = vpop.permute.xlu0 %2316
  %2318 = vrot.lane.b32.xlu0 %v2171, 17
  %v2319 = vpop.permute.xlu0 %2318
  %2320 = vrot.lane.b32.xlu0 %v2174, 17
  %v2321 = vpop.permute.xlu0 %2320
  %v2322 = vsel %vm48, %v2315, %v2319
  %v2323 = vsel %vm48, %v2317, %v2321
  %v2324 = vsel %vm48, %v2319, %v2315
  %v2325 = vsel %vm48, %v2321, %v2317
  %v2326 = vmul.f32 %v2324, %v1822
  %v2327 = vmul.f32 %v2322, %v1823
  %v2328 = vmul.f32 %v2325, %v1822
  %v2329 = vmul.f32 %v2323, %v1823
  %2330 = vrot.lane.b32.xlu0 %v2127, 16
  %v2331 = vpop.permute.xlu0 %2330
  %2332 = vrot.lane.b32.xlu0 %v2130, 16
  %v2333 = vpop.permute.xlu0 %2332
  %2334 = vrot.lane.b32.xlu0 %v2171, 16
  %v2335 = vpop.permute.xlu0 %2334
  %2336 = vrot.lane.b32.xlu0 %v2174, 16
  %v2337 = vpop.permute.xlu0 %2336
  %v2338 = vsel %vm69, %v2331, %v2335
  %v2339 = vsel %vm69, %v2333, %v2337
  %v2340 = vsel %vm69, %v2335, %v2331
  %v2341 = vsel %vm69, %v2337, %v2333
  %v2342 = vmul.f32 %v2340, %v1841
  %v2343 = vmul.f32 %v2338, %v1842
  %v2344 = vmul.f32 %v2341, %v1841
  %v2345 = vmul.f32 %v2339, %v1842
  %2346 = vrot.lane.b32.xlu0 %v2127, 15
  %v2347 = vpop.permute.xlu0 %2346
  %2348 = vrot.lane.b32.xlu0 %v2130, 15
  %v2349 = vpop.permute.xlu0 %2348
  %2350 = vrot.lane.b32.xlu0 %v2171, 15
  %v2351 = vpop.permute.xlu0 %2350
  %2352 = vrot.lane.b32.xlu0 %v2174, 15
  %v2353 = vpop.permute.xlu0 %2352
  %v2354 = vsel %vm90, %v2347, %v2351
  %v2355 = vsel %vm90, %v2349, %v2353
  %v2356 = vsel %vm90, %v2351, %v2347
  %v2357 = vsel %vm90, %v2353, %v2349
  %v2358 = vmul.f32 %v2356, %v1860
  %v2359 = vmul.f32 %v2354, %v1861
  %v2360 = vmul.f32 %v2357, %v1860
  %v2361 = vmul.f32 %v2355, %v1861
  %2362 = vrot.lane.b32.xlu0 %v2127, 14
  %v2363 = vpop.permute.xlu0 %2362
  %2364 = vrot.lane.b32.xlu0 %v2130, 14
  %v2365 = vpop.permute.xlu0 %2364
  %2366 = vrot.lane.b32.xlu0 %v2171, 14
  %v2367 = vpop.permute.xlu0 %2366
  %2368 = vrot.lane.b32.xlu0 %v2174, 14
  %v2369 = vpop.permute.xlu0 %2368
  %v2370 = vsel %vm629, %v2363, %v2367
  %v2371 = vsel %vm629, %v2365, %v2369
  %v2372 = vsel %vm629, %v2367, %v2363
  %v2373 = vsel %vm629, %v2369, %v2365
  %v2374 = vld [vmem:[%s634] ss:$8 sm:$0x3]
  %v2376 = vperm.slane %v2374, 0
  %v2377 = vperm.slane %v2374, 1
  %v2380 = vmul.f32 %v2372, %v2376
  %v2381 = vmul.f32 %v2370, %v2377
  %v2382 = vmul.f32 %v2373, %v2376
  %v2383 = vmul.f32 %v2371, %v2377
  %2384 = vrot.lane.b32.xlu0 %v2127, 2
  %v2385 = vpop.permute.xlu0 %2384
  %2386 = vrot.lane.b32.xlu0 %v2130, 2
  %v2387 = vpop.permute.xlu0 %2386
  %2388 = vrot.lane.b32.xlu0 %v2171, 2
  %v2389 = vpop.permute.xlu0 %2388
  %2390 = vrot.lane.b32.xlu0 %v2174, 2
  %v2391 = vpop.permute.xlu0 %2390
  %v2392 = vsel %vm653, %v2385, %v2389
  %v2393 = vsel %vm653, %v2387, %v2391
  %v2394 = vsel %vm653, %v2389, %v2385
  %v2395 = vsel %vm653, %v2391, %v2387
  %v2396 = vld [vmem:[%s658] ss:$8 sm:$0x3]
  %v2398 = vperm.slane %v2396, 0
  %v2399 = vperm.slane %v2396, 1
  %v2402 = vmul.f32 %v2394, %v2398
  %v2403 = vmul.f32 %v2392, %v2399
  %v2404 = vmul.f32 %v2395, %v2398
  %v2405 = vmul.f32 %v2393, %v2399
  %2406 = vrot.lane.b32.xlu0 %v2127, 1
  %v2407 = vpop.permute.xlu0 %2406
  %2408 = vrot.lane.b32.xlu0 %v2130, 1
  %v2409 = vpop.permute.xlu0 %2408
  %2410 = vrot.lane.b32.xlu0 %v2171, 1
  %v2411 = vpop.permute.xlu0 %2410
  %2412 = vrot.lane.b32.xlu0 %v2174, 1
  %v2413 = vpop.permute.xlu0 %2412
  %v2414 = vsel %vm111, %v2407, %v2411
  %v2415 = vsel %vm111, %v2409, %v2413
  %v2416 = vsel %vm111, %v2411, %v2407
  %v2417 = vsel %vm111, %v2413, %v2409
  %v2418 = vmul.f32 %v2416, %v1879
  %v2419 = vmul.f32 %v2414, %v1880
  %v2420 = vmul.f32 %v2417, %v1879
  %v2421 = vmul.f32 %v2415, %v1880
  %2422 = vrot.lane.b32.xlu0 %v2127, 127
  %v2423 = vpop.permute.xlu0 %2422
  %2424 = vrot.lane.b32.xlu0 %v2130, 127
  %v2425 = vpop.permute.xlu0 %2424
  %2426 = vrot.lane.b32.xlu0 %v2171, 127
  %v2427 = vpop.permute.xlu0 %2426
  %2428 = vrot.lane.b32.xlu0 %v2174, 127
  %v2429 = vpop.permute.xlu0 %2428
  %v2430 = vsel %vm132, %v2423, %v2427
  %v2431 = vsel %vm132, %v2425, %v2429
  %v2432 = vsel %vm132, %v2427, %v2423
  %v2433 = vsel %vm132, %v2429, %v2425
  %v2434 = vmul.f32 %v2430, %v1898
  %v2435 = vmul.f32 %v2432, %v1899
  %v2436 = vmul.f32 %v2431, %v1898
  %v2437 = vmul.f32 %v2433, %v1899
  %2438 = vrot.lane.b32.xlu0 %v2127, 126
  %v2439 = vpop.permute.xlu0 %2438
  %2440 = vrot.lane.b32.xlu0 %v2130, 126
  %v2441 = vpop.permute.xlu0 %2440
  %2442 = vrot.lane.b32.xlu0 %v2171, 126
  %v2443 = vpop.permute.xlu0 %2442
  %2444 = vrot.lane.b32.xlu0 %v2174, 126
  %v2445 = vpop.permute.xlu0 %2444
  %v2446 = vsel %vm709, %v2439, %v2443
  %v2447 = vsel %vm709, %v2441, %v2445
  %v2448 = vsel %vm709, %v2443, %v2439
  %v2449 = vsel %vm709, %v2445, %v2441
  %v2450 = vld [vmem:[%s714] ss:$8 sm:$0x3]
  %v2452 = vperm.slane %v2450, 0
  %v2453 = vperm.slane %v2450, 1
  %v2456 = vmul.f32 %v2446, %v2452
  %v2457 = vmul.f32 %v2448, %v2453
  %v2458 = vmul.f32 %v2447, %v2452
  %v2459 = vmul.f32 %v2449, %v2453
  %2460 = vrot.lane.b32.xlu0 %v2127, 114
  %v2461 = vpop.permute.xlu0 %2460
  %2462 = vrot.lane.b32.xlu0 %v2130, 114
  %v2463 = vpop.permute.xlu0 %2462
  %2464 = vrot.lane.b32.xlu0 %v2171, 114
  %v2465 = vpop.permute.xlu0 %2464
  %2466 = vrot.lane.b32.xlu0 %v2174, 114
  %v2467 = vpop.permute.xlu0 %2466
  %v2468 = vsel %vm733, %v2461, %v2465
  %v2469 = vsel %vm733, %v2463, %v2467
  %v2470 = vsel %vm733, %v2465, %v2461
  %v2471 = vsel %vm733, %v2467, %v2463
  %v2472 = vld [vmem:[%s738] ss:$8 sm:$0x3]
  %v2474 = vperm.slane %v2472, 0
  %v2475 = vperm.slane %v2472, 1
  %v2478 = vmul.f32 %v2468, %v2474
  %v2479 = vmul.f32 %v2470, %v2475
  %v2480 = vmul.f32 %v2469, %v2474
  %v2481 = vmul.f32 %v2471, %v2475
  %2482 = vrot.lane.b32.xlu0 %v2127, 113
  %v2483 = vpop.permute.xlu0 %2482
  %2484 = vrot.lane.b32.xlu0 %v2130, 113
  %v2485 = vpop.permute.xlu0 %2484
  %2486 = vrot.lane.b32.xlu0 %v2171, 113
  %v2487 = vpop.permute.xlu0 %2486
  %2488 = vrot.lane.b32.xlu0 %v2174, 113
  %v2489 = vpop.permute.xlu0 %2488
  %v2490 = vsel %vm153, %v2483, %v2487
  %v2491 = vsel %vm153, %v2485, %v2489
  %v2492 = vsel %vm153, %v2487, %v2483
  %v2493 = vsel %vm153, %v2489, %v2485
  %v2494 = vmul.f32 %v2490, %v1917
  %v2495 = vmul.f32 %v2492, %v1918
  %v2496 = vmul.f32 %v2491, %v1917
  %v2497 = vmul.f32 %v2493, %v1918
  %2498 = vrot.lane.b32.xlu0 %v2127, 112
  %v2499 = vpop.permute.xlu0 %2498
  %2500 = vrot.lane.b32.xlu0 %v2130, 112
  %v2501 = vpop.permute.xlu0 %2500
  %2502 = vrot.lane.b32.xlu0 %v2171, 112
  %v2503 = vpop.permute.xlu0 %2502
  %2504 = vrot.lane.b32.xlu0 %v2174, 112
  %v2505 = vpop.permute.xlu0 %2504
  %v2506 = vsel %vm174, %v2499, %v2503
  %v2507 = vsel %vm174, %v2501, %v2505
  %v2508 = vsel %vm174, %v2503, %v2499
  %v2509 = vsel %vm174, %v2505, %v2501
  %v2510 = vmul.f32 %v2506, %v1936
  %v2511 = vmul.f32 %v2508, %v1937
  %v2512 = vmul.f32 %v2507, %v1936
  %v2513 = vmul.f32 %v2509, %v1937
  %2514 = vrot.lane.b32.xlu0 %v2127, 111
  %v2515 = vpop.permute.xlu0 %2514
  %2516 = vrot.lane.b32.xlu0 %v2130, 111
  %v2517 = vpop.permute.xlu0 %2516
  %2518 = vrot.lane.b32.xlu0 %v2171, 111
  %v2519 = vpop.permute.xlu0 %2518
  %2520 = vrot.lane.b32.xlu0 %v2174, 111
  %v2521 = vpop.permute.xlu0 %2520
  %v2522 = vsel %vm195, %v2515, %v2519
  %v2523 = vsel %vm195, %v2517, %v2521
  %v2524 = vsel %vm195, %v2519, %v2515
  %v2525 = vsel %vm195, %v2521, %v2517
  %v2526 = vmul.f32 %v2522, %v1955
  %v2527 = vmul.f32 %v2524, %v1956
  %v2528 = vmul.f32 %v2523, %v1955
  %v2529 = vmul.f32 %v2525, %v1956
  %2530 = vrot.lane.b32.xlu0 %v2127, 110
  %v2531 = vpop.permute.xlu0 %2530
  %2532 = vrot.lane.b32.xlu0 %v2130, 110
  %v2533 = vpop.permute.xlu0 %2532
  %2534 = vrot.lane.b32.xlu0 %v2171, 110
  %v2535 = vpop.permute.xlu0 %2534
  %2536 = vrot.lane.b32.xlu0 %v2174, 110
  %v2537 = vpop.permute.xlu0 %2536
  %v2538 = vsel %vm805, %v2531, %v2535
  %v2539 = vsel %vm805, %v2533, %v2537
  %v2540 = vsel %vm805, %v2535, %v2531
  %v2541 = vsel %vm805, %v2537, %v2533
  %v2542 = vld [vmem:[%s810] ss:$8 sm:$0x3]
  %v2544 = vperm.slane %v2542, 0
  %v2545 = vperm.slane %v2542, 1
  %v2548 = vmul.f32 %v2538, %v2544
  %v2549 = vmul.f32 %v2540, %v2545
  %v2550 = vmul.f32 %v2539, %v2544
  %v2551 = vmul.f32 %v2541, %v2545
  %2552 = vrot.lane.b32.xlu0 %v2127, 98
  %v2553 = vpop.permute.xlu0 %2552
  %2554 = vrot.lane.b32.xlu0 %v2130, 98
  %v2555 = vpop.permute.xlu0 %2554
  %2556 = vrot.lane.b32.xlu0 %v2171, 98
  %v2557 = vpop.permute.xlu0 %2556
  %2558 = vrot.lane.b32.xlu0 %v2174, 98
  %v2559 = vpop.permute.xlu0 %2558
  %v2560 = vsel %vm829, %v2553, %v2557
  %v2561 = vsel %vm829, %v2555, %v2559
  %v2562 = vsel %vm829, %v2557, %v2553
  %v2563 = vsel %vm829, %v2559, %v2555
  %v2564 = vld [vmem:[%s834] ss:$8 sm:$0x3]
  %v2566 = vperm.slane %v2564, 0
  %v2567 = vperm.slane %v2564, 1
  %v2570 = vmul.f32 %v2560, %v2566
  %v2571 = vmul.f32 %v2562, %v2567
  %v2572 = vmul.f32 %v2561, %v2566
  %v2573 = vmul.f32 %v2563, %v2567
  %2574 = vrot.lane.b32.xlu0 %v2127, 97
  %v2575 = vpop.permute.xlu0 %2574
  %2576 = vrot.lane.b32.xlu0 %v2130, 97
  %v2577 = vpop.permute.xlu0 %2576
  %2578 = vrot.lane.b32.xlu0 %v2171, 97
  %v2579 = vpop.permute.xlu0 %2578
  %2580 = vrot.lane.b32.xlu0 %v2174, 97
  %v2581 = vpop.permute.xlu0 %2580
  %v2582 = vsel %vm853, %v2575, %v2579
  %v2583 = vsel %vm853, %v2577, %v2581
  %v2584 = vsel %vm853, %v2579, %v2575
  %v2585 = vsel %vm853, %v2581, %v2577
  %v2586 = vld [vmem:[%s858] ss:$8 sm:$0x3]
  %v2588 = vperm.slane %v2586, 0
  %v2589 = vperm.slane %v2586, 1
  %v2592 = vmul.f32 %v2582, %v2588
  %v2593 = vmul.f32 %v2584, %v2589
  %v2594 = vmul.f32 %v2583, %v2588
  %v2595 = vmul.f32 %v2585, %v2589
  %2596 = vrot.lane.b32.xlu0 %v2127, 96
  %v2597 = vpop.permute.xlu0 %2596
  %2598 = vrot.lane.b32.xlu0 %v2130, 96
  %v2599 = vpop.permute.xlu0 %2598
  %2600 = vrot.lane.b32.xlu0 %v2171, 96
  %v2601 = vpop.permute.xlu0 %2600
  %2602 = vrot.lane.b32.xlu0 %v2174, 96
  %v2603 = vpop.permute.xlu0 %2602
  %v2604 = vsel %vm877, %v2597, %v2601
  %v2605 = vsel %vm877, %v2599, %v2603
  %v2606 = vsel %vm877, %v2601, %v2597
  %v2607 = vsel %vm877, %v2603, %v2599
  %v2608 = vld [vmem:[%s882] ss:$8 sm:$0x3]
  %v2610 = vperm.slane %v2608, 0
  %v2611 = vperm.slane %v2608, 1
  %v2614 = vmul.f32 %v2604, %v2610
  %v2615 = vmul.f32 %v2606, %v2611
  %v2616 = vmul.f32 %v2605, %v2610
  %v2617 = vmul.f32 %v2607, %v2611
  %2618 = vrot.lane.b32.xlu0 %v2127, 95
  %v2619 = vpop.permute.xlu0 %2618
  %2620 = vrot.lane.b32.xlu0 %v2130, 95
  %v2621 = vpop.permute.xlu0 %2620
  %2622 = vrot.lane.b32.xlu0 %v2171, 95
  %v2623 = vpop.permute.xlu0 %2622
  %2624 = vrot.lane.b32.xlu0 %v2174, 95
  %v2625 = vpop.permute.xlu0 %2624
  %v2626 = vsel %vm901, %v2619, %v2623
  %v2627 = vsel %vm901, %v2621, %v2625
  %v2628 = vsel %vm901, %v2623, %v2619
  %v2629 = vsel %vm901, %v2625, %v2621
  %v2630 = vld [vmem:[%s906] ss:$8 sm:$0x3]
  %v2632 = vperm.slane %v2630, 0
  %v2633 = vperm.slane %v2630, 1
  %v2636 = vmul.f32 %v2626, %v2632
  %v2637 = vmul.f32 %v2628, %v2633
  %v2638 = vmul.f32 %v2627, %v2632
  %v2639 = vmul.f32 %v2629, %v2633
  %2640 = vrot.lane.b32.xlu0 %v2127, 94
  %v2641 = vpop.permute.xlu0 %2640
  %2642 = vrot.lane.b32.xlu0 %v2130, 94
  %v2643 = vpop.permute.xlu0 %2642
  %2644 = vrot.lane.b32.xlu0 %v2171, 94
  %v2645 = vpop.permute.xlu0 %2644
  %2646 = vrot.lane.b32.xlu0 %v2174, 94
  %v2647 = vpop.permute.xlu0 %2646
  %v2648 = vsel %vm925, %v2641, %v2645
  %v2649 = vsel %vm925, %v2643, %v2647
  %v2650 = vsel %vm925, %v2645, %v2641
  %v2651 = vsel %vm925, %v2647, %v2643
  %v2652 = vld [vmem:[%s930] ss:$8 sm:$0x3]
  %v2654 = vperm.slane %v2652, 0
  %v2655 = vperm.slane %v2652, 1
  %v2658 = vmul.f32 %v2648, %v2654
  %v2659 = vmul.f32 %v2650, %v2655
  %v2660 = vmul.f32 %v2649, %v2654
  %v2661 = vmul.f32 %v2651, %v2655
  %v2662 = vld [vmem:[%s4] sm:$0xff]
  %v2663 = vld [vmem:[%s4 + $0x8] sm:$0xff]
  %v2664 = vld [vmem:[%s4 + $0x10] sm:$0xff]
  %v2665 = vld [vmem:[%s4 + $0x18] sm:$0xff]
  %v2666 = vld [vmem:[%s4 + $0x20] sm:$0xff]
  %v2667 = vld [vmem:[%s4 + $0x28] sm:$0xff]
  %v2668 = vld [vmem:[%s4 + $0x30] sm:$0xff]
  %v2669 = vld [vmem:[%s4 + $0x38] sm:$0xff]
  %v2670 = vld [vmem:[%s4 + $0x40] sm:$0xff]
  %v2671 = vld [vmem:[%s4 + $0x48] sm:$0xff]
  %v2672 = vld [vmem:[%s4 + $0x50] sm:$0xff]
  %v2673 = vld [vmem:[%s4 + $0x58] sm:$0xff]
  %v2674 = vld [vmem:[%s5] sm:$0xff]
  %v2675 = vld [vmem:[%s5 + $0x8] sm:$0xff]
  %v2676 = vld [vmem:[%s5 + $0x10] sm:$0xff]
  %2678 = vset.pattern.permute.xlu0 0
  %2679 = vperm.xlu0 %2678, %v2674
  %v2680 = vpop.permute.xlu0 %2679
  %2683 = vset.pattern.permute.xlu0 0
  %2684 = vperm.xlu0 %2683, %v2675
  %v2685 = vpop.permute.xlu0 %2684
  %2688 = vset.pattern.permute.xlu0 0
  %2689 = vperm.xlu0 %2688, %v2676
  %v2690 = vpop.permute.xlu0 %2689
  %v2693 = vsel %vm971, %v2665, 0
  %v2696 = vsel %vm971, %v2669, 0
  %v2699 = vsel %vm971, %v2673, 0
  %2701 = vmatpush.msra.mxu0 %v2344
  %2702 = vmatpush.msra.mxu0 %v2342
  %2703 = vmatpush.msra.mxu0 %v2328
  %2704 = vmatpush.msra.mxu0 %v2326
  %2705 = vmatpush.msra.mxu0 %v2312
  %2706 = vmatpush.msra.mxu0 %v2310
  %2707 = vmatpush.msra.mxu0 %v2290
  %2708 = vmatpush.msra.mxu0 %v2288
  %2709 = vmatpush.msra.mxu0 %v2268
  %2710 = vmatpush.msra.mxu0 %v2266
  %2711 = vmatpush.msra.mxu0 %v2246
  %2712 = vmatpush.msra.mxu0 %v2244
  %2713 = vmatpush.msra.mxu0 %v2224
  %2714 = vmatpush.msra.mxu0 %v2222
  %2715 = vmatpush.msra.mxu0 %v2202
  %2716 = vmatpush.msra.mxu0 %v2200
  %2717 = vmatmul.f32.gmra.mxu0 %v2662
  %v2718 = vpop.f32.mrf.mxu0
  %v2719 = vadd.f32 %v2680, %v2718
  %2720 = vmatmul.f32.gmra.mxu0 %v2666
  %v2721 = vpop.f32.mrf.mxu0
  %v2722 = vadd.f32 %v2685, %v2721
  %2723 = vmatmul.f32.gmra.mxu0 %v2670
  %v2724 = vpop.f32.mrf.mxu0
  %v2725 = vadd.f32 %v2690, %v2724
  %2726 = vdwg.mxu0
  %2727 = vmatpush.msra.mxu0 %v2480
  %2728 = vmatpush.msra.mxu0 %v2478
  %2729 = vmatpush.msra.mxu0 %v2458
  %2730 = vmatpush.msra.mxu0 %v2456
  %2731 = vmatpush.msra.mxu0 %v2436
  %2732 = vmatpush.msra.mxu0 %v2434
  %2733 = vmatpush.msra.mxu0 %v2130
  %2734 = vmatpush.msra.mxu0 %v2127
  %2735 = vmatpush.msra.mxu0 %v2420
  %2736 = vmatpush.msra.mxu0 %v2418
  %2737 = vmatpush.msra.mxu0 %v2404
  %2738 = vmatpush.msra.mxu0 %v2402
  %2739 = vmatpush.msra.mxu0 %v2382
  %2740 = vmatpush.msra.mxu0 %v2380
  %2741 = vmatpush.msra.mxu0 %v2360
  %2742 = vmatpush.msra.mxu0 %v2358
  %2743 = vmatmul.f32.gmra.mxu0 %v2663
  %v2744 = vpop.f32.mrf.mxu0
  %v2745 = vadd.f32 %v2719, %v2744
  %2746 = vmatmul.f32.gmra.mxu0 %v2667
  %v2747 = vpop.f32.mrf.mxu0
  %v2748 = vadd.f32 %v2722, %v2747
  %2749 = vmatmul.f32.gmra.mxu0 %v2671
  %v2750 = vpop.f32.mrf.mxu0
  %v2751 = vadd.f32 %v2725, %v2750
  %2752 = vdwg.mxu0
  %2753 = vmatpush.msra.mxu0 %v2638
  %2754 = vmatpush.msra.mxu0 %v2636
  %2755 = vmatpush.msra.mxu0 %v2616
  %2756 = vmatpush.msra.mxu0 %v2614
  %2757 = vmatpush.msra.mxu0 %v2594
  %2758 = vmatpush.msra.mxu0 %v2592
  %2759 = vmatpush.msra.mxu0 %v2572
  %2760 = vmatpush.msra.mxu0 %v2570
  %2761 = vmatpush.msra.mxu0 %v2550
  %2762 = vmatpush.msra.mxu0 %v2548
  %2763 = vmatpush.msra.mxu0 %v2528
  %2764 = vmatpush.msra.mxu0 %v2526
  %2765 = vmatpush.msra.mxu0 %v2512
  %2766 = vmatpush.msra.mxu0 %v2510
  %2767 = vmatpush.msra.mxu0 %v2496
  %2768 = vmatpush.msra.mxu0 %v2494
  %2769 = vmatmul.f32.gmra.mxu0 %v2664
  %v2770 = vpop.f32.mrf.mxu0
  %v2771 = vadd.f32 %v2745, %v2770
  %2772 = vmatmul.f32.gmra.mxu0 %v2668
  %v2773 = vpop.f32.mrf.mxu0
  %v2774 = vadd.f32 %v2748, %v2773
  %2775 = vmatmul.f32.gmra.mxu0 %v2672
  %v2776 = vpop.f32.mrf.mxu0
  %v2777 = vadd.f32 %v2751, %v2776
  %2778 = vdwg.mxu0
  %2779 = vmatpush.msra.mxu0 0.0
  %2780 = vmatpush.msra.mxu0 0.0
  %2781 = vmatpush.msra.mxu0 0.0
  %2782 = vmatpush.msra.mxu0 0.0
  %2783 = vmatpush.msra.mxu0 0.0
  %2784 = vmatpush.msra.mxu0 0.0
  %2785 = vmatpush.msra.mxu0 0.0
  %2786 = vmatpush.msra.mxu0 0.0
  %2787 = vmatpush.msra.mxu0 0.0
  %2788 = vmatpush.msra.mxu0 0.0
  %2789 = vmatpush.msra.mxu0 0.0
  %2790 = vmatpush.msra.mxu0 0.0
  %2791 = vmatpush.msra.mxu0 0.0
  %2792 = vmatpush.msra.mxu0 0.0
  %2793 = vmatpush.msra.mxu0 %v2660
  %2794 = vmatpush.msra.mxu0 %v2658
  %2795 = vmatmul.f32.gmra.mxu0 %v2693
  %v2796 = vpop.f32.mrf.mxu0
  %v2797 = vadd.f32 %v2771, %v2796
  %2798 = vmatmul.f32.gmra.mxu0 %v2696
  %v2799 = vpop.f32.mrf.mxu0
  %v2800 = vadd.f32 %v2774, %v2799
  %2801 = vmatmul.f32.gmra.mxu0 %v2699
  %v2802 = vpop.f32.mrf.mxu0
  %v2803 = vadd.f32 %v2777, %v2802
  %2804 = vdwg.mxu0
  %2805 = vmatpush.msra.mxu0 %v2345
  %2806 = vmatpush.msra.mxu0 %v2343
  %2807 = vmatpush.msra.mxu0 %v2329
  %2808 = vmatpush.msra.mxu0 %v2327
  %2809 = vmatpush.msra.mxu0 %v2313
  %2810 = vmatpush.msra.mxu0 %v2311
  %2811 = vmatpush.msra.mxu0 %v2291
  %2812 = vmatpush.msra.mxu0 %v2289
  %2813 = vmatpush.msra.mxu0 %v2269
  %2814 = vmatpush.msra.mxu0 %v2267
  %2815 = vmatpush.msra.mxu0 %v2247
  %2816 = vmatpush.msra.mxu0 %v2245
  %2817 = vmatpush.msra.mxu0 %v2225
  %2818 = vmatpush.msra.mxu0 %v2223
  %2819 = vmatpush.msra.mxu0 %v2203
  %2820 = vmatpush.msra.mxu0 %v2201
  %2821 = vmatmul.f32.gmra.mxu0 %v2662
  %v2822 = vpop.f32.mrf.mxu0
  %v2823 = vadd.f32 %v2680, %v2822
  %2824 = vmatmul.f32.gmra.mxu0 %v2666
  %v2825 = vpop.f32.mrf.mxu0
  %v2826 = vadd.f32 %v2685, %v2825
  %2827 = vmatmul.f32.gmra.mxu0 %v2670
  %v2828 = vpop.f32.mrf.mxu0
  %v2829 = vadd.f32 %v2690, %v2828
  %2830 = vdwg.mxu0
  %2831 = vmatpush.msra.mxu0 %v2481
  %2832 = vmatpush.msra.mxu0 %v2479
  %2833 = vmatpush.msra.mxu0 %v2459
  %2834 = vmatpush.msra.mxu0 %v2457
  %2835 = vmatpush.msra.mxu0 %v2437
  %2836 = vmatpush.msra.mxu0 %v2435
  %2837 = vmatpush.msra.mxu0 %v2174
  %2838 = vmatpush.msra.mxu0 %v2171
  %2839 = vmatpush.msra.mxu0 %v2421
  %2840 = vmatpush.msra.mxu0 %v2419
  %2841 = vmatpush.msra.mxu0 %v2405
  %2842 = vmatpush.msra.mxu0 %v2403
  %2843 = vmatpush.msra.mxu0 %v2383
  %2844 = vmatpush.msra.mxu0 %v2381
  %2845 = vmatpush.msra.mxu0 %v2361
  %2846 = vmatpush.msra.mxu0 %v2359
  %2847 = vmatmul.f32.gmra.mxu0 %v2663
  %v2848 = vpop.f32.mrf.mxu0
  %v2849 = vadd.f32 %v2823, %v2848
  %2850 = vmatmul.f32.gmra.mxu0 %v2667
  %v2851 = vpop.f32.mrf.mxu0
  %v2852 = vadd.f32 %v2826, %v2851
  %2853 = vmatmul.f32.gmra.mxu0 %v2671
  %v2854 = vpop.f32.mrf.mxu0
  %v2855 = vadd.f32 %v2829, %v2854
  %2856 = vdwg.mxu0
  %2857 = vmatpush.msra.mxu0 %v2639
  %2858 = vmatpush.msra.mxu0 %v2637
  %2859 = vmatpush.msra.mxu0 %v2617
  %2860 = vmatpush.msra.mxu0 %v2615
  %2861 = vmatpush.msra.mxu0 %v2595
  %2862 = vmatpush.msra.mxu0 %v2593
  %2863 = vmatpush.msra.mxu0 %v2573
  %2864 = vmatpush.msra.mxu0 %v2571
  %2865 = vmatpush.msra.mxu0 %v2551
  %2866 = vmatpush.msra.mxu0 %v2549
  %2867 = vmatpush.msra.mxu0 %v2529
  %2868 = vmatpush.msra.mxu0 %v2527
  %2869 = vmatpush.msra.mxu0 %v2513
  %2870 = vmatpush.msra.mxu0 %v2511
  %2871 = vmatpush.msra.mxu0 %v2497
  %2872 = vmatpush.msra.mxu0 %v2495
  %2873 = vmatmul.f32.gmra.mxu0 %v2664
  %v2874 = vpop.f32.mrf.mxu0
  %v2875 = vadd.f32 %v2849, %v2874
  %2876 = vmatmul.f32.gmra.mxu0 %v2668
  %v2877 = vpop.f32.mrf.mxu0
  %v2878 = vadd.f32 %v2852, %v2877
  %2879 = vmatmul.f32.gmra.mxu0 %v2672
  %v2880 = vpop.f32.mrf.mxu0
  %v2881 = vadd.f32 %v2855, %v2880
  %2882 = vdwg.mxu0
  %2883 = vmatpush.msra.mxu0 0.0
  %2884 = vmatpush.msra.mxu0 0.0
  %2885 = vmatpush.msra.mxu0 0.0
  %2886 = vmatpush.msra.mxu0 0.0
  %2887 = vmatpush.msra.mxu0 0.0
  %2888 = vmatpush.msra.mxu0 0.0
  %2889 = vmatpush.msra.mxu0 0.0
  %2890 = vmatpush.msra.mxu0 0.0
  %2891 = vmatpush.msra.mxu0 0.0
  %2892 = vmatpush.msra.mxu0 0.0
  %2893 = vmatpush.msra.mxu0 0.0
  %2894 = vmatpush.msra.mxu0 0.0
  %2895 = vmatpush.msra.mxu0 0.0
  %2896 = vmatpush.msra.mxu0 0.0
  %2897 = vmatpush.msra.mxu0 %v2661
  %2898 = vmatpush.msra.mxu0 %v2659
  %2899 = vmatmul.f32.gmra.mxu0 %v2693
  %v2900 = vpop.f32.mrf.mxu0
  %v2901 = vadd.f32 %v2875, %v2900
  %2902 = vmatmul.f32.gmra.mxu0 %v2696
  %v2903 = vpop.f32.mrf.mxu0
  %v2904 = vadd.f32 %v2878, %v2903
  %2905 = vmatmul.f32.gmra.mxu0 %v2699
  %v2906 = vpop.f32.mrf.mxu0
  %v2907 = vadd.f32 %v2881, %v2906
  %2908 = vdwg.mxu0
  %2909 = vrot.lane.b32.xlu0 %v2133, 17
  %v2910 = vpop.permute.xlu0 %2909
  %2911 = vrot.lane.b32.xlu0 %v2136, 17
  %v2912 = vpop.permute.xlu0 %2911
  %2913 = vrot.lane.b32.xlu0 %v2177, 17
  %v2914 = vpop.permute.xlu0 %2913
  %2915 = vrot.lane.b32.xlu0 %v2180, 17
  %v2916 = vpop.permute.xlu0 %2915
  %v2917 = vsel %vm48, %v2910, %v2914
  %v2918 = vsel %vm48, %v2912, %v2916
  %v2919 = vsel %vm48, %v2914, %v2910
  %v2920 = vsel %vm48, %v2916, %v2912
  %v2921 = vmul.f32 %v2919, %v1822
  %v2922 = vmul.f32 %v2917, %v1823
  %v2923 = vmul.f32 %v2920, %v1822
  %v2924 = vmul.f32 %v2918, %v1823
  %2925 = vrot.lane.b32.xlu0 %v2133, 16
  %v2926 = vpop.permute.xlu0 %2925
  %2927 = vrot.lane.b32.xlu0 %v2136, 16
  %v2928 = vpop.permute.xlu0 %2927
  %2929 = vrot.lane.b32.xlu0 %v2177, 16
  %v2930 = vpop.permute.xlu0 %2929
  %2931 = vrot.lane.b32.xlu0 %v2180, 16
  %v2932 = vpop.permute.xlu0 %2931
  %v2933 = vsel %vm69, %v2926, %v2930
  %v2934 = vsel %vm69, %v2928, %v2932
  %v2935 = vsel %vm69, %v2930, %v2926
  %v2936 = vsel %vm69, %v2932, %v2928
  %v2937 = vmul.f32 %v2935, %v1841
  %v2938 = vmul.f32 %v2933, %v1842
  %v2939 = vmul.f32 %v2936, %v1841
  %v2940 = vmul.f32 %v2934, %v1842
  %2941 = vrot.lane.b32.xlu0 %v2133, 15
  %v2942 = vpop.permute.xlu0 %2941
  %2943 = vrot.lane.b32.xlu0 %v2136, 15
  %v2944 = vpop.permute.xlu0 %2943
  %2945 = vrot.lane.b32.xlu0 %v2177, 15
  %v2946 = vpop.permute.xlu0 %2945
  %2947 = vrot.lane.b32.xlu0 %v2180, 15
  %v2948 = vpop.permute.xlu0 %2947
  %v2949 = vsel %vm90, %v2942, %v2946
  %v2950 = vsel %vm90, %v2944, %v2948
  %v2951 = vsel %vm90, %v2946, %v2942
  %v2952 = vsel %vm90, %v2948, %v2944
  %v2953 = vmul.f32 %v2951, %v1860
  %v2954 = vmul.f32 %v2949, %v1861
  %v2955 = vmul.f32 %v2952, %v1860
  %v2956 = vmul.f32 %v2950, %v1861
  %2957 = vrot.lane.b32.xlu0 %v2133, 1
  %v2958 = vpop.permute.xlu0 %2957
  %2959 = vrot.lane.b32.xlu0 %v2136, 1
  %v2960 = vpop.permute.xlu0 %2959
  %2961 = vrot.lane.b32.xlu0 %v2177, 1
  %v2962 = vpop.permute.xlu0 %2961
  %2963 = vrot.lane.b32.xlu0 %v2180, 1
  %v2964 = vpop.permute.xlu0 %2963
  %v2965 = vsel %vm111, %v2958, %v2962
  %v2966 = vsel %vm111, %v2960, %v2964
  %v2967 = vsel %vm111, %v2962, %v2958
  %v2968 = vsel %vm111, %v2964, %v2960
  %v2969 = vmul.f32 %v2967, %v1879
  %v2970 = vmul.f32 %v2965, %v1880
  %v2971 = vmul.f32 %v2968, %v1879
  %v2972 = vmul.f32 %v2966, %v1880
  %2973 = vrot.lane.b32.xlu0 %v2133, 127
  %v2974 = vpop.permute.xlu0 %2973
  %2975 = vrot.lane.b32.xlu0 %v2136, 127
  %v2976 = vpop.permute.xlu0 %2975
  %2977 = vrot.lane.b32.xlu0 %v2177, 127
  %v2978 = vpop.permute.xlu0 %2977
  %2979 = vrot.lane.b32.xlu0 %v2180, 127
  %v2980 = vpop.permute.xlu0 %2979
  %v2981 = vsel %vm132, %v2974, %v2978
  %v2982 = vsel %vm132, %v2976, %v2980
  %v2983 = vsel %vm132, %v2978, %v2974
  %v2984 = vsel %vm132, %v2980, %v2976
  %v2985 = vmul.f32 %v2981, %v1898
  %v2986 = vmul.f32 %v2983, %v1899
  %v2987 = vmul.f32 %v2982, %v1898
  %v2988 = vmul.f32 %v2984, %v1899
  %2989 = vrot.lane.b32.xlu0 %v2133, 113
  %v2990 = vpop.permute.xlu0 %2989
  %2991 = vrot.lane.b32.xlu0 %v2136, 113
  %v2992 = vpop.permute.xlu0 %2991
  %2993 = vrot.lane.b32.xlu0 %v2177, 113
  %v2994 = vpop.permute.xlu0 %2993
  %2995 = vrot.lane.b32.xlu0 %v2180, 113
  %v2996 = vpop.permute.xlu0 %2995
  %v2997 = vsel %vm153, %v2990, %v2994
  %v2998 = vsel %vm153, %v2992, %v2996
  %v2999 = vsel %vm153, %v2994, %v2990
  %v3000 = vsel %vm153, %v2996, %v2992
  %v3001 = vmul.f32 %v2997, %v1917
  %v3002 = vmul.f32 %v2999, %v1918
  %v3003 = vmul.f32 %v2998, %v1917
  %v3004 = vmul.f32 %v3000, %v1918
  %3005 = vrot.lane.b32.xlu0 %v2133, 112
  %v3006 = vpop.permute.xlu0 %3005
  %3007 = vrot.lane.b32.xlu0 %v2136, 112
  %v3008 = vpop.permute.xlu0 %3007
  %3009 = vrot.lane.b32.xlu0 %v2177, 112
  %v3010 = vpop.permute.xlu0 %3009
  %3011 = vrot.lane.b32.xlu0 %v2180, 112
  %v3012 = vpop.permute.xlu0 %3011
  %v3013 = vsel %vm174, %v3006, %v3010
  %v3014 = vsel %vm174, %v3008, %v3012
  %v3015 = vsel %vm174, %v3010, %v3006
  %v3016 = vsel %vm174, %v3012, %v3008
  %v3017 = vmul.f32 %v3013, %v1936
  %v3018 = vmul.f32 %v3015, %v1937
  %v3019 = vmul.f32 %v3014, %v1936
  %v3020 = vmul.f32 %v3016, %v1937
  %3021 = vrot.lane.b32.xlu0 %v2133, 111
  %v3022 = vpop.permute.xlu0 %3021
  %3023 = vrot.lane.b32.xlu0 %v2136, 111
  %v3024 = vpop.permute.xlu0 %3023
  %3025 = vrot.lane.b32.xlu0 %v2177, 111
  %v3026 = vpop.permute.xlu0 %3025
  %3027 = vrot.lane.b32.xlu0 %v2180, 111
  %v3028 = vpop.permute.xlu0 %3027
  %v3029 = vsel %vm195, %v3022, %v3026
  %v3030 = vsel %vm195, %v3024, %v3028
  %v3031 = vsel %vm195, %v3026, %v3022
  %v3032 = vsel %vm195, %v3028, %v3024
  %v3033 = vmul.f32 %v3029, %v1955
  %v3034 = vmul.f32 %v3031, %v1956
  %v3035 = vmul.f32 %v3030, %v1955
  %v3036 = vmul.f32 %v3032, %v1956
  %v3037 = vld [vmem:[%s6] sm:$0xff]
  %v3038 = vld [vmem:[%s6 + $0x8] sm:$0xff]
  %v3039 = vld [vmem:[%s6 + $0x10] sm:$0xff]
  %v3040 = vld [vmem:[%s6 + $0x18] sm:$0xff]
  %v3041 = vld [vmem:[%s6 + $0x20] sm:$0xff]
  %v3042 = vld [vmem:[%s6 + $0x28] sm:$0xff]
  %v3043 = vld [vmem:[%s7] sm:$0xff]
  %v3044 = vld [vmem:[%s7 + $0x8] sm:$0xff]
  %v3045 = vld [vmem:[%s7 + $0x10] sm:$0xff]
  %3047 = vset.pattern.permute.xlu0 0
  %3048 = vperm.xlu0 %3047, %v3043
  %v3049 = vpop.permute.xlu0 %3048
  %3052 = vset.pattern.permute.xlu0 0
  %3053 = vperm.xlu0 %3052, %v3044
  %v3054 = vpop.permute.xlu0 %3053
  %3057 = vset.pattern.permute.xlu0 0
  %3058 = vperm.xlu0 %3057, %v3045
  %v3059 = vpop.permute.xlu0 %3058
  %v3062 = vsel %vm971, %v3038, 0
  %v3065 = vsel %vm971, %v3040, 0
  %v3068 = vsel %vm971, %v3042, 0
  %3070 = vmatpush.msra.mxu0 %v3019
  %3071 = vmatpush.msra.mxu0 %v3017
  %3072 = vmatpush.msra.mxu0 %v3003
  %3073 = vmatpush.msra.mxu0 %v3001
  %3074 = vmatpush.msra.mxu0 %v2987
  %3075 = vmatpush.msra.mxu0 %v2985
  %3076 = vmatpush.msra.mxu0 %v2136
  %3077 = vmatpush.msra.mxu0 %v2133
  %3078 = vmatpush.msra.mxu0 %v2971
  %3079 = vmatpush.msra.mxu0 %v2969
  %3080 = vmatpush.msra.mxu0 %v2955
  %3081 = vmatpush.msra.mxu0 %v2953
  %3082 = vmatpush.msra.mxu0 %v2939
  %3083 = vmatpush.msra.mxu0 %v2937
  %3084 = vmatpush.msra.mxu0 %v2923
  %3085 = vmatpush.msra.mxu0 %v2921
  %3086 = vmatmul.f32.gmra.mxu0 %v3037
  %v3087 = vpop.f32.mrf.mxu0
  %v3088 = vadd.f32 %v3049, %v3087
  %3089 = vmatmul.f32.gmra.mxu0 %v3039
  %v3090 = vpop.f32.mrf.mxu0
  %v3091 = vadd.f32 %v3054, %v3090
  %3092 = vmatmul.f32.gmra.mxu0 %v3041
  %v3093 = vpop.f32.mrf.mxu0
  %v3094 = vadd.f32 %v3059, %v3093
  %3095 = vdwg.mxu0
  %3096 = vmatpush.msra.mxu0 0.0
  %3097 = vmatpush.msra.mxu0 0.0
  %3098 = vmatpush.msra.mxu0 0.0
  %3099 = vmatpush.msra.mxu0 0.0
  %3100 = vmatpush.msra.mxu0 0.0
  %3101 = vmatpush.msra.mxu0 0.0
  %3102 = vmatpush.msra.mxu0 0.0
  %3103 = vmatpush.msra.mxu0 0.0
  %3104 = vmatpush.msra.mxu0 0.0
  %3105 = vmatpush.msra.mxu0 0.0
  %3106 = vmatpush.msra.mxu0 0.0
  %3107 = vmatpush.msra.mxu0 0.0
  %3108 = vmatpush.msra.mxu0 0.0
  %3109 = vmatpush.msra.mxu0 0.0
  %3110 = vmatpush.msra.mxu0 %v3035
  %3111 = vmatpush.msra.mxu0 %v3033
  %3112 = vmatmul.f32.gmra.mxu0 %v3062
  %v3113 = vpop.f32.mrf.mxu0
  %v3114 = vadd.f32 %v3088, %v3113
  %3115 = vmatmul.f32.gmra.mxu0 %v3065
  %v3116 = vpop.f32.mrf.mxu0
  %v3117 = vadd.f32 %v3091, %v3116
  %3118 = vmatmul.f32.gmra.mxu0 %v3068
  %v3119 = vpop.f32.mrf.mxu0
  %v3120 = vadd.f32 %v3094, %v3119
  %3121 = vdwg.mxu0
  %3122 = vmatpush.msra.mxu0 %v3020
  %3123 = vmatpush.msra.mxu0 %v3018
  %3124 = vmatpush.msra.mxu0 %v3004
  %3125 = vmatpush.msra.mxu0 %v3002
  %3126 = vmatpush.msra.mxu0 %v2988
  %3127 = vmatpush.msra.mxu0 %v2986
  %3128 = vmatpush.msra.mxu0 %v2180
  %3129 = vmatpush.msra.mxu0 %v2177
  %3130 = vmatpush.msra.mxu0 %v2972
  %3131 = vmatpush.msra.mxu0 %v2970
  %3132 = vmatpush.msra.mxu0 %v2956
  %3133 = vmatpush.msra.mxu0 %v2954
  %3134 = vmatpush.msra.mxu0 %v2940
  %3135 = vmatpush.msra.mxu0 %v2938
  %3136 = vmatpush.msra.mxu0 %v2924
  %3137 = vmatpush.msra.mxu0 %v2922
  %3138 = vmatmul.f32.gmra.mxu0 %v3037
  %v3139 = vpop.f32.mrf.mxu0
  %v3140 = vadd.f32 %v3049, %v3139
  %3141 = vmatmul.f32.gmra.mxu0 %v3039
  %v3142 = vpop.f32.mrf.mxu0
  %v3143 = vadd.f32 %v3054, %v3142
  %3144 = vmatmul.f32.gmra.mxu0 %v3041
  %v3145 = vpop.f32.mrf.mxu0
  %v3146 = vadd.f32 %v3059, %v3145
  %3147 = vdwg.mxu0
  %3148 = vmatpush.msra.mxu0 0.0
  %3149 = vmatpush.msra.mxu0 0.0
  %3150 = vmatpush.msra.mxu0 0.0
  %3151 = vmatpush.msra.mxu0 0.0
  %3152 = vmatpush.msra.mxu0 0.0
  %3153 = vmatpush.msra.mxu0 0.0
  %3154 = vmatpush.msra.mxu0 0.0
  %3155 = vmatpush.msra.mxu0 0.0
  %3156 = vmatpush.msra.mxu0 0.0
  %3157 = vmatpush.msra.mxu0 0.0
  %3158 = vmatpush.msra.mxu0 0.0
  %3159 = vmatpush.msra.mxu0 0.0
  %3160 = vmatpush.msra.mxu0 0.0
  %3161 = vmatpush.msra.mxu0 0.0
  %3162 = vmatpush.msra.mxu0 %v3036
  %3163 = vmatpush.msra.mxu0 %v3034
  %3164 = vmatmul.f32.gmra.mxu0 %v3062
  %v3165 = vpop.f32.mrf.mxu0
  %v3166 = vadd.f32 %v3140, %v3165
  %3167 = vmatmul.f32.gmra.mxu0 %v3065
  %v3168 = vpop.f32.mrf.mxu0
  %v3169 = vadd.f32 %v3143, %v3168
  %3170 = vmatmul.f32.gmra.mxu0 %v3068
  %v3171 = vpop.f32.mrf.mxu0
  %v3172 = vadd.f32 %v3146, %v3171
  %3173 = vdwg.mxu0
  %3174 = vrot.lane.b32.xlu0 %v3114, 17
  %v3175 = vpop.permute.xlu0 %3174
  %3176 = vrot.lane.b32.xlu0 %v3117, 17
  %v3177 = vpop.permute.xlu0 %3176
  %3178 = vrot.lane.b32.xlu0 %v3120, 17
  %v3179 = vpop.permute.xlu0 %3178
  %3180 = vrot.lane.b32.xlu0 %v3166, 17
  %v3181 = vpop.permute.xlu0 %3180
  %3182 = vrot.lane.b32.xlu0 %v3169, 17
  %v3183 = vpop.permute.xlu0 %3182
  %3184 = vrot.lane.b32.xlu0 %v3172, 17
  %v3185 = vpop.permute.xlu0 %3184
  %v3186 = vsel %vm48, %v3175, %v3181
  %v3187 = vsel %vm48, %v3177, %v3183
  %v3188 = vsel %vm48, %v3179, %v3185
  %v3189 = vsel %vm48, %v3181, %v3175
  %v3190 = vsel %vm48, %v3183, %v3177
  %v3191 = vsel %vm48, %v3185, %v3179
  %v3192 = vmul.f32 %v3189, %v1822
  %v3193 = vmul.f32 %v3186, %v1823
  %v3194 = vmul.f32 %v3190, %v1822
  %v3195 = vmul.f32 %v3187, %v1823
  %v3196 = vmul.f32 %v3191, %v1822
  %v3197 = vmul.f32 %v3188, %v1823
  %3198 = vrot.lane.b32.xlu0 %v3114, 16
  %v3199 = vpop.permute.xlu0 %3198
  %3200 = vrot.lane.b32.xlu0 %v3117, 16
  %v3201 = vpop.permute.xlu0 %3200
  %3202 = vrot.lane.b32.xlu0 %v3120, 16
  %v3203 = vpop.permute.xlu0 %3202
  %3204 = vrot.lane.b32.xlu0 %v3166, 16
  %v3205 = vpop.permute.xlu0 %3204
  %3206 = vrot.lane.b32.xlu0 %v3169, 16
  %v3207 = vpop.permute.xlu0 %3206
  %3208 = vrot.lane.b32.xlu0 %v3172, 16
  %v3209 = vpop.permute.xlu0 %3208
  %v3210 = vsel %vm69, %v3199, %v3205
  %v3211 = vsel %vm69, %v3201, %v3207
  %v3212 = vsel %vm69, %v3203, %v3209
  %v3213 = vsel %vm69, %v3205, %v3199
  %v3214 = vsel %vm69, %v3207, %v3201
  %v3215 = vsel %vm69, %v3209, %v3203
  %v3216 = vmul.f32 %v3213, %v1841
  %v3217 = vmul.f32 %v3210, %v1842
  %v3218 = vmul.f32 %v3214, %v1841
  %v3219 = vmul.f32 %v3211, %v1842
  %v3220 = vmul.f32 %v3215, %v1841
  %v3221 = vmul.f32 %v3212, %v1842
  %3222 = vrot.lane.b32.xlu0 %v3114, 15
  %v3223 = vpop.permute.xlu0 %3222
  %3224 = vrot.lane.b32.xlu0 %v3117, 15
  %v3225 = vpop.permute.xlu0 %3224
  %3226 = vrot.lane.b32.xlu0 %v3120, 15
  %v3227 = vpop.permute.xlu0 %3226
  %3228 = vrot.lane.b32.xlu0 %v3166, 15
  %v3229 = vpop.permute.xlu0 %3228
  %3230 = vrot.lane.b32.xlu0 %v3169, 15
  %v3231 = vpop.permute.xlu0 %3230
  %3232 = vrot.lane.b32.xlu0 %v3172, 15
  %v3233 = vpop.permute.xlu0 %3232
  %v3234 = vsel %vm90, %v3223, %v3229
  %v3235 = vsel %vm90, %v3225, %v3231
  %v3236 = vsel %vm90, %v3227, %v3233
  %v3237 = vsel %vm90, %v3229, %v3223
  %v3238 = vsel %vm90, %v3231, %v3225
  %v3239 = vsel %vm90, %v3233, %v3227
  %v3240 = vmul.f32 %v3237, %v1860
  %v3241 = vmul.f32 %v3234, %v1861
  %v3242 = vmul.f32 %v3238, %v1860
  %v3243 = vmul.f32 %v3235, %v1861
  %v3244 = vmul.f32 %v3239, %v1860
  %v3245 = vmul.f32 %v3236, %v1861
  %3246 = vrot.lane.b32.xlu0 %v3114, 1
  %v3247 = vpop.permute.xlu0 %3246
  %3248 = vrot.lane.b32.xlu0 %v3117, 1
  %v3249 = vpop.permute.xlu0 %3248
  %3250 = vrot.lane.b32.xlu0 %v3120, 1
  %v3251 = vpop.permute.xlu0 %3250
  %3252 = vrot.lane.b32.xlu0 %v3166, 1
  %v3253 = vpop.permute.xlu0 %3252
  %3254 = vrot.lane.b32.xlu0 %v3169, 1
  %v3255 = vpop.permute.xlu0 %3254
  %3256 = vrot.lane.b32.xlu0 %v3172, 1
  %v3257 = vpop.permute.xlu0 %3256
  %v3258 = vsel %vm111, %v3247, %v3253
  %v3259 = vsel %vm111, %v3249, %v3255
  %v3260 = vsel %vm111, %v3251, %v3257
  %v3261 = vsel %vm111, %v3253, %v3247
  %v3262 = vsel %vm111, %v3255, %v3249
  %v3263 = vsel %vm111, %v3257, %v3251
  %v3264 = vmul.f32 %v3261, %v1879
  %v3265 = vmul.f32 %v3258, %v1880
  %v3266 = vmul.f32 %v3262, %v1879
  %v3267 = vmul.f32 %v3259, %v1880
  %v3268 = vmul.f32 %v3263, %v1879
  %v3269 = vmul.f32 %v3260, %v1880
  %3270 = vrot.lane.b32.xlu0 %v3114, 127
  %v3271 = vpop.permute.xlu0 %3270
  %3272 = vrot.lane.b32.xlu0 %v3117, 127
  %v3273 = vpop.permute.xlu0 %3272
  %3274 = vrot.lane.b32.xlu0 %v3120, 127
  %v3275 = vpop.permute.xlu0 %3274
  %3276 = vrot.lane.b32.xlu0 %v3166, 127
  %v3277 = vpop.permute.xlu0 %3276
  %3278 = vrot.lane.b32.xlu0 %v3169, 127
  %v3279 = vpop.permute.xlu0 %3278
  %3280 = vrot.lane.b32.xlu0 %v3172, 127
  %v3281 = vpop.permute.xlu0 %3280
  %v3282 = vsel %vm132, %v3271, %v3277
  %v3283 = vsel %vm132, %v3273, %v3279
  %v3284 = vsel %vm132, %v3275, %v3281
  %v3285 = vsel %vm132, %v3277, %v3271
  %v3286 = vsel %vm132, %v3279, %v3273
  %v3287 = vsel %vm132, %v3281, %v3275
  %v3288 = vmul.f32 %v3282, %v1898
  %v3289 = vmul.f32 %v3285, %v1899
  %v3290 = vmul.f32 %v3283, %v1898
  %v3291 = vmul.f32 %v3286, %v1899
  %v3292 = vmul.f32 %v3284, %v1898
  %v3293 = vmul.f32 %v3287, %v1899
  %3294 = vrot.lane.b32.xlu0 %v3114, 113
  %v3295 = vpop.permute.xlu0 %3294
  %3296 = vrot.lane.b32.xlu0 %v3117, 113
  %v3297 = vpop.permute.xlu0 %3296
  %3298 = vrot.lane.b32.xlu0 %v3120, 113
  %v3299 = vpop.permute.xlu0 %3298
  %3300 = vrot.lane.b32.xlu0 %v3166, 113
  %v3301 = vpop.permute.xlu0 %3300
  %3302 = vrot.lane.b32.xlu0 %v3169, 113
  %v3303 = vpop.permute.xlu0 %3302
  %3304 = vrot.lane.b32.xlu0 %v3172, 113
  %v3305 = vpop.permute.xlu0 %3304
  %v3306 = vsel %vm153, %v3295, %v3301
  %v3307 = vsel %vm153, %v3297, %v3303
  %v3308 = vsel %vm153, %v3299, %v3305
  %v3309 = vsel %vm153, %v3301, %v3295
  %v3310 = vsel %vm153, %v3303, %v3297
  %v3311 = vsel %vm153, %v3305, %v3299
  %v3312 = vmul.f32 %v3306, %v1917
  %v3313 = vmul.f32 %v3309, %v1918
  %v3314 = vmul.f32 %v3307, %v1917
  %v3315 = vmul.f32 %v3310, %v1918
  %v3316 = vmul.f32 %v3308, %v1917
  %v3317 = vmul.f32 %v3311, %v1918
  %3318 = vrot.lane.b32.xlu0 %v3114, 112
  %v3319 = vpop.permute.xlu0 %3318
  %3320 = vrot.lane.b32.xlu0 %v3117, 112
  %v3321 = vpop.permute.xlu0 %3320
  %3322 = vrot.lane.b32.xlu0 %v3120, 112
  %v3323 = vpop.permute.xlu0 %3322
  %3324 = vrot.lane.b32.xlu0 %v3166, 112
  %v3325 = vpop.permute.xlu0 %3324
  %3326 = vrot.lane.b32.xlu0 %v3169, 112
  %v3327 = vpop.permute.xlu0 %3326
  %3328 = vrot.lane.b32.xlu0 %v3172, 112
  %v3329 = vpop.permute.xlu0 %3328
  %v3330 = vsel %vm174, %v3319, %v3325
  %v3331 = vsel %vm174, %v3321, %v3327
  %v3332 = vsel %vm174, %v3323, %v3329
  %v3333 = vsel %vm174, %v3325, %v3319
  %v3334 = vsel %vm174, %v3327, %v3321
  %v3335 = vsel %vm174, %v3329, %v3323
  %v3336 = vmul.f32 %v3330, %v1936
  %v3337 = vmul.f32 %v3333, %v1937
  %v3338 = vmul.f32 %v3331, %v1936
  %v3339 = vmul.f32 %v3334, %v1937
  %v3340 = vmul.f32 %v3332, %v1936
  %v3341 = vmul.f32 %v3335, %v1937
  %3342 = vrot.lane.b32.xlu0 %v3114, 111
  %v3343 = vpop.permute.xlu0 %3342
  %3344 = vrot.lane.b32.xlu0 %v3117, 111
  %v3345 = vpop.permute.xlu0 %3344
  %3346 = vrot.lane.b32.xlu0 %v3120, 111
  %v3347 = vpop.permute.xlu0 %3346
  %3348 = vrot.lane.b32.xlu0 %v3166, 111
  %v3349 = vpop.permute.xlu0 %3348
  %3350 = vrot.lane.b32.xlu0 %v3169, 111
  %v3351 = vpop.permute.xlu0 %3350
  %3352 = vrot.lane.b32.xlu0 %v3172, 111
  %v3353 = vpop.permute.xlu0 %3352
  %v3354 = vsel %vm195, %v3343, %v3349
  %v3355 = vsel %vm195, %v3345, %v3351
  %v3356 = vsel %vm195, %v3347, %v3353
  %v3357 = vsel %vm195, %v3349, %v3343
  %v3358 = vsel %vm195, %v3351, %v3345
  %v3359 = vsel %vm195, %v3353, %v3347
  %v3360 = vmul.f32 %v3354, %v1955
  %v3361 = vmul.f32 %v3357, %v1956
  %v3362 = vmul.f32 %v3355, %v1955
  %v3363 = vmul.f32 %v3358, %v1956
  %v3364 = vmul.f32 %v3356, %v1955
  %v3365 = vmul.f32 %v3359, %v1956
  %v3366 = vld [vmem:[%s8] sm:$0xff]
  %v3367 = vld [vmem:[%s8 + $0x8] sm:$0xff]
  %v3368 = vld [vmem:[%s8 + $0x10] sm:$0xff]
  %v3369 = vld [vmem:[%s8 + $0x18] sm:$0xff]
  %v3370 = vld [vmem:[%s8 + $0x20] sm:$0xff]
  %v3371 = vld [vmem:[%s8 + $0x28] sm:$0xff]
  %v3372 = vld [vmem:[%s9] sm:$0xff]
  %v3373 = vld [vmem:[%s9 + $0x8] sm:$0xff]
  %v3374 = vld [vmem:[%s9 + $0x10] sm:$0xff]
  %3376 = vset.pattern.permute.xlu0 0
  %3377 = vperm.xlu0 %3376, %v3372
  %v3378 = vpop.permute.xlu0 %3377
  %3381 = vset.pattern.permute.xlu0 0
  %3382 = vperm.xlu0 %3381, %v3373
  %v3383 = vpop.permute.xlu0 %3382
  %3386 = vset.pattern.permute.xlu0 0
  %3387 = vperm.xlu0 %3386, %v3374
  %v3388 = vpop.permute.xlu0 %3387
  %v3391 = vsel %vm1670, %v3367, 0
  %v3394 = vsel %vm1670, %v3369, 0
  %v3397 = vsel %vm1670, %v3371, 0
  %3399 = vmatpush.msra.mxu0 %v3288
  %3400 = vmatpush.msra.mxu0 %v3120
  %3401 = vmatpush.msra.mxu0 %v3117
  %3402 = vmatpush.msra.mxu0 %v3114
  %3403 = vmatpush.msra.mxu0 %v3268
  %3404 = vmatpush.msra.mxu0 %v3266
  %3405 = vmatpush.msra.mxu0 %v3264
  %3406 = vmatpush.msra.mxu0 %v3244
  %3407 = vmatpush.msra.mxu0 %v3242
  %3408 = vmatpush.msra.mxu0 %v3240
  %3409 = vmatpush.msra.mxu0 %v3220
  %3410 = vmatpush.msra.mxu0 %v3218
  %3411 = vmatpush.msra.mxu0 %v3216
  %3412 = vmatpush.msra.mxu0 %v3196
  %3413 = vmatpush.msra.mxu0 %v3194
  %3414 = vmatpush.msra.mxu0 %v3192
  %3415 = vmatmul.f32.gmra.mxu0 %v3366
  %v3416 = vpop.f32.mrf.mxu0
  %v3417 = vadd.f32 %v3378, %v3416
  %3418 = vmatmul.f32.gmra.mxu0 %v3368
  %v3419 = vpop.f32.mrf.mxu0
  %v3420 = vadd.f32 %v3383, %v3419
  %3421 = vmatmul.f32.gmra.mxu0 %v3370
  %v3422 = vpop.f32.mrf.mxu0
  %v3423 = vadd.f32 %v3388, %v3422
  %3424 = vdwg.mxu0
  %3425 = vmatpush.msra.mxu0 0.0
  %3426 = vmatpush.msra.mxu0 0.0
  %3427 = vmatpush.msra.mxu0 0.0
  %3428 = vmatpush.msra.mxu0 0.0
  %3429 = vmatpush.msra.mxu0 0.0
  %3430 = vmatpush.msra.mxu0 %v3364
  %3431 = vmatpush.msra.mxu0 %v3362
  %3432 = vmatpush.msra.mxu0 %v3360
  %3433 = vmatpush.msra.mxu0 %v3340
  %3434 = vmatpush.msra.mxu0 %v3338
  %3435 = vmatpush.msra.mxu0 %v3336
  %3436 = vmatpush.msra.mxu0 %v3316
  %3437 = vmatpush.msra.mxu0 %v3314
  %3438 = vmatpush.msra.mxu0 %v3312
  %3439 = vmatpush.msra.mxu0 %v3292
  %3440 = vmatpush.msra.mxu0 %v3290
  %3441 = vmatmul.f32.gmra.mxu0 %v3391
  %v3442 = vpop.f32.mrf.mxu0
  %v3443 = vadd.f32 %v3417, %v3442
  %3444 = vmatmul.f32.gmra.mxu0 %v3394
  %v3445 = vpop.f32.mrf.mxu0
  %v3446 = vadd.f32 %v3420, %v3445
  %3447 = vmatmul.f32.gmra.mxu0 %v3397
  %v3448 = vpop.f32.mrf.mxu0
  %v3449 = vadd.f32 %v3423, %v3448
  %3450 = vdwg.mxu0
  %3451 = vmatpush.msra.mxu0 %v3289
  %3452 = vmatpush.msra.mxu0 %v3172
  %3453 = vmatpush.msra.mxu0 %v3169
  %3454 = vmatpush.msra.mxu0 %v3166
  %3455 = vmatpush.msra.mxu0 %v3269
  %3456 = vmatpush.msra.mxu0 %v3267
  %3457 = vmatpush.msra.mxu0 %v3265
  %3458 = vmatpush.msra.mxu0 %v3245
  %3459 = vmatpush.msra.mxu0 %v3243
  %3460 = vmatpush.msra.mxu0 %v3241
  %3461 = vmatpush.msra.mxu0 %v3221
  %3462 = vmatpush.msra.mxu0 %v3219
  %3463 = vmatpush.msra.mxu0 %v3217
  %3464 = vmatpush.msra.mxu0 %v3197
  %3465 = vmatpush.msra.mxu0 %v3195
  %3466 = vmatpush.msra.mxu0 %v3193
  %3467 = vmatmul.f32.gmra.mxu0 %v3366
  %v3468 = vpop.f32.mrf.mxu0
  %v3469 = vadd.f32 %v3378, %v3468
  %3470 = vmatmul.f32.gmra.mxu0 %v3368
  %v3471 = vpop.f32.mrf.mxu0
  %v3472 = vadd.f32 %v3383, %v3471
  %3473 = vmatmul.f32.gmra.mxu0 %v3370
  %v3474 = vpop.f32.mrf.mxu0
  %v3475 = vadd.f32 %v3388, %v3474
  %3476 = vdwg.mxu0
  %3477 = vmatpush.msra.mxu0 0.0
  %3478 = vmatpush.msra.mxu0 0.0
  %3479 = vmatpush.msra.mxu0 0.0
  %3480 = vmatpush.msra.mxu0 0.0
  %3481 = vmatpush.msra.mxu0 0.0
  %3482 = vmatpush.msra.mxu0 %v3365
  %3483 = vmatpush.msra.mxu0 %v3363
  %3484 = vmatpush.msra.mxu0 %v3361
  %3485 = vmatpush.msra.mxu0 %v3341
  %3486 = vmatpush.msra.mxu0 %v3339
  %3487 = vmatpush.msra.mxu0 %v3337
  %3488 = vmatpush.msra.mxu0 %v3317
  %3489 = vmatpush.msra.mxu0 %v3315
  %3490 = vmatpush.msra.mxu0 %v3313
  %3491 = vmatpush.msra.mxu0 %v3293
  %3492 = vmatpush.msra.mxu0 %v3291
  %3493 = vmatmul.f32.gmra.mxu0 %v3391
  %v3494 = vpop.f32.mrf.mxu0
  %v3495 = vadd.f32 %v3469, %v3494
  %3496 = vmatmul.f32.gmra.mxu0 %v3394
  %v3497 = vpop.f32.mrf.mxu0
  %v3498 = vadd.f32 %v3472, %v3497
  %3499 = vmatmul.f32.gmra.mxu0 %v3397
  %v3500 = vpop.f32.mrf.mxu0
  %v3501 = vadd.f32 %v3475, %v3500
  %3502 = vdwg.mxu0
  %s3503 = scalar_lea.vmem %s10, 176
  %3504 = vst [vmem:[%s3503] sm:$0xff] %v2112
  %3505 = vst [vmem:[%s3503 + $0x8] sm:$0xff] %v2156
  %3506 = vst [vmem:[%s3503 + $0x10] sm:$0xff] %v2115
  %3507 = vst [vmem:[%s3503 + $0x18] sm:$0xff] %v2159
  %3508 = vst [vmem:[%s3503 + $0x20] sm:$0xff] %v2118
  %3509 = vst [vmem:[%s3503 + $0x28] sm:$0xff] %v2162
  %3510 = vst [vmem:[%s3503 + $0x30] sm:$0xff] %v2121
  %3511 = vst [vmem:[%s3503 + $0x38] sm:$0xff] %v2165
  %3512 = vst [vmem:[%s3503 + $0x40] sm:$0xff] %v2124
  %3513 = vst [vmem:[%s3503 + $0x48] sm:$0xff] %v2168
  %3514 = vst [vmem:[%s3503 + $0x50] sm:$0xff] %v2797
  %3515 = vst [vmem:[%s3503 + $0x58] sm:$0xff] %v2901
  %3516 = vst [vmem:[%s3503 + $0x60] sm:$0xff] %v2800
  %3517 = vst [vmem:[%s3503 + $0x68] sm:$0xff] %v2904
  %3518 = vst [vmem:[%s3503 + $0x70] sm:$0xff] %v2803
  %3519 = vst [vmem:[%s3503 + $0x78] sm:$0xff] %v2907
  %3520 = vst [vmem:[%s3503 + $0x80] sm:$0xff] %v3443
  %3521 = vst [vmem:[%s3503 + $0x88] sm:$0xff] %v3495
  %3522 = vst [vmem:[%s3503 + $0x90] sm:$0xff] %v3446
  %3523 = vst [vmem:[%s3503 + $0x98] sm:$0xff] %v3498
  %3524 = vst [vmem:[%s3503 + $0xa0] sm:$0xff] %v3449
  %3525 = vst [vmem:[%s3503 + $0xa8] sm:$0xff] %v3501
  // Predicated region
  $region42: #{inception_a.1} parent=0 // pred_check
    _
  $region43: #{inception_a.1} parent=0 // pred_check_branch
    %3527 = sbr.rel (0) target = $region45
  $region44: #{inception_a.1} parent=0 // pred_region
    _
  $region45: #{inception_a.1} parent=0 // pred_fallthru
    _
  // Predicated region
  $region46: #{inception_a.1} parent=0 // pred_check
    _
  $region47: #{inception_a.1} parent=0 // pred_check_branch
    %3529 = sbr.rel (0) target = $region49
  $region48: #{inception_a.1} parent=0 // pred_region
    _
  $region49: #{inception_a.1} parent=0 // pred_fallthru
    _

</llo_original>
